<compile_context>
chip_gen: v7x
topology: tpu7x:2x2x1
jax: 0.10.0
libtpu: 0.0.40
codegen_flags: <defaults>
</compile_context>

<pallas_src>
import jax
import jax.numpy as jnp
from jax import lax
from jax.experimental import pallas as pl
from jax.experimental.pallas import tpu as pltpu


# ---------------------------------------------------------------------------
# Fused Pallas kernel: conv (im2col matmul, bias folded) + ReLU + fc1 + ReLU + fc2
# ---------------------------------------------------------------------------
def fused_convmlp_kernel(p_ref, wc_ref, w1_ref, b1_ref, w2_ref, b2_ref, o_ref):
    # p_ref : [1, Kp, HW]      im2col patches for this image (row K = ones for bias)
    # wc_ref: [Cout, Kp]        conv weight, bias folded as column K
    # w1_ref: [Cout, HW, Hid]   fc1 weight pre-permuted (CHW flatten order absorbed)
    # b1_ref: [1, Hid]
    # w2_ref: [Hid, Out]
    # b2_ref: [1, Out]
    # o_ref : [1, 1, Out]
    cout = wc_ref.shape[0]

    # conv + bias + ReLU, kept as a lane-dense [Cout, HW] tile in VMEM/vregs.
    conv = jnp.dot(wc_ref[...], p_ref[0], preferred_element_type=jnp.float32)
    conv = jnp.maximum(conv, 0.0)                                   # [Cout, HW]

    # fc1: contract over the full feature axis (Cout x HW) by splitting the
    # contraction over channels -> no reshape/transpose of activations needed.
    hid = b1_ref[...]                                               # [1, Hid]
    for c in range(cout):                                           # unrolled, Cout small
        hid = hid + jnp.dot(conv[c:c + 1, :], w1_ref[c],
                            preferred_element_type=jnp.float32)
    hid = jnp.maximum(hid, 0.0)                                     # [1, Hid]

    # fc2
    out = jnp.dot(hid, w2_ref[...], preferred_element_type=jnp.float32) + b2_ref[...]
    o_ref[0] = out.astype(o_ref.dtype)                              # [1, Out]


# ---------------------------------------------------------------------------
# One-time parameter preparation (NOT on the per-forward critical path)
# ---------------------------------------------------------------------------
def prepare_params(params, H=28, W=28):
    wc, bc = params["wc"], params["bc"]        # [Cout, Cin, KH, KW], [Cout]
    w1, b1 = params["w1"], params["b1"]        # [Hid, Cout*H*W],     [Hid]
    w2, b2 = params["w2"], params["b2"]        # [Out, Hid],          [Out]

    Cout, Cin, KH, KW = wc.shape
    Hid = w1.shape[0]
    Out = w2.shape[0]
    HW = H * W
    K = Cin * KH * KW
    Kp = pl.next_power_of_2(K + 1)             # 27 (+1 bias row) -> 32

    # Conv weight: [Cout, K] + bias as column K, zero-pad to Kp.
    wc_flat = wc.reshape(Cout, K)
    wc_pad = jnp.concatenate(
        [wc_flat, bc[:, None], jnp.zeros((Cout, Kp - K - 1), wc.dtype)], axis=1)

    # fc1 weight: PyTorch flatten order is (c, h, w); permute once so the kernel's
    # [Cout, HW] conv tile can be consumed channel-by-channel with plain matmuls.
    w1r = w1.reshape(Hid, Cout, HW).transpose(1, 2, 0)      # [Cout, HW, Hid]

    return {
        "wc": wc_pad,                          # [Cout, Kp]
        "w1": w1r,                             # [Cout, HW, Hid]
        "b1": b1.reshape(1, Hid),
        "w2": w2.T,                            # [Hid, Out]
        "b2": b2.reshape(1, Out),
    }


# ---------------------------------------------------------------------------
# Forward
# ---------------------------------------------------------------------------
def conv_mlp_forward(x, prep, kh=3, kw=3, pad=1):
    B, Cin, H, W = x.shape
    Cout, Kp = prep["wc"].shape
    Hid = prep["b1"].shape[1]
    Out = prep["b2"].shape[1]
    HW = H * W
    K = Cin * kh * kw

    # im2col (XLA glue): [B, Kp, HW], k-order = (ci, di, dj) matching wc.reshape,
    # plus a ones-row for the folded bias and zero rows up to Kp.
    xp = jnp.pad(x, ((0, 0), (0, 0), (pad, pad), (pad, pad)))
    taps = [xp[:, :, di:di + H, dj:dj + W] for di in range(kh) for dj in range(kw)]
    patches = jnp.stack(taps, axis=2).reshape(B, K, HW)          # [B, K, HW]
    patches = jnp.concatenate(
        [patches,
         jnp.ones((B, 1, HW), x.dtype),
         jnp.zeros((B, Kp - K - 1, HW), x.dtype)], axis=1)       # [B, Kp, HW]

    flops = 2 * B * (HW * Kp * Cout + Cout * HW * Hid + Hid * Out)
    bytes_accessed = 4 * (B * Kp * HW + Cout * Kp + Cout * HW * Hid
                          + Hid + Hid * Out + Out + B * Out)

    out3 = pl.pallas_call(
        fused_convmlp_kernel,
        out_shape=jax.ShapeDtypeStruct((B, 1, Out), jnp.float32),
        grid=(B,),
        in_specs=[
            pl.BlockSpec((1, Kp, HW), lambda b: (b, 0, 0)),       # patches (per image)
            pl.BlockSpec((Cout, Kp), lambda b: (0, 0)),           # conv weight (+bias)
            pl.BlockSpec((Cout, HW, Hid), lambda b: (0, 0, 0)),   # fc1 weight
            pl.BlockSpec((1, Hid), lambda b: (0, 0)),             # fc1 bias
            pl.BlockSpec((Hid, Out), lambda b: (0, 0)),           # fc2 weight
            pl.BlockSpec((1, Out), lambda b: (0, 0)),             # fc2 bias
        ],
        out_specs=pl.BlockSpec((1, 1, Out), lambda b: (b, 0, 0)),
        compiler_params=pltpu.CompilerParams(
            dimension_semantics=("parallel",)),                    # 2 TCs on v7x
        cost_estimate=pl.CostEstimate(
            flops=flops, transcendentals=0, bytes_accessed=bytes_accessed),
    )(patches, prep["wc"], prep["w1"], prep["b1"], prep["w2"], prep["b2"])

    return out3.reshape(B, Out)


# ---------------------------------------------------------------------------
# Pure-JAX reference (correctness check only)
# ---------------------------------------------------------------------------
def reference_forward(x, params):
    wc, bc, w1, b1, w2, b2 = (params["wc"], params["bc"], params["w1"],
                              params["b1"], params["w2"], params["b2"])
    y = lax.conv_general_dilated(
        x, wc, window_strides=(1, 1), padding=((1, 1), (1, 1)),
        dimension_numbers=("NCHW", "OIHW", "NCHW"))
    y = jax.nn.relu(y + bc.reshape(1, -1, 1, 1))
    y = y.reshape(x.shape[0], -1)
    y = jax.nn.relu(y @ w1.T + b1)
    return y @ w2.T + b2


# ---------------------------------------------------------------------------
# Main
# ---------------------------------------------------------------------------
if __name__ == "__main__":
    # Small-but-consistent config: fc1 requires spatial 28x28 (per the module spec).
    B, Cin, H, W = 2, 3, 28, 28
    Cout, KH, KW = 8, 3, 3
    Hid, Out = 32, 10

    key = jax.random.PRNGKey(0)
    k_x, k_wc, k_bc, k_w1, k_b1, k_w2, k_b2 = jax.random.split(key, 7)

    x = jax.random.normal(k_x, (B, Cin, H, W), dtype=jnp.float32)
    params = {
        "wc": 0.05 * jax.random.normal(k_wc, (Cout, Cin, KH, KW), dtype=jnp.float32),
        "bc": 0.05 * jax.random.normal(k_bc, (Cout,), dtype=jnp.float32),
        "w1": 0.05 * jax.random.normal(k_w1, (Hid, Cout * H * W), dtype=jnp.float32),
        "b1": 0.05 * jax.random.normal(k_b1, (Hid,), dtype=jnp.float32),
        "w2": 0.05 * jax.random.normal(k_w2, (Out, Hid), dtype=jnp.float32),
        "b2": 0.05 * jax.random.normal(k_b2, (Out,), dtype=jnp.float32),
    }

    # One-time weight layout preparation (off the per-forward critical path).
    prep = jax.tree_util.tree_map(jax.block_until_ready, prepare_params(params, H, W))

    fwd = jax.jit(conv_mlp_forward)
    out = jax.block_until_ready(fwd(x, prep))
    ref = jax.block_until_ready(reference_forward(x, params))

    assert out.shape == (B, Out), out.shape
    assert jnp.allclose(out, ref, atol=1e-4, rtol=1e-4), "mismatch vs reference"
    print("KERNEL_OK")
</pallas_src>

<mosaic_0001>
module attributes {stable_mosaic.version = 11 : i64} {
  func.func @fused_convmlp_kernel(%arg0: i32, %arg1: memref<1x32x784xf32, #tpu.memory_space<vmem>>, %arg2: memref<8x32xf32, #tpu.memory_space<vmem>>, %arg3: memref<8x784x32xf32, #tpu.memory_space<vmem>>, %arg4: memref<1x32xf32, #tpu.memory_space<vmem>>, %arg5: memref<32x10xf32, #tpu.memory_space<vmem>>, %arg6: memref<1x10xf32, #tpu.memory_space<vmem>>, %arg7: memref<1x1x10xf32, #tpu.memory_space<vmem>>) attributes {dimension_semantics = [#tpu.dimension_semantics<parallel>], iteration_bounds = array<i64: 2>, scalar_prefetch = 0 : i64, scratch_operands = 0 : i64, tpu.core_type = #tpu.core_type<tc>, window_params = [{transform_indices = @transform_0, window_bounds = array<i64: 1, 32, 784>}, {pipeline_mode = #tpu.pipeline_mode<synchronous>, transform_indices = @transform_1, window_bounds = array<i64: 8, 32>}, {pipeline_mode = #tpu.pipeline_mode<synchronous>, transform_indices = @transform_2, window_bounds = array<i64: 8, 784, 32>}, {pipeline_mode = #tpu.pipeline_mode<synchronous>, transform_indices = @transform_3, window_bounds = array<i64: 1, 32>}, {pipeline_mode = #tpu.pipeline_mode<synchronous>, transform_indices = @transform_4, window_bounds = array<i64: 32, 10>}, {pipeline_mode = #tpu.pipeline_mode<synchronous>, transform_indices = @transform_5, window_bounds = array<i64: 1, 10>}, {transform_indices = @transform_6, window_bounds = array<i64: 1, 1, 10>}]} {
    %c0 = arith.constant 0 : index
    %c0_0 = arith.constant 0 : index
    %0 = vector.load %arg2[%c0, %c0_0] : memref<8x32xf32, #tpu.memory_space<vmem>>, vector<8x32xf32>
    %c0_1 = arith.constant 0 : index
    %c0_2 = arith.constant 0 : index
    %c0_3 = arith.constant 0 : index
    %1 = vector.load %arg1[%c0_1, %c0_2, %c0_3] : memref<1x32x784xf32, #tpu.memory_space<vmem>>, vector<1x32x784xf32>
    %2 = vector.shape_cast %1 : vector<1x32x784xf32> to vector<32x784xf32>
    %cst = arith.constant dense<0.000000e+00> : vector<8x784xf32>
    %3 = tpu.matmul %0, %2, %cst {dimension_numbers = #tpu.dot_dimension_numbers<[1], [0], [0], [1], [0, 0, 1, 1], [], []>} : vector<8x32xf32>, vector<32x784xf32>, vector<8x784xf32> -> vector<8x784xf32>
    %cst_4 = arith.constant 0.000000e+00 : f32
    %4 = vector.broadcast %cst_4 : f32 to vector<8x784xf32>
    %5 = arith.maximumf %3, %4 : vector<8x784xf32>
    %c0_5 = arith.constant 0 : index
    %c0_6 = arith.constant 0 : index
    %6 = vector.load %arg4[%c0_5, %c0_6] : memref<1x32xf32, #tpu.memory_space<vmem>>, vector<1x32xf32>
    %7 = vector.extract_strided_slice %5 {offsets = [0, 0], sizes = [1, 784], strides = [1, 1]} : vector<8x784xf32> to vector<1x784xf32>
    %c0_7 = arith.constant 0 : index
    %c0_8 = arith.constant 0 : index
    %c0_9 = arith.constant 0 : index
    %8 = vector.load %arg3[%c0_7, %c0_8, %c0_9] : memref<8x784x32xf32, #tpu.memory_space<vmem>>, vector<1x784x32xf32>
    %9 = vector.shape_cast %8 : vector<1x784x32xf32> to vector<784x32xf32>
    %cst_10 = arith.constant dense<0.000000e+00> : vector<1x32xf32>
    %10 = tpu.matmul %7, %9, %cst_10 {dimension_numbers = #tpu.dot_dimension_numbers<[1], [0], [0], [1], [0, 0, 1, 1], [], []>} : vector<1x784xf32>, vector<784x32xf32>, vector<1x32xf32> -> vector<1x32xf32>
    %11 = arith.addf %6, %10 : vector<1x32xf32>
    %12 = vector.extract_strided_slice %5 {offsets = [1, 0], sizes = [1, 784], strides = [1, 1]} : vector<8x784xf32> to vector<1x784xf32>
    %c1 = arith.constant 1 : index
    %c0_11 = arith.constant 0 : index
    %c0_12 = arith.constant 0 : index
    %13 = vector.load %arg3[%c1, %c0_11, %c0_12] : memref<8x784x32xf32, #tpu.memory_space<vmem>>, vector<1x784x32xf32>
    %14 = vector.shape_cast %13 : vector<1x784x32xf32> to vector<784x32xf32>
    %cst_13 = arith.constant dense<0.000000e+00> : vector<1x32xf32>
    %15 = tpu.matmul %12, %14, %cst_13 {dimension_numbers = #tpu.dot_dimension_numbers<[1], [0], [0], [1], [0, 0, 1, 1], [], []>} : vector<1x784xf32>, vector<784x32xf32>, vector<1x32xf32> -> vector<1x32xf32>
    %16 = arith.addf %11, %15 : vector<1x32xf32>
    %17 = vector.extract_strided_slice %5 {offsets = [2, 0], sizes = [1, 784], strides = [1, 1]} : vector<8x784xf32> to vector<1x784xf32>
    %c2 = arith.constant 2 : index
    %c0_14 = arith.constant 0 : index
    %c0_15 = arith.constant 0 : index
    %18 = vector.load %arg3[%c2, %c0_14, %c0_15] : memref<8x784x32xf32, #tpu.memory_space<vmem>>, vector<1x784x32xf32>
    %19 = vector.shape_cast %18 : vector<1x784x32xf32> to vector<784x32xf32>
    %cst_16 = arith.constant dense<0.000000e+00> : vector<1x32xf32>
    %20 = tpu.matmul %17, %19, %cst_16 {dimension_numbers = #tpu.dot_dimension_numbers<[1], [0], [0], [1], [0, 0, 1, 1], [], []>} : vector<1x784xf32>, vector<784x32xf32>, vector<1x32xf32> -> vector<1x32xf32>
    %21 = arith.addf %16, %20 : vector<1x32xf32>
    %22 = vector.extract_strided_slice %5 {offsets = [3, 0], sizes = [1, 784], strides = [1, 1]} : vector<8x784xf32> to vector<1x784xf32>
    %c3 = arith.constant 3 : index
    %c0_17 = arith.constant 0 : index
    %c0_18 = arith.constant 0 : index
    %23 = vector.load %arg3[%c3, %c0_17, %c0_18] : memref<8x784x32xf32, #tpu.memory_space<vmem>>, vector<1x784x32xf32>
    %24 = vector.shape_cast %23 : vector<1x784x32xf32> to vector<784x32xf32>
    %cst_19 = arith.constant dense<0.000000e+00> : vector<1x32xf32>
    %25 = tpu.matmul %22, %24, %cst_19 {dimension_numbers = #tpu.dot_dimension_numbers<[1], [0], [0], [1], [0, 0, 1, 1], [], []>} : vector<1x784xf32>, vector<784x32xf32>, vector<1x32xf32> -> vector<1x32xf32>
    %26 = arith.addf %21, %25 : vector<1x32xf32>
    %27 = vector.extract_strided_slice %5 {offsets = [4, 0], sizes = [1, 784], strides = [1, 1]} : vector<8x784xf32> to vector<1x784xf32>
    %c4 = arith.constant 4 : index
    %c0_20 = arith.constant 0 : index
    %c0_21 = arith.constant 0 : index
    %28 = vector.load %arg3[%c4, %c0_20, %c0_21] : memref<8x784x32xf32, #tpu.memory_space<vmem>>, vector<1x784x32xf32>
    %29 = vector.shape_cast %28 : vector<1x784x32xf32> to vector<784x32xf32>
    %cst_22 = arith.constant dense<0.000000e+00> : vector<1x32xf32>
    %30 = tpu.matmul %27, %29, %cst_22 {dimension_numbers = #tpu.dot_dimension_numbers<[1], [0], [0], [1], [0, 0, 1, 1], [], []>} : vector<1x784xf32>, vector<784x32xf32>, vector<1x32xf32> -> vector<1x32xf32>
    %31 = arith.addf %26, %30 : vector<1x32xf32>
    %32 = vector.extract_strided_slice %5 {offsets = [5, 0], sizes = [1, 784], strides = [1, 1]} : vector<8x784xf32> to vector<1x784xf32>
    %c5 = arith.constant 5 : index
    %c0_23 = arith.constant 0 : index
    %c0_24 = arith.constant 0 : index
    %33 = vector.load %arg3[%c5, %c0_23, %c0_24] : memref<8x784x32xf32, #tpu.memory_space<vmem>>, vector<1x784x32xf32>
    %34 = vector.shape_cast %33 : vector<1x784x32xf32> to vector<784x32xf32>
    %cst_25 = arith.constant dense<0.000000e+00> : vector<1x32xf32>
    %35 = tpu.matmul %32, %34, %cst_25 {dimension_numbers = #tpu.dot_dimension_numbers<[1], [0], [0], [1], [0, 0, 1, 1], [], []>} : vector<1x784xf32>, vector<784x32xf32>, vector<1x32xf32> -> vector<1x32xf32>
    %36 = arith.addf %31, %35 : vector<1x32xf32>
    %37 = vector.extract_strided_slice %5 {offsets = [6, 0], sizes = [1, 784], strides = [1, 1]} : vector<8x784xf32> to vector<1x784xf32>
    %c6 = arith.constant 6 : index
    %c0_26 = arith.constant 0 : index
    %c0_27 = arith.constant 0 : index
    %38 = vector.load %arg3[%c6, %c0_26, %c0_27] : memref<8x784x32xf32, #tpu.memory_space<vmem>>, vector<1x784x32xf32>
    %39 = vector.shape_cast %38 : vector<1x784x32xf32> to vector<784x32xf32>
    %cst_28 = arith.constant dense<0.000000e+00> : vector<1x32xf32>
    %40 = tpu.matmul %37, %39, %cst_28 {dimension_numbers = #tpu.dot_dimension_numbers<[1], [0], [0], [1], [0, 0, 1, 1], [], []>} : vector<1x784xf32>, vector<784x32xf32>, vector<1x32xf32> -> vector<1x32xf32>
    %41 = arith.addf %36, %40 : vector<1x32xf32>
    %42 = vector.extract_strided_slice %5 {offsets = [7, 0], sizes = [1, 784], strides = [1, 1]} : vector<8x784xf32> to vector<1x784xf32>
    %c7 = arith.constant 7 : index
    %c0_29 = arith.constant 0 : index
    %c0_30 = arith.constant 0 : index
    %43 = vector.load %arg3[%c7, %c0_29, %c0_30] : memref<8x784x32xf32, #tpu.memory_space<vmem>>, vector<1x784x32xf32>
    %44 = vector.shape_cast %43 : vector<1x784x32xf32> to vector<784x32xf32>
    %cst_31 = arith.constant dense<0.000000e+00> : vector<1x32xf32>
    %45 = tpu.matmul %42, %44, %cst_31 {dimension_numbers = #tpu.dot_dimension_numbers<[1], [0], [0], [1], [0, 0, 1, 1], [], []>} : vector<1x784xf32>, vector<784x32xf32>, vector<1x32xf32> -> vector<1x32xf32>
    %46 = arith.addf %41, %45 : vector<1x32xf32>
    %cst_32 = arith.constant 0.000000e+00 : f32
    %47 = vector.broadcast %cst_32 : f32 to vector<1x32xf32>
    %48 = arith.maximumf %46, %47 : vector<1x32xf32>
    %c0_33 = arith.constant 0 : index
    %c0_34 = arith.constant 0 : index
    %49 = vector.load %arg5[%c0_33, %c0_34] : memref<32x10xf32, #tpu.memory_space<vmem>>, vector<32x10xf32>
    %cst_35 = arith.constant dense<0.000000e+00> : vector<1x10xf32>
    %50 = tpu.matmul %48, %49, %cst_35 {dimension_numbers = #tpu.dot_dimension_numbers<[1], [0], [0], [1], [0, 0, 1, 1], [], []>} : vector<1x32xf32>, vector<32x10xf32>, vector<1x10xf32> -> vector<1x10xf32>
    %c0_36 = arith.constant 0 : index
    %c0_37 = arith.constant 0 : index
    %51 = vector.load %arg6[%c0_36, %c0_37] : memref<1x10xf32, #tpu.memory_space<vmem>>, vector<1x10xf32>
    %52 = arith.addf %50, %51 : vector<1x10xf32>
    %c0_38 = arith.constant 0 : index
    %c0_39 = arith.constant 0 : index
    %c0_40 = arith.constant 0 : index
    %53 = vector.load %arg7[%c0_38, %c0_39, %c0_40] : memref<1x1x10xf32, #tpu.memory_space<vmem>>, vector<1x1x10xf32>
    %54 = vector.shape_cast %53 : vector<1x1x10xf32> to vector<1x10xf32>
    %55 = vector.shape_cast %52 : vector<1x10xf32> to vector<1x1x10xf32>
    tpu.vector_store %arg7[%c0_38, %c0_39, %c0_40], %55 {strides = array<i32>} : memref<1x1x10xf32, #tpu.memory_space<vmem>>, vector<1x1x10xf32>,
    return
  }
  func.func @transform_0(%arg0: i32) -> (i32, i32, i32) {
    %c0_i32 = arith.constant 0 : i32
    %c0_i32_0 = arith.constant 0 : i32
    %c0_i32_1 = arith.constant 0 : i32
    return %arg0, %c0_i32, %c0_i32_0 : i32, i32, i32
  }
  func.func @transform_1(%arg0: i32) -> (i32, i32) {
    %c0_i32 = arith.constant 0 : i32
    %c0_i32_0 = arith.constant 0 : i32
    %c0_i32_1 = arith.constant 0 : i32
    return %c0_i32, %c0_i32_0 : i32, i32
  }
  func.func @transform_2(%arg0: i32) -> (i32, i32, i32) {
    %c0_i32 = arith.constant 0 : i32
    %c0_i32_0 = arith.constant 0 : i32
    %c0_i32_1 = arith.constant 0 : i32
    %c0_i32_2 = arith.constant 0 : i32
    return %c0_i32, %c0_i32_0, %c0_i32_1 : i32, i32, i32
  }
  func.func @transform_3(%arg0: i32) -> (i32, i32) {
    %c0_i32 = arith.constant 0 : i32
    %c0_i32_0 = arith.constant 0 : i32
    %c0_i32_1 = arith.constant 0 : i32
    return %c0_i32, %c0_i32_0 : i32, i32
  }
  func.func @transform_4(%arg0: i32) -> (i32, i32) {
    %c0_i32 = arith.constant 0 : i32
    %c0_i32_0 = arith.constant 0 : i32
    %c0_i32_1 = arith.constant 0 : i32
    return %c0_i32, %c0_i32_0 : i32, i32
  }
  func.func @transform_5(%arg0: i32) -> (i32, i32) {
    %c0_i32 = arith.constant 0 : i32
    %c0_i32_0 = arith.constant 0 : i32
    %c0_i32_1 = arith.constant 0 : i32
    return %c0_i32, %c0_i32_0 : i32, i32
  }
  func.func @transform_6(%arg0: i32) -> (i32, i32, i32) {
    %c0_i32 = arith.constant 0 : i32
    %c0_i32_0 = arith.constant 0 : i32
    %c0_i32_1 = arith.constant 0 : i32
    return %arg0, %c0_i32, %c0_i32_0 : i32, i32, i32
  }
}

</mosaic_0001>

<llo_original>
// kernel: conv_mlp_forward.1
$region0: #{conv_mlp_forward.1}
  #allocation0 [shape = 'u32[]', space=smem, size = 0x4, offset = 0x4, fixed_abs, tag = 'smem constant byte address 0x4 - core index']
  #allocation1 [shape = 'u32[144,128]{1,0:T(1,128)}', space=vmem, size = 0x12000, scoped, tag = 'internal scratch']
  %s0 = inlined_call_operand.vmem [shape: f32[2,32,784], index: 0, kind: input, shape index: {}]
  %s1 = inlined_call_operand.vmem [shape: f32[8,32], index: 1, kind: input, shape index: {}]
  %s2 = inlined_call_operand.vmem [shape: f32[8,784,32], index: 2, kind: input, shape index: {}]
  %s3 = inlined_call_operand.vmem [shape: f32[1,32], index: 3, kind: input, shape index: {}]
  %s4 = inlined_call_operand.vmem [shape: f32[32,10], index: 4, kind: input, shape index: {}]
  %s5 = inlined_call_operand.vmem [shape: f32[1,10], index: 5, kind: input, shape index: {}]
  %s6 = inlined_call_operand.hbm [shape: f32[2,1,10], index: 6, kind: output, shape index: {}]
  %s7 = sld [smem:[#allocation0]]
  $region57: #{conv_mlp_forward.1} parent=0
    _
  %s9 = ssub.s32 1, %s7
  %s10 = scalar_select 0, %s9, %s7
  $region1: #{conv_mlp_forward.1} parent=0
    #allocation2 [shape = 'u8[1024]{0}', space=vmem, size = 0x400, scoped, tag = 'output window, operand 0']
    #allocation3 [shape = 's32[2]{0}', space=sflag, size = 0x8, scoped, tag = 'scoped memory for conv_mlp_forward.1']
    %11 = vsyncpa [#allocation3], 0
    %s12 = scalar_lea.sflag [#allocation3], 1
    %13 = vsyncpa %s12, 0
    loop: start=0, step=1, limit=4
    $region2: #{conv_mlp_forward.1} parent=1 // loop_pre_header
      _
    $region3: #{conv_mlp_forward.1} parent=1 // loop_header
      %s15 = sphi 0, %s19
      %p16 = scmp.ge.s32.totalorder %s15, 4
      %s25 = sphi 0, %s27
      %s28 = sphi 0, %s25
      %s29 = sphi 0, %s28
      %s45 = sphi 0, %s29
      %s49 = sphi 0, %s49
      %s51 = sphi 0, %s49
      %s52 = sphi 0, %s51
      %s66 = sphi 0, %s52
      %s70 = sphi 0, %s70
      %s72 = sphi 0, %s70
      %s73 = sphi 0, %s72
      %s87 = sphi 0, %s73
      %s91 = sphi 0, %s91
      %s93 = sphi 0, %s91
      %s94 = sphi 0, %s93
      %s108 = sphi 0, %s94
      %s112 = sphi 0, %s112
      %s114 = sphi 0, %s112
      %s115 = sphi 0, %s114
      %s129 = sphi 0, %s115
      %s133 = sphi 0, %s133
      %s135 = sphi 0, %s133
      %s136 = sphi 0, %s135
      %s150 = sphi 0, %s136
      %s156 = sphi 0, %s158
      %s159 = sphi 0, %s156
      %s160 = sphi 0, %s159
      %s176 = sphi 0, %s160
    $region4: #{conv_mlp_forward.1} parent=1 // loop_header_branch
      %18 = sbr.rel (%p16) target = $region8
    $region5: #{conv_mlp_forward.1} parent=1 // loop_body
      %s20 = ssub.s32 %s15, 1
      %s21 = ssub.s32 %s15, 2
      %s22 = sadd.s32 %s15, 1
      %s23 = ssub.s32 %s15, %s22
      %p24 = scmp.eq.s32.totalorder %s23, 0
      %s26 = sadd.s32 %s25, 1
      %s27 = scalar_select %p24, %s25, %s26
      %p30 = pneg %p24
      %p31 = scmp.eq.s32.totalorder %s15, 1
      %p32 = por %p30, %p31
      %p33 = scmp.ne.s32.totalorder %s25, %s28
      %p34 = scmp.eq.s32.totalorder %s15, 0
      %p35 = por %p33, %p34
      %p36 = scmp.ne.s32.totalorder %s25, %s28
      %p37 = scmp.eq.s32.totalorder %s20, 1
      %p38 = por %p36, %p37
      %p39 = scmp.ne.s32.totalorder %s28, %s29
      %p40 = scmp.eq.s32.totalorder %s20, 0
      %p41 = por %p39, %p40
      %p42 = scmp.ne.s32.totalorder %s28, %s29
      %p43 = scmp.eq.s32.totalorder %s21, 1
      %p44 = por %p42, %p43
      %p46 = scmp.ne.s32.totalorder %s29, %s45
      %p47 = scmp.eq.s32.totalorder %s21, 0
      %p48 = por %p46, %p47
      %s50 = sadd.s32 %s49, 1
      %p53 = scmp.eq.s32.totalorder %s15, 1
      %p54 = scmp.ne.s32.totalorder %s49, %s51
      %p55 = scmp.eq.s32.totalorder %s15, 0
      %p56 = por %p54, %p55
      %p57 = scmp.ne.s32.totalorder %s49, %s51
      %p58 = scmp.eq.s32.totalorder %s20, 1
      %p59 = por %p57, %p58
      %p60 = scmp.ne.s32.totalorder %s51, %s52
      %p61 = scmp.eq.s32.totalorder %s20, 0
      %p62 = por %p60, %p61
      %p63 = scmp.ne.s32.totalorder %s51, %s52
      %p64 = scmp.eq.s32.totalorder %s21, 1
      %p65 = por %p63, %p64
      %p67 = scmp.ne.s32.totalorder %s52, %s66
      %p68 = scmp.eq.s32.totalorder %s21, 0
      %p69 = por %p67, %p68
      %s71 = sadd.s32 %s70, 1
      %p74 = scmp.eq.s32.totalorder %s15, 1
      %p75 = scmp.ne.s32.totalorder %s70, %s72
      %p76 = scmp.eq.s32.totalorder %s15, 0
      %p77 = por %p75, %p76
      %p78 = scmp.ne.s32.totalorder %s70, %s72
      %p79 = scmp.eq.s32.totalorder %s20, 1
      %p80 = por %p78, %p79
      %p81 = scmp.ne.s32.totalorder %s72, %s73
      %p82 = scmp.eq.s32.totalorder %s20, 0
      %p83 = por %p81, %p82
      %p84 = scmp.ne.s32.totalorder %s72, %s73
      %p85 = scmp.eq.s32.totalorder %s21, 1
      %p86 = por %p84, %p85
      %p88 = scmp.ne.s32.totalorder %s73, %s87
      %p89 = scmp.eq.s32.totalorder %s21, 0
      %p90 = por %p88, %p89
      %s92 = sadd.s32 %s91, 1
      %p95 = scmp.eq.s32.totalorder %s15, 1
      %p96 = scmp.ne.s32.totalorder %s91, %s93
      %p97 = scmp.eq.s32.totalorder %s15, 0
      %p98 = por %p96, %p97
      %p99 = scmp.ne.s32.totalorder %s91, %s93
      %p100 = scmp.eq.s32.totalorder %s20, 1
      %p101 = por %p99, %p100
      %p102 = scmp.ne.s32.totalorder %s93, %s94
      %p103 = scmp.eq.s32.totalorder %s20, 0
      %p104 = por %p102, %p103
      %p105 = scmp.ne.s32.totalorder %s93, %s94
      %p106 = scmp.eq.s32.totalorder %s21, 1
      %p107 = por %p105, %p106
      %p109 = scmp.ne.s32.totalorder %s94, %s108
      %p110 = scmp.eq.s32.totalorder %s21, 0
      %p111 = por %p109, %p110
      %s113 = sadd.s32 %s112, 1
      %p116 = scmp.eq.s32.totalorder %s15, 1
      %p117 = scmp.ne.s32.totalorder %s112, %s114
      %p118 = scmp.eq.s32.totalorder %s15, 0
      %p119 = por %p117, %p118
      %p120 = scmp.ne.s32.totalorder %s112, %s114
      %p121 = scmp.eq.s32.totalorder %s20, 1
      %p122 = por %p120, %p121
      %p123 = scmp.ne.s32.totalorder %s114, %s115
      %p124 = scmp.eq.s32.totalorder %s20, 0
      %p125 = por %p123, %p124
      %p126 = scmp.ne.s32.totalorder %s114, %s115
      %p127 = scmp.eq.s32.totalorder %s21, 1
      %p128 = por %p126, %p127
      %p130 = scmp.ne.s32.totalorder %s115, %s129
      %p131 = scmp.eq.s32.totalorder %s21, 0
      %p132 = por %p130, %p131
      %s134 = sadd.s32 %s133, 1
      %p137 = scmp.eq.s32.totalorder %s15, 1
      %p138 = scmp.ne.s32.totalorder %s133, %s135
      %p139 = scmp.eq.s32.totalorder %s15, 0
      %p140 = por %p138, %p139
      %p141 = scmp.ne.s32.totalorder %s133, %s135
      %p142 = scmp.eq.s32.totalorder %s20, 1
      %p143 = por %p141, %p142
      %p144 = scmp.ne.s32.totalorder %s135, %s136
      %p145 = scmp.eq.s32.totalorder %s20, 0
      %p146 = por %p144, %p145
      %p147 = scmp.ne.s32.totalorder %s135, %s136
      %p148 = scmp.eq.s32.totalorder %s21, 1
      %p149 = por %p147, %p148
      %p151 = scmp.ne.s32.totalorder %s136, %s150
      %p152 = scmp.eq.s32.totalorder %s21, 0
      %p153 = por %p151, %p152
      %s154 = ssub.s32 %s15, %s22
      %p155 = scmp.eq.s32.totalorder %s154, 0
      %s157 = sadd.s32 %s156, 1
      %s158 = scalar_select %p155, %s156, %s157
      %p161 = pneg %p155
      %p162 = scmp.eq.s32.totalorder %s15, 1
      %p163 = por %p161, %p162
      %p164 = scmp.ne.s32.totalorder %s156, %s159
      %p165 = scmp.eq.s32.totalorder %s15, 0
      %p166 = por %p164, %p165
      %p167 = scmp.ne.s32.totalorder %s156, %s159
      %p168 = scmp.eq.s32.totalorder %s20, 1
      %p169 = por %p167, %p168
      %p170 = scmp.ne.s32.totalorder %s159, %s160
      %p171 = scmp.eq.s32.totalorder %s20, 0
      %p172 = por %p170, %p171
      %p173 = scmp.ne.s32.totalorder %s159, %s160
      %p174 = scmp.eq.s32.totalorder %s21, 1
      %p175 = por %p173, %p174
      %p177 = scmp.ne.s32.totalorder %s160, %s176
      %p178 = scmp.eq.s32.totalorder %s21, 0
      %p179 = por %p177, %p178
      %p180 = scmp.le.s32.totalorder 1, %s15
      %p181 = scmp.lt.s32.totalorder %s15, 3
      %p182 = pnand %p180, %p181
      %p183 = pneg %p182
      // Predicated region
      $region9: #{conv_mlp_forward.1} parent=5 // pred_check
        _
      $region10: #{conv_mlp_forward.1} parent=5 // pred_check_branch
        %185 = sbr.rel (%p182) target = $region12
      $region11: #{conv_mlp_forward.1} parent=5 // pred_region
        %s186 = ssub.s32 %s15, 1
        // Predicated region
        $region13: #{conv_mlp_forward.1} parent=11 // pred_check
          %p187 = pneg %p62
        $region14: #{conv_mlp_forward.1} parent=11 // pred_check_branch
          %189 = sbr.rel (%p187) target = $region16
        $region15: #{conv_mlp_forward.1} parent=11 // pred_region
          _
        $region16: #{conv_mlp_forward.1} parent=11 // pred_fallthru
          _
        // Predicated region
        $region17: #{conv_mlp_forward.1} parent=11 // pred_check
          %p190 = pneg %p83
        $region18: #{conv_mlp_forward.1} parent=11 // pred_check_branch
          %192 = sbr.rel (%p190) target = $region20
        $region19: #{conv_mlp_forward.1} parent=11 // pred_region
          _
        $region20: #{conv_mlp_forward.1} parent=11 // pred_fallthru
          _
        // Predicated region
        $region21: #{conv_mlp_forward.1} parent=11 // pred_check
          %p193 = pneg %p104
        $region22: #{conv_mlp_forward.1} parent=11 // pred_check_branch
          %195 = sbr.rel (%p193) target = $region24
        $region23: #{conv_mlp_forward.1} parent=11 // pred_region
          _
        $region24: #{conv_mlp_forward.1} parent=11 // pred_fallthru
          _
        // Predicated region
        $region25: #{conv_mlp_forward.1} parent=11 // pred_check
          %p196 = pneg %p125
        $region26: #{conv_mlp_forward.1} parent=11 // pred_check_branch
          %198 = sbr.rel (%p196) target = $region28
        $region27: #{conv_mlp_forward.1} parent=11 // pred_region
          _
        $region28: #{conv_mlp_forward.1} parent=11 // pred_fallthru
          _
        // Predicated region
        $region29: #{conv_mlp_forward.1} parent=11 // pred_check
          %p199 = pneg %p146
        $region30: #{conv_mlp_forward.1} parent=11 // pred_check_branch
          %201 = sbr.rel (%p199) target = $region32
        $region31: #{conv_mlp_forward.1} parent=11 // pred_region
          _
        $region32: #{conv_mlp_forward.1} parent=11 // pred_fallthru
          _
      $region12: #{conv_mlp_forward.1} parent=5 // pred_fallthru
        _
      %p202 = scmp.lt.s32.totalorder %s15, 2
      // Predicated region
      $region33: #{conv_mlp_forward.1} parent=5 // pred_check
        %p203 = pneg %p202
      $region34: #{conv_mlp_forward.1} parent=5 // pred_check_branch
        %205 = sbr.rel (%p203) target = $region36
      $region35: #{conv_mlp_forward.1} parent=5 // pred_region
        // Predicated region
        $region37: #{conv_mlp_forward.1} parent=35 // pred_check
          %p206 = pneg %p35
        $region38: #{conv_mlp_forward.1} parent=35 // pred_check_branch
          %208 = sbr.rel (%p206) target = $region40
        $region39: #{conv_mlp_forward.1} parent=35 // pred_region
          %p209 = scmp.lt.s32.totalorder %s15, 1
          %s210 = scalar_select %p209, %s15, 1
          %s211 = smul.addr %s210, 28
          %s212 = smul.addr %s211, 8
          %s213 = scalar_lea.vmem %s0, %s212
        $region40: #{conv_mlp_forward.1} parent=35 // pred_fallthru
          _
      $region36: #{conv_mlp_forward.1} parent=5 // pred_fallthru
        _
      %p214 = scmp.le.s32.totalorder 1, %s15
      %p215 = scmp.lt.s32.totalorder %s15, 3
      %p216 = pnand %p214, %p215
      %p217 = pneg %p216
      // Predicated region
      $region41: #{conv_mlp_forward.1} parent=5 // pred_check
        _
      $region42: #{conv_mlp_forward.1} parent=5 // pred_check_branch
        %219 = sbr.rel (%p216) target = $region44
      $region43: #{conv_mlp_forward.1} parent=5 // pred_region
        %s220 = ssub.s32 %s15, 1
        %p221 = scmp.lt.s32.totalorder %s20, 1
        %s222 = scalar_select %p221, %s20, 1
        %s223 = smul.addr %s222, 28
        %s224 = smul.addr %s223, 8
        %s225 = scalar_lea.vmem %s0, %s224
        %p226 = pneg %p41
        %p227 = pneg %p38
        %p228 = pneg %p62
        %p229 = pneg %p59
        %p230 = pneg %p83
        %p231 = pneg %p80
        %p232 = pneg %p104
        %p233 = pneg %p101
        %p234 = pneg %p125
        %p235 = pneg %p122
        %p236 = pneg %p146
        %p237 = pneg %p143
        %p238 = pneg %p172
        %p239 = pneg %p169
        %s240 = sand.u32 %s159, 1
        %s241 = scalar_lea.sflag [#allocation3], %s240
        %s242 = sand.u32 %s159, 1
        %s243 = scalar_lea.vmem [#allocation2], %s242
        %p244 = scmp.lt.s32.totalorder %s20, 1
        %s245 = scalar_select %p244, %s20, 1
        %s246 = smul.addr %s245, 28
        %s247 = smul.addr %s246, 8
        %s248 = scalar_lea.vmem %s0, %s247
        %v249 = vld [vmem:[%s1] sm:$0xff]
        %v250 = vld [vmem:[%s248] sm:$0xff]
        %v251 = vld [vmem:[%s248 + $0x8] sm:$0xff]
        %v252 = vld [vmem:[%s248 + $0x10] sm:$0xff]
        %v253 = vld [vmem:[%s248 + $0x18] sm:$0xff]
        %v254 = vld [vmem:[%s248 + $0x20] sm:$0xff]
        %v255 = vld [vmem:[%s248 + $0x28] sm:$0xff]
        %v256 = vld [vmem:[%s248 + $0x30] sm:$0xff]
        %v257 = vld [vmem:[%s248 + $0x38] sm:$0xff]
        %v258 = vld [vmem:[%s248 + $0x40] sm:$0xff]
        %v259 = vld [vmem:[%s248 + $0x48] sm:$0xff]
        %v260 = vld [vmem:[%s248 + $0x50] sm:$0xff]
        %v261 = vld [vmem:[%s248 + $0x58] sm:$0xff]
        %v262 = vld [vmem:[%s248 + $0x60] sm:$0xff]
        %v263 = vld [vmem:[%s248 + $0x68] sm:$0xff]
        %v264 = vld [vmem:[%s248 + $0x70] sm:$0xff]
        %v265 = vld [vmem:[%s248 + $0x78] sm:$0xff]
        %v266 = vld [vmem:[%s248 + $0x80] sm:$0xff]
        %v267 = vld [vmem:[%s248 + $0x88] sm:$0xff]
        %v268 = vld [vmem:[%s248 + $0x90] sm:$0xff]
        %v269 = vld [vmem:[%s248 + $0x98] sm:$0xff]
        %v270 = vld [vmem:[%s248 + $0xa0] sm:$0xff]
        %v271 = vld [vmem:[%s248 + $0xa8] sm:$0xff]
        %v272 = vld [vmem:[%s248 + $0xb0] sm:$0xff]
        %v273 = vld [vmem:[%s248 + $0xb8] sm:$0xff]
        %v274 = vld [vmem:[%s248 + $0xc0] sm:$0xff]
        %v275 = vld [vmem:[%s248 + $0xc8] sm:$0xff]
        %v276 = vld [vmem:[%s248 + $0xd0] sm:$0xff]
        %v277 = vld [vmem:[%s248 + $0xd8] sm:$0xff]
        %vm278 = vcmask 261120
        %v280 = vsel %vm278, %v249, 0
        %282 = vmatprep.subr.mxu0 %v251
        %283 = vmatpush1.msra.mxu0 %v250
        %284 = vmatprep.subr.mxu0 %v258
        %285 = vmatpush1.msra.mxu0 %v257
        %286 = vmatprep.subr.mxu0 %v265
        %287 = vmatpush1.msra.mxu0 %v264
        %288 = vmatprep.subr.mxu0 %v272
        %289 = vmatpush1.msra.mxu0 %v271
        %290 = vmatprep.subr.mxu0 0.0
        %291 = vmatpush1.msra.mxu0 0.0
        %292 = vmatprep.subr.mxu0 0.0
        %293 = vmatpush1.msra.mxu0 0.0
        %294 = vmatprep.subr.mxu0 0.0
        %295 = vmatpush1.msra.mxu0 0.0
        %296 = vmatprep.subr.mxu0 0.0
        %297 = vmatpush1.msra.mxu0 0.0
        %298 = vmatprep.subr.mxu0 0.0
        %299 = vmatpush1.msra.mxu0 0.0
        %300 = vmatprep.subr.mxu0 0.0
        %301 = vmatpush1.msra.mxu0 0.0
        %302 = vmatprep.subr.mxu0 0.0
        %303 = vmatpush1.msra.mxu0 0.0
        %304 = vmatprep.subr.mxu0 0.0
        %305 = vmatpush1.msra.mxu0 0.0
        %306 = vmatprep.subr.mxu0 0.0
        %307 = vmatpush1.msra.mxu0 0.0
        %308 = vmatprep.subr.mxu0 0.0
        %309 = vmatpush1.msra.mxu0 0.0
        %310 = vmatprep.subr.mxu0 0.0
        %311 = vmatpush1.msra.mxu0 0.0
        %312 = vmatprep.subr.mxu0 0.0
        %313 = vmatpush1.msra.mxu0 0.0
        %314 = vmatprep.subr.mxu0 0.0
        %315 = vmatpush1.msra.mxu0 0.0
        %316 = vmatprep.subr.mxu0 0.0
        %317 = vmatpush1.msra.mxu0 0.0
        %318 = vmatprep.subr.mxu0 0.0
        %319 = vmatpush1.msra.mxu0 0.0
        %320 = vmatprep.subr.mxu0 0.0
        %321 = vmatpush1.msra.mxu0 0.0
        %322 = vmatprep.subr.mxu0 0.0
        %323 = vmatpush1.msra.mxu0 0.0
        %324 = vmatprep.subr.mxu0 0.0
        %325 = vmatpush1.msra.mxu0 0.0
        %326 = vmatprep.subr.mxu0 0.0
        %327 = vmatpush1.msra.mxu0 0.0
        %328 = vmatprep.subr.mxu0 0.0
        %329 = vmatpush1.msra.mxu0 0.0
        %330 = vmatprep.subr.mxu0 0.0
        %331 = vmatpush1.msra.mxu0 0.0
        %332 = vmatprep.subr.mxu0 0.0
        %333 = vmatpush1.msra.mxu0 0.0
        %334 = vmatprep.subr.mxu0 0.0
        %335 = vmatpush1.msra.mxu0 0.0
        %336 = vmatprep.subr.mxu0 0.0
        %337 = vmatpush1.msra.mxu0 0.0
        %338 = vmatprep.subr.mxu0 0.0
        %339 = vmatpush1.msra.mxu0 0.0
        %340 = vmatprep.subr.mxu0 0.0
        %341 = vmatpush1.msra.mxu0 0.0
        %342 = vmatprep.subr.mxu0 0.0
        %343 = vmatpush1.msra.mxu0 0.0
        %344 = vmatprep.subr.mxu0 0.0
        %345 = vmatpush1.msra.mxu0 0.0
        %346 = vmatprep.mubr.f32.mxu0 0.0
        %347 = vmatmul.mubr.f32.gmra.mrb[0].mxu0 %v280
        %v348 = vpop.f32.mrb[0].mxu0
        %v349 = vadd.f32 0.0, %v348
        %v350 = vpop.f32.mrb[0].mxu0
        %v351 = vadd.f32 0.0, %v350
        %352 = vdwg.mxu0
        %353 = vmatprep.subr.mxu0 %v253
        %354 = vmatpush1.msra.mxu0 %v252
        %355 = vmatprep.subr.mxu0 %v260
        %356 = vmatpush1.msra.mxu0 %v259
        %357 = vmatprep.subr.mxu0 %v267
        %358 = vmatpush1.msra.mxu0 %v266
        %359 = vmatprep.subr.mxu0 %v274
        %360 = vmatpush1.msra.mxu0 %v273
        %361 = vmatprep.subr.mxu0 0.0
        %362 = vmatpush1.msra.mxu0 0.0
        %363 = vmatprep.subr.mxu0 0.0
        %364 = vmatpush1.msra.mxu0 0.0
        %365 = vmatprep.subr.mxu0 0.0
        %366 = vmatpush1.msra.mxu0 0.0
        %367 = vmatprep.subr.mxu0 0.0
        %368 = vmatpush1.msra.mxu0 0.0
        %369 = vmatprep.subr.mxu0 0.0
        %370 = vmatpush1.msra.mxu0 0.0
        %371 = vmatprep.subr.mxu0 0.0
        %372 = vmatpush1.msra.mxu0 0.0
        %373 = vmatprep.subr.mxu0 0.0
        %374 = vmatpush1.msra.mxu0 0.0
        %375 = vmatprep.subr.mxu0 0.0
        %376 = vmatpush1.msra.mxu0 0.0
        %377 = vmatprep.subr.mxu0 0.0
        %378 = vmatpush1.msra.mxu0 0.0
        %379 = vmatprep.subr.mxu0 0.0
        %380 = vmatpush1.msra.mxu0 0.0
        %381 = vmatprep.subr.mxu0 0.0
        %382 = vmatpush1.msra.mxu0 0.0
        %383 = vmatprep.subr.mxu0 0.0
        %384 = vmatpush1.msra.mxu0 0.0
        %385 = vmatprep.subr.mxu0 0.0
        %386 = vmatpush1.msra.mxu0 0.0
        %387 = vmatprep.subr.mxu0 0.0
        %388 = vmatpush1.msra.mxu0 0.0
        %389 = vmatprep.subr.mxu0 0.0
        %390 = vmatpush1.msra.mxu0 0.0
        %391 = vmatprep.subr.mxu0 0.0
        %392 = vmatpush1.msra.mxu0 0.0
        %393 = vmatprep.subr.mxu0 0.0
        %394 = vmatpush1.msra.mxu0 0.0
        %395 = vmatprep.subr.mxu0 0.0
        %396 = vmatpush1.msra.mxu0 0.0
        %397 = vmatprep.subr.mxu0 0.0
        %398 = vmatpush1.msra.mxu0 0.0
        %399 = vmatprep.subr.mxu0 0.0
        %400 = vmatpush1.msra.mxu0 0.0
        %401 = vmatprep.subr.mxu0 0.0
        %402 = vmatpush1.msra.mxu0 0.0
        %403 = vmatprep.subr.mxu0 0.0
        %404 = vmatpush1.msra.mxu0 0.0
        %405 = vmatprep.subr.mxu0 0.0
        %406 = vmatpush1.msra.mxu0 0.0
        %407 = vmatprep.subr.mxu0 0.0
        %408 = vmatpush1.msra.mxu0 0.0
        %409 = vmatprep.subr.mxu0 0.0
        %410 = vmatpush1.msra.mxu0 0.0
        %411 = vmatprep.subr.mxu0 0.0
        %412 = vmatpush1.msra.mxu0 0.0
        %413 = vmatprep.subr.mxu0 0.0
        %414 = vmatpush1.msra.mxu0 0.0
        %415 = vmatprep.subr.mxu0 0.0
        %416 = vmatpush1.msra.mxu0 0.0
        %417 = vmatprep.mubr.f32.mxu0 0.0
        %418 = vmatmul.mubr.f32.gmra.mrb[0].mxu0 %v280
        %v419 = vpop.f32.mrb[0].mxu0
        %v420 = vadd.f32 0.0, %v419
        %v421 = vpop.f32.mrb[0].mxu0
        %v422 = vadd.f32 0.0, %v421
        %423 = vdwg.mxu0
        %424 = vmatprep.subr.mxu0 %v255
        %425 = vmatpush1.msra.mxu0 %v254
        %426 = vmatprep.subr.mxu0 %v262
        %427 = vmatpush1.msra.mxu0 %v261
        %428 = vmatprep.subr.mxu0 %v269
        %429 = vmatpush1.msra.mxu0 %v268
        %430 = vmatprep.subr.mxu0 %v276
        %431 = vmatpush1.msra.mxu0 %v275
        %432 = vmatprep.subr.mxu0 0.0
        %433 = vmatpush1.msra.mxu0 0.0
        %434 = vmatprep.subr.mxu0 0.0
        %435 = vmatpush1.msra.mxu0 0.0
        %436 = vmatprep.subr.mxu0 0.0
        %437 = vmatpush1.msra.mxu0 0.0
        %438 = vmatprep.subr.mxu0 0.0
        %439 = vmatpush1.msra.mxu0 0.0
        %440 = vmatprep.subr.mxu0 0.0
        %441 = vmatpush1.msra.mxu0 0.0
        %442 = vmatprep.subr.mxu0 0.0
        %443 = vmatpush1.msra.mxu0 0.0
        %444 = vmatprep.subr.mxu0 0.0
        %445 = vmatpush1.msra.mxu0 0.0
        %446 = vmatprep.subr.mxu0 0.0
        %447 = vmatpush1.msra.mxu0 0.0
        %448 = vmatprep.subr.mxu0 0.0
        %449 = vmatpush1.msra.mxu0 0.0
        %450 = vmatprep.subr.mxu0 0.0
        %451 = vmatpush1.msra.mxu0 0.0
        %452 = vmatprep.subr.mxu0 0.0
        %453 = vmatpush1.msra.mxu0 0.0
        %454 = vmatprep.subr.mxu0 0.0
        %455 = vmatpush1.msra.mxu0 0.0
        %456 = vmatprep.subr.mxu0 0.0
        %457 = vmatpush1.msra.mxu0 0.0
        %458 = vmatprep.subr.mxu0 0.0
        %459 = vmatpush1.msra.mxu0 0.0
        %460 = vmatprep.subr.mxu0 0.0
        %461 = vmatpush1.msra.mxu0 0.0
        %462 = vmatprep.subr.mxu0 0.0
        %463 = vmatpush1.msra.mxu0 0.0
        %464 = vmatprep.subr.mxu0 0.0
        %465 = vmatpush1.msra.mxu0 0.0
        %466 = vmatprep.subr.mxu0 0.0
        %467 = vmatpush1.msra.mxu0 0.0
        %468 = vmatprep.subr.mxu0 0.0
        %469 = vmatpush1.msra.mxu0 0.0
        %470 = vmatprep.subr.mxu0 0.0
        %471 = vmatpush1.msra.mxu0 0.0
        %472 = vmatprep.subr.mxu0 0.0
        %473 = vmatpush1.msra.mxu0 0.0
        %474 = vmatprep.subr.mxu0 0.0
        %475 = vmatpush1.msra.mxu0 0.0
        %476 = vmatprep.subr.mxu0 0.0
        %477 = vmatpush1.msra.mxu0 0.0
        %478 = vmatprep.subr.mxu0 0.0
        %479 = vmatpush1.msra.mxu0 0.0
        %480 = vmatprep.subr.mxu0 0.0
        %481 = vmatpush1.msra.mxu0 0.0
        %482 = vmatprep.subr.mxu0 0.0
        %483 = vmatpush1.msra.mxu0 0.0
        %484 = vmatprep.subr.mxu0 0.0
        %485 = vmatpush1.msra.mxu0 0.0
        %486 = vmatprep.subr.mxu0 0.0
        %487 = vmatpush1.msra.mxu0 0.0
        %488 = vmatprep.mubr.f32.mxu0 0.0
        %489 = vmatmul.mubr.f32.gmra.mrb[0].mxu0 %v280
        %v490 = vpop.f32.mrb[0].mxu0
        %v491 = vadd.f32 0.0, %v490
        %v492 = vpop.f32.mrb[0].mxu0
        %v493 = vadd.f32 0.0, %v492
        %494 = vdwg.mxu0
        %495 = vmatprep.subr.mxu0 0.0
        %496 = vmatpush1.msra.mxu0 %v256
        %497 = vmatprep.subr.mxu0 0.0
        %498 = vmatpush1.msra.mxu0 %v263
        %499 = vmatprep.subr.mxu0 0.0
        %500 = vmatpush1.msra.mxu0 %v270
        %501 = vmatprep.subr.mxu0 0.0
        %502 = vmatpush1.msra.mxu0 %v277
        %503 = vmatprep.subr.mxu0 0.0
        %504 = vmatpush1.msra.mxu0 0.0
        %505 = vmatprep.subr.mxu0 0.0
        %506 = vmatpush1.msra.mxu0 0.0
        %507 = vmatprep.subr.mxu0 0.0
        %508 = vmatpush1.msra.mxu0 0.0
        %509 = vmatprep.subr.mxu0 0.0
        %510 = vmatpush1.msra.mxu0 0.0
        %511 = vmatprep.subr.mxu0 0.0
        %512 = vmatpush1.msra.mxu0 0.0
        %513 = vmatprep.subr.mxu0 0.0
        %514 = vmatpush1.msra.mxu0 0.0
        %515 = vmatprep.subr.mxu0 0.0
        %516 = vmatpush1.msra.mxu0 0.0
        %517 = vmatprep.subr.mxu0 0.0
        %518 = vmatpush1.msra.mxu0 0.0
        %519 = vmatprep.subr.mxu0 0.0
        %520 = vmatpush1.msra.mxu0 0.0
        %521 = vmatprep.subr.mxu0 0.0
        %522 = vmatpush1.msra.mxu0 0.0
        %523 = vmatprep.subr.mxu0 0.0
        %524 = vmatpush1.msra.mxu0 0.0
        %525 = vmatprep.subr.mxu0 0.0
        %526 = vmatpush1.msra.mxu0 0.0
        %527 = vmatprep.subr.mxu0 0.0
        %528 = vmatpush1.msra.mxu0 0.0
        %529 = vmatprep.subr.mxu0 0.0
        %530 = vmatpush1.msra.mxu0 0.0
        %531 = vmatprep.subr.mxu0 0.0
        %532 = vmatpush1.msra.mxu0 0.0
        %533 = vmatprep.subr.mxu0 0.0
        %534 = vmatpush1.msra.mxu0 0.0
        %535 = vmatprep.subr.mxu0 0.0
        %536 = vmatpush1.msra.mxu0 0.0
        %537 = vmatprep.subr.mxu0 0.0
        %538 = vmatpush1.msra.mxu0 0.0
        %539 = vmatprep.subr.mxu0 0.0
        %540 = vmatpush1.msra.mxu0 0.0
        %541 = vmatprep.subr.mxu0 0.0
        %542 = vmatpush1.msra.mxu0 0.0
        %543 = vmatprep.subr.mxu0 0.0
        %544 = vmatpush1.msra.mxu0 0.0
        %545 = vmatprep.subr.mxu0 0.0
        %546 = vmatpush1.msra.mxu0 0.0
        %547 = vmatprep.subr.mxu0 0.0
        %548 = vmatpush1.msra.mxu0 0.0
        %549 = vmatprep.subr.mxu0 0.0
        %550 = vmatpush1.msra.mxu0 0.0
        %551 = vmatprep.subr.mxu0 0.0
        %552 = vmatpush1.msra.mxu0 0.0
        %553 = vmatprep.subr.mxu0 0.0
        %554 = vmatpush1.msra.mxu0 0.0
        %555 = vmatprep.subr.mxu0 0.0
        %556 = vmatpush1.msra.mxu0 0.0
        %557 = vmatprep.subr.mxu0 0.0
        %558 = vmatpush1.msra.mxu0 0.0
        %559 = vmatprep.mubr.f32.mxu0 0.0
        %560 = vmatmul.mubr.f32.gmra.mrb[0].mxu0 %v280
        %v561 = vpop.f32.mrb[0].mxu0
        %v562 = vadd.f32 0.0, %v561
        %v563 = vpop.f32.mrb[0].mxu0
        %564 = vdwg.mxu0
        %v565 = vmax.f32 %v349, 0.0
        %v566 = vmax.f32 %v351, 0.0
        %v567 = vmax.f32 %v420, 0.0
        %v568 = vmax.f32 %v422, 0.0
        %v569 = vmax.f32 %v491, 0.0
        %v570 = vmax.f32 %v493, 0.0
        %v571 = vmax.f32 %v562, 0.0
        %v572 = vld [vmem:[%s3] sm:$0x1]
        %v573 = vld [vmem:[%s2] sm:$0xff]
        %v574 = vld [vmem:[%s2 + $0x8] sm:$0xff]
        %v575 = vld [vmem:[%s2 + $0x10] sm:$0xff]
        %v576 = vld [vmem:[%s2 + $0x18] sm:$0xff]
        %v577 = vld [vmem:[%s2 + $0x20] sm:$0xff]
        %v578 = vld [vmem:[%s2 + $0x28] sm:$0xff]
        %v579 = vld [vmem:[%s2 + $0x30] sm:$0xff]
        %v580 = vld [vmem:[%s2 + $0x38] sm:$0xff]
        %v581 = vld [vmem:[%s2 + $0x40] sm:$0xff]
        %v582 = vld [vmem:[%s2 + $0x48] sm:$0xff]
        %v583 = vld [vmem:[%s2 + $0x50] sm:$0xff]
        %v584 = vld [vmem:[%s2 + $0x58] sm:$0xff]
        %v585 = vld [vmem:[%s2 + $0x60] sm:$0xff]
        %v586 = vld [vmem:[%s2 + $0x68] sm:$0xff]
        %v587 = vld [vmem:[%s2 + $0x70] sm:$0xff]
        %v588 = vld [vmem:[%s2 + $0x78] sm:$0xff]
        %v589 = vld [vmem:[%s2 + $0x80] sm:$0xff]
        %v590 = vld [vmem:[%s2 + $0x88] sm:$0xff]
        %v591 = vld [vmem:[%s2 + $0x90] sm:$0xff]
        %v592 = vld [vmem:[%s2 + $0x98] sm:$0xff]
        %v593 = vld [vmem:[%s2 + $0xa0] sm:$0xff]
        %v594 = vld [vmem:[%s2 + $0xa8] sm:$0xff]
        %v595 = vld [vmem:[%s2 + $0xb0] sm:$0xff]
        %v596 = vld [vmem:[%s2 + $0xb8] sm:$0xff]
        %v597 = vld [vmem:[%s2 + $0xc0] sm:$0xff]
        %v598 = vld [vmem:[%s2 + $0xc8] sm:$0xff]
        %v599 = vld [vmem:[%s2 + $0xd0] sm:$0xff]
        %v600 = vld [vmem:[%s2 + $0xd8] sm:$0xff]
        %v601 = vld [vmem:[%s2 + $0xe0] sm:$0xff]
        %v602 = vld [vmem:[%s2 + $0xe8] sm:$0xff]
        %v603 = vld [vmem:[%s2 + $0xf0] sm:$0xff]
        %v604 = vld [vmem:[%s2 + $0xf8] sm:$0xff]
        %v605 = vld [vmem:[%s2 + $0x100] sm:$0xff]
        %v606 = vld [vmem:[%s2 + $0x108] sm:$0xff]
        %v607 = vld [vmem:[%s2 + $0x110] sm:$0xff]
        %v608 = vld [vmem:[%s2 + $0x118] sm:$0xff]
        %v609 = vld [vmem:[%s2 + $0x120] sm:$0xff]
        %v610 = vld [vmem:[%s2 + $0x128] sm:$0xff]
        %v611 = vld [vmem:[%s2 + $0x130] sm:$0xff]
        %v612 = vld [vmem:[%s2 + $0x138] sm:$0xff]
        %v613 = vld [vmem:[%s2 + $0x140] sm:$0xff]
        %v614 = vld [vmem:[%s2 + $0x148] sm:$0xff]
        %v615 = vld [vmem:[%s2 + $0x150] sm:$0xff]
        %v616 = vld [vmem:[%s2 + $0x158] sm:$0xff]
        %v617 = vld [vmem:[%s2 + $0x160] sm:$0xff]
        %v618 = vld [vmem:[%s2 + $0x168] sm:$0xff]
        %v619 = vld [vmem:[%s2 + $0x170] sm:$0xff]
        %v620 = vld [vmem:[%s2 + $0x178] sm:$0xff]
        %v621 = vld [vmem:[%s2 + $0x180] sm:$0xff]
        %v622 = vld [vmem:[%s2 + $0x188] sm:$0xff]
        %v623 = vld [vmem:[%s2 + $0x190] sm:$0xff]
        %v624 = vld [vmem:[%s2 + $0x198] sm:$0xff]
        %v625 = vld [vmem:[%s2 + $0x1a0] sm:$0xff]
        %v626 = vld [vmem:[%s2 + $0x1a8] sm:$0xff]
        %v627 = vld [vmem:[%s2 + $0x1b0] sm:$0xff]
        %v628 = vld [vmem:[%s2 + $0x1b8] sm:$0xff]
        %v629 = vld [vmem:[%s2 + $0x1c0] sm:$0xff]
        %v630 = vld [vmem:[%s2 + $0x1c8] sm:$0xff]
        %v631 = vld [vmem:[%s2 + $0x1d0] sm:$0xff]
        %v632 = vld [vmem:[%s2 + $0x1d8] sm:$0xff]
        %v633 = vld [vmem:[%s2 + $0x1e0] sm:$0xff]
        %v634 = vld [vmem:[%s2 + $0x1e8] sm:$0xff]
        %v635 = vld [vmem:[%s2 + $0x1f0] sm:$0xff]
        %v636 = vld [vmem:[%s2 + $0x1f8] sm:$0xff]
        %v637 = vld [vmem:[%s2 + $0x200] sm:$0xff]
        %v638 = vld [vmem:[%s2 + $0x208] sm:$0xff]
        %v639 = vld [vmem:[%s2 + $0x210] sm:$0xff]
        %v640 = vld [vmem:[%s2 + $0x218] sm:$0xff]
        %v641 = vld [vmem:[%s2 + $0x220] sm:$0xff]
        %v642 = vld [vmem:[%s2 + $0x228] sm:$0xff]
        %v643 = vld [vmem:[%s2 + $0x230] sm:$0xff]
        %v644 = vld [vmem:[%s2 + $0x238] sm:$0xff]
        %v645 = vld [vmem:[%s2 + $0x240] sm:$0xff]
        %v646 = vld [vmem:[%s2 + $0x248] sm:$0xff]
        %v647 = vld [vmem:[%s2 + $0x250] sm:$0xff]
        %v648 = vld [vmem:[%s2 + $0x258] sm:$0xff]
        %v649 = vld [vmem:[%s2 + $0x260] sm:$0xff]
        %v650 = vld [vmem:[%s2 + $0x268] sm:$0xff]
        %v651 = vld [vmem:[%s2 + $0x270] sm:$0xff]
        %v652 = vld [vmem:[%s2 + $0x278] sm:$0xff]
        %v653 = vld [vmem:[%s2 + $0x280] sm:$0xff]
        %v654 = vld [vmem:[%s2 + $0x288] sm:$0xff]
        %v655 = vld [vmem:[%s2 + $0x290] sm:$0xff]
        %v656 = vld [vmem:[%s2 + $0x298] sm:$0xff]
        %v657 = vld [vmem:[%s2 + $0x2a0] sm:$0xff]
        %v658 = vld [vmem:[%s2 + $0x2a8] sm:$0xff]
        %v659 = vld [vmem:[%s2 + $0x2b0] sm:$0xff]
        %v660 = vld [vmem:[%s2 + $0x2b8] sm:$0xff]
        %v661 = vld [vmem:[%s2 + $0x2c0] sm:$0xff]
        %v662 = vld [vmem:[%s2 + $0x2c8] sm:$0xff]
        %v663 = vld [vmem:[%s2 + $0x2d0] sm:$0xff]
        %v664 = vld [vmem:[%s2 + $0x2d8] sm:$0xff]
        %v665 = vld [vmem:[%s2 + $0x2e0] sm:$0xff]
        %v666 = vld [vmem:[%s2 + $0x2e8] sm:$0xff]
        %v667 = vld [vmem:[%s2 + $0x2f0] sm:$0xff]
        %v668 = vld [vmem:[%s2 + $0x2f8] sm:$0xff]
        %v669 = vld [vmem:[%s2 + $0x300] sm:$0xff]
        %v670 = vld [vmem:[%s2 + $0x308] sm:$0xff]
        %vm671 = vcmask 130048
        %v673 = vsel %vm671, %v571, 0
        %675 = vmatprep.subr.mxu0 0.0
        %676 = vmatpush1.msra.mxu0 %v573
        %677 = vmatprep.subr.mxu0 0.0
        %678 = vmatpush1.msra.mxu0 %v574
        %679 = vmatprep.subr.mxu0 0.0
        %680 = vmatpush1.msra.mxu0 %v575
        %681 = vmatprep.subr.mxu0 0.0
        %682 = vmatpush1.msra.mxu0 %v576
        %683 = vmatprep.subr.mxu0 0.0
        %684 = vmatpush1.msra.mxu0 %v577
        %685 = vmatprep.subr.mxu0 0.0
        %686 = vmatpush1.msra.mxu0 %v578
        %687 = vmatprep.subr.mxu0 0.0
        %688 = vmatpush1.msra.mxu0 %v579
        %689 = vmatprep.subr.mxu0 0.0
        %690 = vmatpush1.msra.mxu0 %v580
        %691 = vmatprep.subr.mxu0 0.0
        %692 = vmatpush1.msra.mxu0 %v581
        %693 = vmatprep.subr.mxu0 0.0
        %694 = vmatpush1.msra.mxu0 %v582
        %695 = vmatprep.subr.mxu0 0.0
        %696 = vmatpush1.msra.mxu0 %v583
        %697 = vmatprep.subr.mxu0 0.0
        %698 = vmatpush1.msra.mxu0 %v584
        %699 = vmatprep.subr.mxu0 0.0
        %700 = vmatpush1.msra.mxu0 %v585
        %701 = vmatprep.subr.mxu0 0.0
        %702 = vmatpush1.msra.mxu0 %v586
        %703 = vmatprep.subr.mxu0 0.0
        %704 = vmatpush1.msra.mxu0 %v587
        %705 = vmatprep.subr.mxu0 0.0
        %706 = vmatpush1.msra.mxu0 %v588
        %707 = vmatprep.subr.mxu0 0.0
        %708 = vmatpush1.msra.mxu0 %v589
        %709 = vmatprep.subr.mxu0 0.0
        %710 = vmatpush1.msra.mxu0 %v590
        %711 = vmatprep.subr.mxu0 0.0
        %712 = vmatpush1.msra.mxu0 %v591
        %713 = vmatprep.subr.mxu0 0.0
        %714 = vmatpush1.msra.mxu0 %v592
        %715 = vmatprep.subr.mxu0 0.0
        %716 = vmatpush1.msra.mxu0 %v593
        %717 = vmatprep.subr.mxu0 0.0
        %718 = vmatpush1.msra.mxu0 %v594
        %719 = vmatprep.subr.mxu0 0.0
        %720 = vmatpush1.msra.mxu0 %v595
        %721 = vmatprep.subr.mxu0 0.0
        %722 = vmatpush1.msra.mxu0 %v596
        %723 = vmatprep.subr.mxu0 0.0
        %724 = vmatpush1.msra.mxu0 %v597
        %725 = vmatprep.subr.mxu0 0.0
        %726 = vmatpush1.msra.mxu0 %v598
        %727 = vmatprep.subr.mxu0 0.0
        %728 = vmatpush1.msra.mxu0 %v599
        %729 = vmatprep.subr.mxu0 0.0
        %730 = vmatpush1.msra.mxu0 %v600
        %731 = vmatprep.subr.mxu0 0.0
        %732 = vmatpush1.msra.mxu0 %v601
        %733 = vmatprep.subr.mxu0 0.0
        %734 = vmatpush1.msra.mxu0 %v602
        %735 = vmatprep.subr.mxu0 0.0
        %736 = vmatpush1.msra.mxu0 %v603
        %737 = vmatprep.subr.mxu0 0.0
        %738 = vmatpush1.msra.mxu0 %v604
        %739 = vmatprep.mubr.f32.mxu0 %v566
        %740 = vmatmul.mubr.f32.gmra.mrb[0].mxu0 %v565
        %v741 = vpop.f32.mrb[0].mxu0
        %v742 = vadd.f32 0.0, %v741
        %v743 = vpop.f32.mrb[0].mxu0
        %744 = vdwg.mxu0
        %745 = vmatprep.subr.mxu0 0.0
        %746 = vmatpush1.msra.mxu0 %v605
        %747 = vmatprep.subr.mxu0 0.0
        %748 = vmatpush1.msra.mxu0 %v606
        %749 = vmatprep.subr.mxu0 0.0
        %750 = vmatpush1.msra.mxu0 %v607
        %751 = vmatprep.subr.mxu0 0.0
        %752 = vmatpush1.msra.mxu0 %v608
        %753 = vmatprep.subr.mxu0 0.0
        %754 = vmatpush1.msra.mxu0 %v609
        %755 = vmatprep.subr.mxu0 0.0
        %756 = vmatpush1.msra.mxu0 %v610
        %757 = vmatprep.subr.mxu0 0.0
        %758 = vmatpush1.msra.mxu0 %v611
        %759 = vmatprep.subr.mxu0 0.0
        %760 = vmatpush1.msra.mxu0 %v612
        %761 = vmatprep.subr.mxu0 0.0
        %762 = vmatpush1.msra.mxu0 %v613
        %763 = vmatprep.subr.mxu0 0.0
        %764 = vmatpush1.msra.mxu0 %v614
        %765 = vmatprep.subr.mxu0 0.0
        %766 = vmatpush1.msra.mxu0 %v615
        %767 = vmatprep.subr.mxu0 0.0
        %768 = vmatpush1.msra.mxu0 %v616
        %769 = vmatprep.subr.mxu0 0.0
        %770 = vmatpush1.msra.mxu0 %v617
        %771 = vmatprep.subr.mxu0 0.0
        %772 = vmatpush1.msra.mxu0 %v618
        %773 = vmatprep.subr.mxu0 0.0
        %774 = vmatpush1.msra.mxu0 %v619
        %775 = vmatprep.subr.mxu0 0.0
        %776 = vmatpush1.msra.mxu0 %v620
        %777 = vmatprep.subr.mxu0 0.0
        %778 = vmatpush1.msra.mxu0 %v621
        %779 = vmatprep.subr.mxu0 0.0
        %780 = vmatpush1.msra.mxu0 %v622
        %781 = vmatprep.subr.mxu0 0.0
        %782 = vmatpush1.msra.mxu0 %v623
        %783 = vmatprep.subr.mxu0 0.0
        %784 = vmatpush1.msra.mxu0 %v624
        %785 = vmatprep.subr.mxu0 0.0
        %786 = vmatpush1.msra.mxu0 %v625
        %787 = vmatprep.subr.mxu0 0.0
        %788 = vmatpush1.msra.mxu0 %v626
        %789 = vmatprep.subr.mxu0 0.0
        %790 = vmatpush1.msra.mxu0 %v627
        %791 = vmatprep.subr.mxu0 0.0
        %792 = vmatpush1.msra.mxu0 %v628
        %793 = vmatprep.subr.mxu0 0.0
        %794 = vmatpush1.msra.mxu0 %v629
        %795 = vmatprep.subr.mxu0 0.0
        %796 = vmatpush1.msra.mxu0 %v630
        %797 = vmatprep.subr.mxu0 0.0
        %798 = vmatpush1.msra.mxu0 %v631
        %799 = vmatprep.subr.mxu0 0.0
        %800 = vmatpush1.msra.mxu0 %v632
        %801 = vmatprep.subr.mxu0 0.0
        %802 = vmatpush1.msra.mxu0 %v633
        %803 = vmatprep.subr.mxu0 0.0
        %804 = vmatpush1.msra.mxu0 %v634
        %805 = vmatprep.subr.mxu0 0.0
        %806 = vmatpush1.msra.mxu0 %v635
        %807 = vmatprep.subr.mxu0 0.0
        %808 = vmatpush1.msra.mxu0 %v636
        %809 = vmatprep.mubr.f32.mxu0 %v568
        %810 = vmatmul.mubr.f32.gmra.mrb[0].mxu0 %v567
        %v811 = vpop.f32.mrb[0].mxu0
        %v812 = vadd.f32 %v742, %v811
        %v813 = vpop.f32.mrb[0].mxu0
        %814 = vdwg.mxu0
        %815 = vmatprep.subr.mxu0 0.0
        %816 = vmatpush1.msra.mxu0 %v637
        %817 = vmatprep.subr.mxu0 0.0
        %818 = vmatpush1.msra.mxu0 %v638
        %819 = vmatprep.subr.mxu0 0.0
        %820 = vmatpush1.msra.mxu0 %v639
        %821 = vmatprep.subr.mxu0 0.0
        %822 = vmatpush1.msra.mxu0 %v640
        %823 = vmatprep.subr.mxu0 0.0
        %824 = vmatpush1.msra.mxu0 %v641
        %825 = vmatprep.subr.mxu0 0.0
        %826 = vmatpush1.msra.mxu0 %v642
        %827 = vmatprep.subr.mxu0 0.0
        %828 = vmatpush1.msra.mxu0 %v643
        %829 = vmatprep.subr.mxu0 0.0
        %830 = vmatpush1.msra.mxu0 %v644
        %831 = vmatprep.subr.mxu0 0.0
        %832 = vmatpush1.msra.mxu0 %v645
        %833 = vmatprep.subr.mxu0 0.0
        %834 = vmatpush1.msra.mxu0 %v646
        %835 = vmatprep.subr.mxu0 0.0
        %836 = vmatpush1.msra.mxu0 %v647
        %837 = vmatprep.subr.mxu0 0.0
        %838 = vmatpush1.msra.mxu0 %v648
        %839 = vmatprep.subr.mxu0 0.0
        %840 = vmatpush1.msra.mxu0 %v649
        %841 = vmatprep.subr.mxu0 0.0
        %842 = vmatpush1.msra.mxu0 %v650
        %843 = vmatprep.subr.mxu0 0.0
        %844 = vmatpush1.msra.mxu0 %v651
        %845 = vmatprep.subr.mxu0 0.0
        %846 = vmatpush1.msra.mxu0 %v652
        %847 = vmatprep.subr.mxu0 0.0
        %848 = vmatpush1.msra.mxu0 %v653
        %849 = vmatprep.subr.mxu0 0.0
        %850 = vmatpush1.msra.mxu0 %v654
        %851 = vmatprep.subr.mxu0 0.0
        %852 = vmatpush1.msra.mxu0 %v655
        %853 = vmatprep.subr.mxu0 0.0
        %854 = vmatpush1.msra.mxu0 %v656
        %855 = vmatprep.subr.mxu0 0.0
        %856 = vmatpush1.msra.mxu0 %v657
        %857 = vmatprep.subr.mxu0 0.0
        %858 = vmatpush1.msra.mxu0 %v658
        %859 = vmatprep.subr.mxu0 0.0
        %860 = vmatpush1.msra.mxu0 %v659
        %861 = vmatprep.subr.mxu0 0.0
        %862 = vmatpush1.msra.mxu0 %v660
        %863 = vmatprep.subr.mxu0 0.0
        %864 = vmatpush1.msra.mxu0 %v661
        %865 = vmatprep.subr.mxu0 0.0
        %866 = vmatpush1.msra.mxu0 %v662
        %867 = vmatprep.subr.mxu0 0.0
        %868 = vmatpush1.msra.mxu0 %v663
        %869 = vmatprep.subr.mxu0 0.0
        %870 = vmatpush1.msra.mxu0 %v664
        %871 = vmatprep.subr.mxu0 0.0
        %872 = vmatpush1.msra.mxu0 %v665
        %873 = vmatprep.subr.mxu0 0.0
        %874 = vmatpush1.msra.mxu0 %v666
        %875 = vmatprep.subr.mxu0 0.0
        %876 = vmatpush1.msra.mxu0 %v667
        %877 = vmatprep.subr.mxu0 0.0
        %878 = vmatpush1.msra.mxu0 %v668
        %879 = vmatprep.mubr.f32.mxu0 %v570
        %880 = vmatmul.mubr.f32.gmra.mrb[0].mxu0 %v569
        %v881 = vpop.f32.mrb[0].mxu0
        %v882 = vadd.f32 %v812, %v881
        %v883 = vpop.f32.mrb[0].mxu0
        %884 = vdwg.mxu0
        %885 = vmatprep.subr.mxu0 0.0
        %886 = vmatpush1.msra.mxu0 %v669
        %887 = vmatprep.subr.mxu0 0.0
        %888 = vmatpush1.msra.mxu0 %v670
        %889 = vmatprep.subr.mxu0 0.0
        %890 = vmatpush1.msra.mxu0 0.0
        %891 = vmatprep.subr.mxu0 0.0
        %892 = vmatpush1.msra.mxu0 0.0
        %893 = vmatprep.subr.mxu0 0.0
        %894 = vmatpush1.msra.mxu0 0.0
        %895 = vmatprep.subr.mxu0 0.0
        %896 = vmatpush1.msra.mxu0 0.0
        %897 = vmatprep.subr.mxu0 0.0
        %898 = vmatpush1.msra.mxu0 0.0
        %899 = vmatprep.subr.mxu0 0.0
        %900 = vmatpush1.msra.mxu0 0.0
        %901 = vmatprep.subr.mxu0 0.0
        %902 = vmatpush1.msra.mxu0 0.0
        %903 = vmatprep.subr.mxu0 0.0
        %904 = vmatpush1.msra.mxu0 0.0
        %905 = vmatprep.subr.mxu0 0.0
        %906 = vmatpush1.msra.mxu0 0.0
        %907 = vmatprep.subr.mxu0 0.0
        %908 = vmatpush1.msra.mxu0 0.0
        %909 = vmatprep.subr.mxu0 0.0
        %910 = vmatpush1.msra.mxu0 0.0
        %911 = vmatprep.subr.mxu0 0.0
        %912 = vmatpush1.msra.mxu0 0.0
        %913 = vmatprep.subr.mxu0 0.0
        %914 = vmatpush1.msra.mxu0 0.0
        %915 = vmatprep.subr.mxu0 0.0
        %916 = vmatpush1.msra.mxu0 0.0
        %917 = vmatprep.subr.mxu0 0.0
        %918 = vmatpush1.msra.mxu0 0.0
        %919 = vmatprep.subr.mxu0 0.0
        %920 = vmatpush1.msra.mxu0 0.0
        %921 = vmatprep.subr.mxu0 0.0
        %922 = vmatpush1.msra.mxu0 0.0
        %923 = vmatprep.subr.mxu0 0.0
        %924 = vmatpush1.msra.mxu0 0.0
        %925 = vmatprep.subr.mxu0 0.0
        %926 = vmatpush1.msra.mxu0 0.0
        %927 = vmatprep.subr.mxu0 0.0
        %928 = vmatpush1.msra.mxu0 0.0
        %929 = vmatprep.subr.mxu0 0.0
        %930 = vmatpush1.msra.mxu0 0.0
        %931 = vmatprep.subr.mxu0 0.0
        %932 = vmatpush1.msra.mxu0 0.0
        %933 = vmatprep.subr.mxu0 0.0
        %934 = vmatpush1.msra.mxu0 0.0
        %935 = vmatprep.subr.mxu0 0.0
        %936 = vmatpush1.msra.mxu0 0.0
        %937 = vmatprep.subr.mxu0 0.0
        %938 = vmatpush1.msra.mxu0 0.0
        %939 = vmatprep.subr.mxu0 0.0
        %940 = vmatpush1.msra.mxu0 0.0
        %941 = vmatprep.subr.mxu0 0.0
        %942 = vmatpush1.msra.mxu0 0.0
        %943 = vmatprep.subr.mxu0 0.0
        %944 = vmatpush1.msra.mxu0 0.0
        %945 = vmatprep.subr.mxu0 0.0
        %946 = vmatpush1.msra.mxu0 0.0
        %947 = vmatprep.subr.mxu0 0.0
        %948 = vmatpush1.msra.mxu0 0.0
        %949 = vmatprep.mubr.f32.mxu0 0.0
        %950 = vmatmul.mubr.f32.gmra.mrb[0].mxu0 %v673
        %v951 = vpop.f32.mrb[0].mxu0
        %v952 = vadd.f32 %v882, %v951
        %v953 = vpop.f32.mrb[0].mxu0
        %954 = vdwg.mxu0
        %v955 = vadd.f32 %v572, %v952
        %s956 = scalar_lea.vmem %s2, 784
        %v957 = vld [vmem:[%s956] sm:$0xff]
        %v958 = vld [vmem:[%s956 + $0x8] sm:$0xff]
        %v959 = vld [vmem:[%s956 + $0x10] sm:$0xff]
        %v960 = vld [vmem:[%s956 + $0x18] sm:$0xff]
        %v961 = vld [vmem:[%s956 + $0x20] sm:$0xff]
        %v962 = vld [vmem:[%s956 + $0x28] sm:$0xff]
        %v963 = vld [vmem:[%s956 + $0x30] sm:$0xff]
        %v964 = vld [vmem:[%s956 + $0x38] sm:$0xff]
        %v965 = vld [vmem:[%s956 + $0x40] sm:$0xff]
        %v966 = vld [vmem:[%s956 + $0x48] sm:$0xff]
        %v967 = vld [vmem:[%s956 + $0x50] sm:$0xff]
        %v968 = vld [vmem:[%s956 + $0x58] sm:$0xff]
        %v969 = vld [vmem:[%s956 + $0x60] sm:$0xff]
        %v970 = vld [vmem:[%s956 + $0x68] sm:$0xff]
        %v971 = vld [vmem:[%s956 + $0x70] sm:$0xff]
        %v972 = vld [vmem:[%s956 + $0x78] sm:$0xff]
        %v973 = vld [vmem:[%s956 + $0x80] sm:$0xff]
        %v974 = vld [vmem:[%s956 + $0x88] sm:$0xff]
        %v975 = vld [vmem:[%s956 + $0x90] sm:$0xff]
        %v976 = vld [vmem:[%s956 + $0x98] sm:$0xff]
        %v977 = vld [vmem:[%s956 + $0xa0] sm:$0xff]
        %v978 = vld [vmem:[%s956 + $0xa8] sm:$0xff]
        %v979 = vld [vmem:[%s956 + $0xb0] sm:$0xff]
        %v980 = vld [vmem:[%s956 + $0xb8] sm:$0xff]
        %v981 = vld [vmem:[%s956 + $0xc0] sm:$0xff]
        %v982 = vld [vmem:[%s956 + $0xc8] sm:$0xff]
        %v983 = vld [vmem:[%s956 + $0xd0] sm:$0xff]
        %v984 = vld [vmem:[%s956 + $0xd8] sm:$0xff]
        %v985 = vld [vmem:[%s956 + $0xe0] sm:$0xff]
        %v986 = vld [vmem:[%s956 + $0xe8] sm:$0xff]
        %v987 = vld [vmem:[%s956 + $0xf0] sm:$0xff]
        %v988 = vld [vmem:[%s956 + $0xf8] sm:$0xff]
        %v989 = vld [vmem:[%s956 + $0x100] sm:$0xff]
        %v990 = vld [vmem:[%s956 + $0x108] sm:$0xff]
        %v991 = vld [vmem:[%s956 + $0x110] sm:$0xff]
        %v992 = vld [vmem:[%s956 + $0x118] sm:$0xff]
        %v993 = vld [vmem:[%s956 + $0x120] sm:$0xff]
        %v994 = vld [vmem:[%s956 + $0x128] sm:$0xff]
        %v995 = vld [vmem:[%s956 + $0x130] sm:$0xff]
        %v996 = vld [vmem:[%s956 + $0x138] sm:$0xff]
        %v997 = vld [vmem:[%s956 + $0x140] sm:$0xff]
        %v998 = vld [vmem:[%s956 + $0x148] sm:$0xff]
        %v999 = vld [vmem:[%s956 + $0x150] sm:$0xff]
        %v1000 = vld [vmem:[%s956 + $0x158] sm:$0xff]
        %v1001 = vld [vmem:[%s956 + $0x160] sm:$0xff]
        %v1002 = vld [vmem:[%s956 + $0x168] sm:$0xff]
        %v1003 = vld [vmem:[%s956 + $0x170] sm:$0xff]
        %v1004 = vld [vmem:[%s956 + $0x178] sm:$0xff]
        %v1005 = vld [vmem:[%s956 + $0x180] sm:$0xff]
        %v1006 = vld [vmem:[%s956 + $0x188] sm:$0xff]
        %v1007 = vld [vmem:[%s956 + $0x190] sm:$0xff]
        %v1008 = vld [vmem:[%s956 + $0x198] sm:$0xff]
        %v1009 = vld [vmem:[%s956 + $0x1a0] sm:$0xff]
        %v1010 = vld [vmem:[%s956 + $0x1a8] sm:$0xff]
        %v1011 = vld [vmem:[%s956 + $0x1b0] sm:$0xff]
        %v1012 = vld [vmem:[%s956 + $0x1b8] sm:$0xff]
        %v1013 = vld [vmem:[%s956 + $0x1c0] sm:$0xff]
        %v1014 = vld [vmem:[%s956 + $0x1c8] sm:$0xff]
        %v1015 = vld [vmem:[%s956 + $0x1d0] sm:$0xff]
        %v1016 = vld [vmem:[%s956 + $0x1d8] sm:$0xff]
        %v1017 = vld [vmem:[%s956 + $0x1e0] sm:$0xff]
        %v1018 = vld [vmem:[%s956 + $0x1e8] sm:$0xff]
        %v1019 = vld [vmem:[%s956 + $0x1f0] sm:$0xff]
        %v1020 = vld [vmem:[%s956 + $0x1f8] sm:$0xff]
        %v1021 = vld [vmem:[%s956 + $0x200] sm:$0xff]
        %v1022 = vld [vmem:[%s956 + $0x208] sm:$0xff]
        %v1023 = vld [vmem:[%s956 + $0x210] sm:$0xff]
        %v1024 = vld [vmem:[%s956 + $0x218] sm:$0xff]
        %v1025 = vld [vmem:[%s956 + $0x220] sm:$0xff]
        %v1026 = vld [vmem:[%s956 + $0x228] sm:$0xff]
        %v1027 = vld [vmem:[%s956 + $0x230] sm:$0xff]
        %v1028 = vld [vmem:[%s956 + $0x238] sm:$0xff]
        %v1029 = vld [vmem:[%s956 + $0x240] sm:$0xff]
        %v1030 = vld [vmem:[%s956 + $0x248] sm:$0xff]
        %v1031 = vld [vmem:[%s956 + $0x250] sm:$0xff]
        %v1032 = vld [vmem:[%s956 + $0x258] sm:$0xff]
        %v1033 = vld [vmem:[%s956 + $0x260] sm:$0xff]
        %v1034 = vld [vmem:[%s956 + $0x268] sm:$0xff]
        %v1035 = vld [vmem:[%s956 + $0x270] sm:$0xff]
        %v1036 = vld [vmem:[%s956 + $0x278] sm:$0xff]
        %v1037 = vld [vmem:[%s956 + $0x280] sm:$0xff]
        %v1038 = vld [vmem:[%s956 + $0x288] sm:$0xff]
        %v1039 = vld [vmem:[%s956 + $0x290] sm:$0xff]
        %v1040 = vld [vmem:[%s956 + $0x298] sm:$0xff]
        %v1041 = vld [vmem:[%s956 + $0x2a0] sm:$0xff]
        %v1042 = vld [vmem:[%s956 + $0x2a8] sm:$0xff]
        %v1043 = vld [vmem:[%s956 + $0x2b0] sm:$0xff]
        %v1044 = vld [vmem:[%s956 + $0x2b8] sm:$0xff]
        %v1045 = vld [vmem:[%s956 + $0x2c0] sm:$0xff]
        %v1046 = vld [vmem:[%s956 + $0x2c8] sm:$0xff]
        %v1047 = vld [vmem:[%s956 + $0x2d0] sm:$0xff]
        %v1048 = vld [vmem:[%s956 + $0x2d8] sm:$0xff]
        %v1049 = vld [vmem:[%s956 + $0x2e0] sm:$0xff]
        %v1050 = vld [vmem:[%s956 + $0x2e8] sm:$0xff]
        %v1051 = vld [vmem:[%s956 + $0x2f0] sm:$0xff]
        %v1052 = vld [vmem:[%s956 + $0x2f8] sm:$0xff]
        %v1053 = vld [vmem:[%s956 + $0x300] sm:$0xff]
        %v1054 = vld [vmem:[%s956 + $0x308] sm:$0xff]
        %v1061 = vrot.slane %v565, 1
        %v1062 = vrot.slane %v566, 1
        %v1063 = vrot.slane %v567, 1
        %v1064 = vrot.slane %v568, 1
        %v1065 = vrot.slane %v569, 1
        %v1066 = vrot.slane %v570, 1
        %v1067 = vrot.slane %v571, 1
        %v1074 = vsel %vm671, %v1067, 0
        %1076 = vmatprep.subr.mxu0 0.0
        %1077 = vmatpush1.msra.mxu0 %v957
        %1078 = vmatprep.subr.mxu0 0.0
        %1079 = vmatpush1.msra.mxu0 %v958
        %1080 = vmatprep.subr.mxu0 0.0
        %1081 = vmatpush1.msra.mxu0 %v959
        %1082 = vmatprep.subr.mxu0 0.0
        %1083 = vmatpush1.msra.mxu0 %v960
        %1084 = vmatprep.subr.mxu0 0.0
        %1085 = vmatpush1.msra.mxu0 %v961
        %1086 = vmatprep.subr.mxu0 0.0
        %1087 = vmatpush1.msra.mxu0 %v962
        %1088 = vmatprep.subr.mxu0 0.0
        %1089 = vmatpush1.msra.mxu0 %v963
        %1090 = vmatprep.subr.mxu0 0.0
        %1091 = vmatpush1.msra.mxu0 %v964
        %1092 = vmatprep.subr.mxu0 0.0
        %1093 = vmatpush1.msra.mxu0 %v965
        %1094 = vmatprep.subr.mxu0 0.0
        %1095 = vmatpush1.msra.mxu0 %v966
        %1096 = vmatprep.subr.mxu0 0.0
        %1097 = vmatpush1.msra.mxu0 %v967
        %1098 = vmatprep.subr.mxu0 0.0
        %1099 = vmatpush1.msra.mxu0 %v968
        %1100 = vmatprep.subr.mxu0 0.0
        %1101 = vmatpush1.msra.mxu0 %v969
        %1102 = vmatprep.subr.mxu0 0.0
        %1103 = vmatpush1.msra.mxu0 %v970
        %1104 = vmatprep.subr.mxu0 0.0
        %1105 = vmatpush1.msra.mxu0 %v971
        %1106 = vmatprep.subr.mxu0 0.0
        %1107 = vmatpush1.msra.mxu0 %v972
        %1108 = vmatprep.subr.mxu0 0.0
        %1109 = vmatpush1.msra.mxu0 %v973
        %1110 = vmatprep.subr.mxu0 0.0
        %1111 = vmatpush1.msra.mxu0 %v974
        %1112 = vmatprep.subr.mxu0 0.0
        %1113 = vmatpush1.msra.mxu0 %v975
        %1114 = vmatprep.subr.mxu0 0.0
        %1115 = vmatpush1.msra.mxu0 %v976
        %1116 = vmatprep.subr.mxu0 0.0
        %1117 = vmatpush1.msra.mxu0 %v977
        %1118 = vmatprep.subr.mxu0 0.0
        %1119 = vmatpush1.msra.mxu0 %v978
        %1120 = vmatprep.subr.mxu0 0.0
        %1121 = vmatpush1.msra.mxu0 %v979
        %1122 = vmatprep.subr.mxu0 0.0
        %1123 = vmatpush1.msra.mxu0 %v980
        %1124 = vmatprep.subr.mxu0 0.0
        %1125 = vmatpush1.msra.mxu0 %v981
        %1126 = vmatprep.subr.mxu0 0.0
        %1127 = vmatpush1.msra.mxu0 %v982
        %1128 = vmatprep.subr.mxu0 0.0
        %1129 = vmatpush1.msra.mxu0 %v983
        %1130 = vmatprep.subr.mxu0 0.0
        %1131 = vmatpush1.msra.mxu0 %v984
        %1132 = vmatprep.subr.mxu0 0.0
        %1133 = vmatpush1.msra.mxu0 %v985
        %1134 = vmatprep.subr.mxu0 0.0
        %1135 = vmatpush1.msra.mxu0 %v986
        %1136 = vmatprep.subr.mxu0 0.0
        %1137 = vmatpush1.msra.mxu0 %v987
        %1138 = vmatprep.subr.mxu0 0.0
        %1139 = vmatpush1.msra.mxu0 %v988
        %1140 = vmatprep.mubr.f32.mxu0 %v1062
        %1141 = vmatmul.mubr.f32.gmra.mrb[0].mxu0 %v1061
        %v1142 = vpop.f32.mrb[0].mxu0
        %v1143 = vadd.f32 0.0, %v1142
        %v1144 = vpop.f32.mrb[0].mxu0
        %1145 = vdwg.mxu0
        %1146 = vmatprep.subr.mxu0 0.0
        %1147 = vmatpush1.msra.mxu0 %v989
        %1148 = vmatprep.subr.mxu0 0.0
        %1149 = vmatpush1.msra.mxu0 %v990
        %1150 = vmatprep.subr.mxu0 0.0
        %1151 = vmatpush1.msra.mxu0 %v991
        %1152 = vmatprep.subr.mxu0 0.0
        %1153 = vmatpush1.msra.mxu0 %v992
        %1154 = vmatprep.subr.mxu0 0.0
        %1155 = vmatpush1.msra.mxu0 %v993
        %1156 = vmatprep.subr.mxu0 0.0
        %1157 = vmatpush1.msra.mxu0 %v994
        %1158 = vmatprep.subr.mxu0 0.0
        %1159 = vmatpush1.msra.mxu0 %v995
        %1160 = vmatprep.subr.mxu0 0.0
        %1161 = vmatpush1.msra.mxu0 %v996
        %1162 = vmatprep.subr.mxu0 0.0
        %1163 = vmatpush1.msra.mxu0 %v997
        %1164 = vmatprep.subr.mxu0 0.0
        %1165 = vmatpush1.msra.mxu0 %v998
        %1166 = vmatprep.subr.mxu0 0.0
        %1167 = vmatpush1.msra.mxu0 %v999
        %1168 = vmatprep.subr.mxu0 0.0
        %1169 = vmatpush1.msra.mxu0 %v1000
        %1170 = vmatprep.subr.mxu0 0.0
        %1171 = vmatpush1.msra.mxu0 %v1001
        %1172 = vmatprep.subr.mxu0 0.0
        %1173 = vmatpush1.msra.mxu0 %v1002
        %1174 = vmatprep.subr.mxu0 0.0
        %1175 = vmatpush1.msra.mxu0 %v1003
        %1176 = vmatprep.subr.mxu0 0.0
        %1177 = vmatpush1.msra.mxu0 %v1004
        %1178 = vmatprep.subr.mxu0 0.0
        %1179 = vmatpush1.msra.mxu0 %v1005
        %1180 = vmatprep.subr.mxu0 0.0
        %1181 = vmatpush1.msra.mxu0 %v1006
        %1182 = vmatprep.subr.mxu0 0.0
        %1183 = vmatpush1.msra.mxu0 %v1007
        %1184 = vmatprep.subr.mxu0 0.0
        %1185 = vmatpush1.msra.mxu0 %v1008
        %1186 = vmatprep.subr.mxu0 0.0
        %1187 = vmatpush1.msra.mxu0 %v1009
        %1188 = vmatprep.subr.mxu0 0.0
        %1189 = vmatpush1.msra.mxu0 %v1010
        %1190 = vmatprep.subr.mxu0 0.0
        %1191 = vmatpush1.msra.mxu0 %v1011
        %1192 = vmatprep.subr.mxu0 0.0
        %1193 = vmatpush1.msra.mxu0 %v1012
        %1194 = vmatprep.subr.mxu0 0.0
        %1195 = vmatpush1.msra.mxu0 %v1013
        %1196 = vmatprep.subr.mxu0 0.0
        %1197 = vmatpush1.msra.mxu0 %v1014
        %1198 = vmatprep.subr.mxu0 0.0
        %1199 = vmatpush1.msra.mxu0 %v1015
        %1200 = vmatprep.subr.mxu0 0.0
        %1201 = vmatpush1.msra.mxu0 %v1016
        %1202 = vmatprep.subr.mxu0 0.0
        %1203 = vmatpush1.msra.mxu0 %v1017
        %1204 = vmatprep.subr.mxu0 0.0
        %1205 = vmatpush1.msra.mxu0 %v1018
        %1206 = vmatprep.subr.mxu0 0.0
        %1207 = vmatpush1.msra.mxu0 %v1019
        %1208 = vmatprep.subr.mxu0 0.0
        %1209 = vmatpush1.msra.mxu0 %v1020
        %1210 = vmatprep.mubr.f32.mxu0 %v1064
        %1211 = vmatmul.mubr.f32.gmra.mrb[0].mxu0 %v1063
        %v1212 = vpop.f32.mrb[0].mxu0
        %v1213 = vadd.f32 %v1143, %v1212
        %v1214 = vpop.f32.mrb[0].mxu0
        %1215 = vdwg.mxu0
        %1216 = vmatprep.subr.mxu0 0.0
        %1217 = vmatpush1.msra.mxu0 %v1021
        %1218 = vmatprep.subr.mxu0 0.0
        %1219 = vmatpush1.msra.mxu0 %v1022
        %1220 = vmatprep.subr.mxu0 0.0
        %1221 = vmatpush1.msra.mxu0 %v1023
        %1222 = vmatprep.subr.mxu0 0.0
        %1223 = vmatpush1.msra.mxu0 %v1024
        %1224 = vmatprep.subr.mxu0 0.0
        %1225 = vmatpush1.msra.mxu0 %v1025
        %1226 = vmatprep.subr.mxu0 0.0
        %1227 = vmatpush1.msra.mxu0 %v1026
        %1228 = vmatprep.subr.mxu0 0.0
        %1229 = vmatpush1.msra.mxu0 %v1027
        %1230 = vmatprep.subr.mxu0 0.0
        %1231 = vmatpush1.msra.mxu0 %v1028
        %1232 = vmatprep.subr.mxu0 0.0
        %1233 = vmatpush1.msra.mxu0 %v1029
        %1234 = vmatprep.subr.mxu0 0.0
        %1235 = vmatpush1.msra.mxu0 %v1030
        %1236 = vmatprep.subr.mxu0 0.0
        %1237 = vmatpush1.msra.mxu0 %v1031
        %1238 = vmatprep.subr.mxu0 0.0
        %1239 = vmatpush1.msra.mxu0 %v1032
        %1240 = vmatprep.subr.mxu0 0.0
        %1241 = vmatpush1.msra.mxu0 %v1033
        %1242 = vmatprep.subr.mxu0 0.0
        %1243 = vmatpush1.msra.mxu0 %v1034
        %1244 = vmatprep.subr.mxu0 0.0
        %1245 = vmatpush1.msra.mxu0 %v1035
        %1246 = vmatprep.subr.mxu0 0.0
        %1247 = vmatpush1.msra.mxu0 %v1036
        %1248 = vmatprep.subr.mxu0 0.0
        %1249 = vmatpush1.msra.mxu0 %v1037
        %1250 = vmatprep.subr.mxu0 0.0
        %1251 = vmatpush1.msra.mxu0 %v1038
        %1252 = vmatprep.subr.mxu0 0.0
        %1253 = vmatpush1.msra.mxu0 %v1039
        %1254 = vmatprep.subr.mxu0 0.0
        %1255 = vmatpush1.msra.mxu0 %v1040
        %1256 = vmatprep.subr.mxu0 0.0
        %1257 = vmatpush1.msra.mxu0 %v1041
        %1258 = vmatprep.subr.mxu0 0.0
        %1259 = vmatpush1.msra.mxu0 %v1042
        %1260 = vmatprep.subr.mxu0 0.0
        %1261 = vmatpush1.msra.mxu0 %v1043
        %1262 = vmatprep.subr.mxu0 0.0
        %1263 = vmatpush1.msra.mxu0 %v1044
        %1264 = vmatprep.subr.mxu0 0.0
        %1265 = vmatpush1.msra.mxu0 %v1045
        %1266 = vmatprep.subr.mxu0 0.0
        %1267 = vmatpush1.msra.mxu0 %v1046
        %1268 = vmatprep.subr.mxu0 0.0
        %1269 = vmatpush1.msra.mxu0 %v1047
        %1270 = vmatprep.subr.mxu0 0.0
        %1271 = vmatpush1.msra.mxu0 %v1048
        %1272 = vmatprep.subr.mxu0 0.0
        %1273 = vmatpush1.msra.mxu0 %v1049
        %1274 = vmatprep.subr.mxu0 0.0
        %1275 = vmatpush1.msra.mxu0 %v1050
        %1276 = vmatprep.subr.mxu0 0.0
        %1277 = vmatpush1.msra.mxu0 %v1051
        %1278 = vmatprep.subr.mxu0 0.0
        %1279 = vmatpush1.msra.mxu0 %v1052
        %1280 = vmatprep.mubr.f32.mxu0 %v1066
        %1281 = vmatmul.mubr.f32.gmra.mrb[0].mxu0 %v1065
        %v1282 = vpop.f32.mrb[0].mxu0
        %v1283 = vadd.f32 %v1213, %v1282
        %v1284 = vpop.f32.mrb[0].mxu0
        %1285 = vdwg.mxu0
        %1286 = vmatprep.subr.mxu0 0.0
        %1287 = vmatpush1.msra.mxu0 %v1053
        %1288 = vmatprep.subr.mxu0 0.0
        %1289 = vmatpush1.msra.mxu0 %v1054
        %1290 = vmatprep.subr.mxu0 0.0
        %1291 = vmatpush1.msra.mxu0 0.0
        %1292 = vmatprep.subr.mxu0 0.0
        %1293 = vmatpush1.msra.mxu0 0.0
        %1294 = vmatprep.subr.mxu0 0.0
        %1295 = vmatpush1.msra.mxu0 0.0
        %1296 = vmatprep.subr.mxu0 0.0
        %1297 = vmatpush1.msra.mxu0 0.0
        %1298 = vmatprep.subr.mxu0 0.0
        %1299 = vmatpush1.msra.mxu0 0.0
        %1300 = vmatprep.subr.mxu0 0.0
        %1301 = vmatpush1.msra.mxu0 0.0
        %1302 = vmatprep.subr.mxu0 0.0
        %1303 = vmatpush1.msra.mxu0 0.0
        %1304 = vmatprep.subr.mxu0 0.0
        %1305 = vmatpush1.msra.mxu0 0.0
        %1306 = vmatprep.subr.mxu0 0.0
        %1307 = vmatpush1.msra.mxu0 0.0
        %1308 = vmatprep.subr.mxu0 0.0
        %1309 = vmatpush1.msra.mxu0 0.0
        %1310 = vmatprep.subr.mxu0 0.0
        %1311 = vmatpush1.msra.mxu0 0.0
        %1312 = vmatprep.subr.mxu0 0.0
        %1313 = vmatpush1.msra.mxu0 0.0
        %1314 = vmatprep.subr.mxu0 0.0
        %1315 = vmatpush1.msra.mxu0 0.0
        %1316 = vmatprep.subr.mxu0 0.0
        %1317 = vmatpush1.msra.mxu0 0.0
        %1318 = vmatprep.subr.mxu0 0.0
        %1319 = vmatpush1.msra.mxu0 0.0
        %1320 = vmatprep.subr.mxu0 0.0
        %1321 = vmatpush1.msra.mxu0 0.0
        %1322 = vmatprep.subr.mxu0 0.0
        %1323 = vmatpush1.msra.mxu0 0.0
        %1324 = vmatprep.subr.mxu0 0.0
        %1325 = vmatpush1.msra.mxu0 0.0
        %1326 = vmatprep.subr.mxu0 0.0
        %1327 = vmatpush1.msra.mxu0 0.0
        %1328 = vmatprep.subr.mxu0 0.0
        %1329 = vmatpush1.msra.mxu0 0.0
        %1330 = vmatprep.subr.mxu0 0.0
        %1331 = vmatpush1.msra.mxu0 0.0
        %1332 = vmatprep.subr.mxu0 0.0
        %1333 = vmatpush1.msra.mxu0 0.0
        %1334 = vmatprep.subr.mxu0 0.0
        %1335 = vmatpush1.msra.mxu0 0.0
        %1336 = vmatprep.subr.mxu0 0.0
        %1337 = vmatpush1.msra.mxu0 0.0
        %1338 = vmatprep.subr.mxu0 0.0
        %1339 = vmatpush1.msra.mxu0 0.0
        %1340 = vmatprep.subr.mxu0 0.0
        %1341 = vmatpush1.msra.mxu0 0.0
        %1342 = vmatprep.subr.mxu0 0.0
        %1343 = vmatpush1.msra.mxu0 0.0
        %1344 = vmatprep.subr.mxu0 0.0
        %1345 = vmatpush1.msra.mxu0 0.0
        %1346 = vmatprep.subr.mxu0 0.0
        %1347 = vmatpush1.msra.mxu0 0.0
        %1348 = vmatprep.subr.mxu0 0.0
        %1349 = vmatpush1.msra.mxu0 0.0
        %1350 = vmatprep.mubr.f32.mxu0 0.0
        %1351 = vmatmul.mubr.f32.gmra.mrb[0].mxu0 %v1074
        %v1352 = vpop.f32.mrb[0].mxu0
        %v1353 = vadd.f32 %v1283, %v1352
        %v1354 = vpop.f32.mrb[0].mxu0
        %1355 = vdwg.mxu0
        %v1356 = vadd.f32 %v955, %v1353
        %s1357 = scalar_lea.vmem %s2, 1568
        %v1358 = vld [vmem:[%s1357] sm:$0xff]
        %v1359 = vld [vmem:[%s1357 + $0x8] sm:$0xff]
        %v1360 = vld [vmem:[%s1357 + $0x10] sm:$0xff]
        %v1361 = vld [vmem:[%s1357 + $0x18] sm:$0xff]
        %v1362 = vld [vmem:[%s1357 + $0x20] sm:$0xff]
        %v1363 = vld [vmem:[%s1357 + $0x28] sm:$0xff]
        %v1364 = vld [vmem:[%s1357 + $0x30] sm:$0xff]
        %v1365 = vld [vmem:[%s1357 + $0x38] sm:$0xff]
        %v1366 = vld [vmem:[%s1357 + $0x40] sm:$0xff]
        %v1367 = vld [vmem:[%s1357 + $0x48] sm:$0xff]
        %v1368 = vld [vmem:[%s1357 + $0x50] sm:$0xff]
        %v1369 = vld [vmem:[%s1357 + $0x58] sm:$0xff]
        %v1370 = vld [vmem:[%s1357 + $0x60] sm:$0xff]
        %v1371 = vld [vmem:[%s1357 + $0x68] sm:$0xff]
        %v1372 = vld [vmem:[%s1357 + $0x70] sm:$0xff]
        %v1373 = vld [vmem:[%s1357 + $0x78] sm:$0xff]
        %v1374 = vld [vmem:[%s1357 + $0x80] sm:$0xff]
        %v1375 = vld [vmem:[%s1357 + $0x88] sm:$0xff]
        %v1376 = vld [vmem:[%s1357 + $0x90] sm:$0xff]
        %v1377 = vld [vmem:[%s1357 + $0x98] sm:$0xff]
        %v1378 = vld [vmem:[%s1357 + $0xa0] sm:$0xff]
        %v1379 = vld [vmem:[%s1357 + $0xa8] sm:$0xff]
        %v1380 = vld [vmem:[%s1357 + $0xb0] sm:$0xff]
        %v1381 = vld [vmem:[%s1357 + $0xb8] sm:$0xff]
        %v1382 = vld [vmem:[%s1357 + $0xc0] sm:$0xff]
        %v1383 = vld [vmem:[%s1357 + $0xc8] sm:$0xff]
        %v1384 = vld [vmem:[%s1357 + $0xd0] sm:$0xff]
        %v1385 = vld [vmem:[%s1357 + $0xd8] sm:$0xff]
        %v1386 = vld [vmem:[%s1357 + $0xe0] sm:$0xff]
        %v1387 = vld [vmem:[%s1357 + $0xe8] sm:$0xff]
        %v1388 = vld [vmem:[%s1357 + $0xf0] sm:$0xff]
        %v1389 = vld [vmem:[%s1357 + $0xf8] sm:$0xff]
        %v1390 = vld [vmem:[%s1357 + $0x100] sm:$0xff]
        %v1391 = vld [vmem:[%s1357 + $0x108] sm:$0xff]
        %v1392 = vld [vmem:[%s1357 + $0x110] sm:$0xff]
        %v1393 = vld [vmem:[%s1357 + $0x118] sm:$0xff]
        %v1394 = vld [vmem:[%s1357 + $0x120] sm:$0xff]
        %v1395 = vld [vmem:[%s1357 + $0x128] sm:$0xff]
        %v1396 = vld [vmem:[%s1357 + $0x130] sm:$0xff]
        %v1397 = vld [vmem:[%s1357 + $0x138] sm:$0xff]
        %v1398 = vld [vmem:[%s1357 + $0x140] sm:$0xff]
        %v1399 = vld [vmem:[%s1357 + $0x148] sm:$0xff]
        %v1400 = vld [vmem:[%s1357 + $0x150] sm:$0xff]
        %v1401 = vld [vmem:[%s1357 + $0x158] sm:$0xff]
        %v1402 = vld [vmem:[%s1357 + $0x160] sm:$0xff]
        %v1403 = vld [vmem:[%s1357 + $0x168] sm:$0xff]
        %v1404 = vld [vmem:[%s1357 + $0x170] sm:$0xff]
        %v1405 = vld [vmem:[%s1357 + $0x178] sm:$0xff]
        %v1406 = vld [vmem:[%s1357 + $0x180] sm:$0xff]
        %v1407 = vld [vmem:[%s1357 + $0x188] sm:$0xff]
        %v1408 = vld [vmem:[%s1357 + $0x190] sm:$0xff]
        %v1409 = vld [vmem:[%s1357 + $0x198] sm:$0xff]
        %v1410 = vld [vmem:[%s1357 + $0x1a0] sm:$0xff]
        %v1411 = vld [vmem:[%s1357 + $0x1a8] sm:$0xff]
        %v1412 = vld [vmem:[%s1357 + $0x1b0] sm:$0xff]
        %v1413 = vld [vmem:[%s1357 + $0x1b8] sm:$0xff]
        %v1414 = vld [vmem:[%s1357 + $0x1c0] sm:$0xff]
        %v1415 = vld [vmem:[%s1357 + $0x1c8] sm:$0xff]
        %v1416 = vld [vmem:[%s1357 + $0x1d0] sm:$0xff]
        %v1417 = vld [vmem:[%s1357 + $0x1d8] sm:$0xff]
        %v1418 = vld [vmem:[%s1357 + $0x1e0] sm:$0xff]
        %v1419 = vld [vmem:[%s1357 + $0x1e8] sm:$0xff]
        %v1420 = vld [vmem:[%s1357 + $0x1f0] sm:$0xff]
        %v1421 = vld [vmem:[%s1357 + $0x1f8] sm:$0xff]
        %v1422 = vld [vmem:[%s1357 + $0x200] sm:$0xff]
        %v1423 = vld [vmem:[%s1357 + $0x208] sm:$0xff]
        %v1424 = vld [vmem:[%s1357 + $0x210] sm:$0xff]
        %v1425 = vld [vmem:[%s1357 + $0x218] sm:$0xff]
        %v1426 = vld [vmem:[%s1357 + $0x220] sm:$0xff]
        %v1427 = vld [vmem:[%s1357 + $0x228] sm:$0xff]
        %v1428 = vld [vmem:[%s1357 + $0x230] sm:$0xff]
        %v1429 = vld [vmem:[%s1357 + $0x238] sm:$0xff]
        %v1430 = vld [vmem:[%s1357 + $0x240] sm:$0xff]
        %v1431 = vld [vmem:[%s1357 + $0x248] sm:$0xff]
        %v1432 = vld [vmem:[%s1357 + $0x250] sm:$0xff]
        %v1433 = vld [vmem:[%s1357 + $0x258] sm:$0xff]
        %v1434 = vld [vmem:[%s1357 + $0x260] sm:$0xff]
        %v1435 = vld [vmem:[%s1357 + $0x268] sm:$0xff]
        %v1436 = vld [vmem:[%s1357 + $0x270] sm:$0xff]
        %v1437 = vld [vmem:[%s1357 + $0x278] sm:$0xff]
        %v1438 = vld [vmem:[%s1357 + $0x280] sm:$0xff]
        %v1439 = vld [vmem:[%s1357 + $0x288] sm:$0xff]
        %v1440 = vld [vmem:[%s1357 + $0x290] sm:$0xff]
        %v1441 = vld [vmem:[%s1357 + $0x298] sm:$0xff]
        %v1442 = vld [vmem:[%s1357 + $0x2a0] sm:$0xff]
        %v1443 = vld [vmem:[%s1357 + $0x2a8] sm:$0xff]
        %v1444 = vld [vmem:[%s1357 + $0x2b0] sm:$0xff]
        %v1445 = vld [vmem:[%s1357 + $0x2b8] sm:$0xff]
        %v1446 = vld [vmem:[%s1357 + $0x2c0] sm:$0xff]
        %v1447 = vld [vmem:[%s1357 + $0x2c8] sm:$0xff]
        %v1448 = vld [vmem:[%s1357 + $0x2d0] sm:$0xff]
        %v1449 = vld [vmem:[%s1357 + $0x2d8] sm:$0xff]
        %v1450 = vld [vmem:[%s1357 + $0x2e0] sm:$0xff]
        %v1451 = vld [vmem:[%s1357 + $0x2e8] sm:$0xff]
        %v1452 = vld [vmem:[%s1357 + $0x2f0] sm:$0xff]
        %v1453 = vld [vmem:[%s1357 + $0x2f8] sm:$0xff]
        %v1454 = vld [vmem:[%s1357 + $0x300] sm:$0xff]
        %v1455 = vld [vmem:[%s1357 + $0x308] sm:$0xff]
        %v1456 = vrot.slane %v565, 2
        %v1457 = vrot.slane %v566, 2
        %v1458 = vrot.slane %v567, 2
        %v1459 = vrot.slane %v568, 2
        %v1460 = vrot.slane %v569, 2
        %v1461 = vrot.slane %v570, 2
        %v1462 = vrot.slane %v571, 2
        %v1469 = vsel %vm671, %v1462, 0
        %1471 = vmatprep.subr.mxu0 0.0
        %1472 = vmatpush1.msra.mxu0 %v1358
        %1473 = vmatprep.subr.mxu0 0.0
        %1474 = vmatpush1.msra.mxu0 %v1359
        %1475 = vmatprep.subr.mxu0 0.0
        %1476 = vmatpush1.msra.mxu0 %v1360
        %1477 = vmatprep.subr.mxu0 0.0
        %1478 = vmatpush1.msra.mxu0 %v1361
        %1479 = vmatprep.subr.mxu0 0.0
        %1480 = vmatpush1.msra.mxu0 %v1362
        %1481 = vmatprep.subr.mxu0 0.0
        %1482 = vmatpush1.msra.mxu0 %v1363
        %1483 = vmatprep.subr.mxu0 0.0
        %1484 = vmatpush1.msra.mxu0 %v1364
        %1485 = vmatprep.subr.mxu0 0.0
        %1486 = vmatpush1.msra.mxu0 %v1365
        %1487 = vmatprep.subr.mxu0 0.0
        %1488 = vmatpush1.msra.mxu0 %v1366
        %1489 = vmatprep.subr.mxu0 0.0
        %1490 = vmatpush1.msra.mxu0 %v1367
        %1491 = vmatprep.subr.mxu0 0.0
        %1492 = vmatpush1.msra.mxu0 %v1368
        %1493 = vmatprep.subr.mxu0 0.0
        %1494 = vmatpush1.msra.mxu0 %v1369
        %1495 = vmatprep.subr.mxu0 0.0
        %1496 = vmatpush1.msra.mxu0 %v1370
        %1497 = vmatprep.subr.mxu0 0.0
        %1498 = vmatpush1.msra.mxu0 %v1371
        %1499 = vmatprep.subr.mxu0 0.0
        %1500 = vmatpush1.msra.mxu0 %v1372
        %1501 = vmatprep.subr.mxu0 0.0
        %1502 = vmatpush1.msra.mxu0 %v1373
        %1503 = vmatprep.subr.mxu0 0.0
        %1504 = vmatpush1.msra.mxu0 %v1374
        %1505 = vmatprep.subr.mxu0 0.0
        %1506 = vmatpush1.msra.mxu0 %v1375
        %1507 = vmatprep.subr.mxu0 0.0
        %1508 = vmatpush1.msra.mxu0 %v1376
        %1509 = vmatprep.subr.mxu0 0.0
        %1510 = vmatpush1.msra.mxu0 %v1377
        %1511 = vmatprep.subr.mxu0 0.0
        %1512 = vmatpush1.msra.mxu0 %v1378
        %1513 = vmatprep.subr.mxu0 0.0
        %1514 = vmatpush1.msra.mxu0 %v1379
        %1515 = vmatprep.subr.mxu0 0.0
        %1516 = vmatpush1.msra.mxu0 %v1380
        %1517 = vmatprep.subr.mxu0 0.0
        %1518 = vmatpush1.msra.mxu0 %v1381
        %1519 = vmatprep.subr.mxu0 0.0
        %1520 = vmatpush1.msra.mxu0 %v1382
        %1521 = vmatprep.subr.mxu0 0.0
        %1522 = vmatpush1.msra.mxu0 %v1383
        %1523 = vmatprep.subr.mxu0 0.0
        %1524 = vmatpush1.msra.mxu0 %v1384
        %1525 = vmatprep.subr.mxu0 0.0
        %1526 = vmatpush1.msra.mxu0 %v1385
        %1527 = vmatprep.subr.mxu0 0.0
        %1528 = vmatpush1.msra.mxu0 %v1386
        %1529 = vmatprep.subr.mxu0 0.0
        %1530 = vmatpush1.msra.mxu0 %v1387
        %1531 = vmatprep.subr.mxu0 0.0
        %1532 = vmatpush1.msra.mxu0 %v1388
        %1533 = vmatprep.subr.mxu0 0.0
        %1534 = vmatpush1.msra.mxu0 %v1389
        %1535 = vmatprep.mubr.f32.mxu0 %v1457
        %1536 = vmatmul.mubr.f32.gmra.mrb[0].mxu0 %v1456
        %v1537 = vpop.f32.mrb[0].mxu0
        %v1538 = vadd.f32 0.0, %v1537
        %v1539 = vpop.f32.mrb[0].mxu0
        %1540 = vdwg.mxu0
        %1541 = vmatprep.subr.mxu0 0.0
        %1542 = vmatpush1.msra.mxu0 %v1390
        %1543 = vmatprep.subr.mxu0 0.0
        %1544 = vmatpush1.msra.mxu0 %v1391
        %1545 = vmatprep.subr.mxu0 0.0
        %1546 = vmatpush1.msra.mxu0 %v1392
        %1547 = vmatprep.subr.mxu0 0.0
        %1548 = vmatpush1.msra.mxu0 %v1393
        %1549 = vmatprep.subr.mxu0 0.0
        %1550 = vmatpush1.msra.mxu0 %v1394
        %1551 = vmatprep.subr.mxu0 0.0
        %1552 = vmatpush1.msra.mxu0 %v1395
        %1553 = vmatprep.subr.mxu0 0.0
        %1554 = vmatpush1.msra.mxu0 %v1396
        %1555 = vmatprep.subr.mxu0 0.0
        %1556 = vmatpush1.msra.mxu0 %v1397
        %1557 = vmatprep.subr.mxu0 0.0
        %1558 = vmatpush1.msra.mxu0 %v1398
        %1559 = vmatprep.subr.mxu0 0.0
        %1560 = vmatpush1.msra.mxu0 %v1399
        %1561 = vmatprep.subr.mxu0 0.0
        %1562 = vmatpush1.msra.mxu0 %v1400
        %1563 = vmatprep.subr.mxu0 0.0
        %1564 = vmatpush1.msra.mxu0 %v1401
        %1565 = vmatprep.subr.mxu0 0.0
        %1566 = vmatpush1.msra.mxu0 %v1402
        %1567 = vmatprep.subr.mxu0 0.0
        %1568 = vmatpush1.msra.mxu0 %v1403
        %1569 = vmatprep.subr.mxu0 0.0
        %1570 = vmatpush1.msra.mxu0 %v1404
        %1571 = vmatprep.subr.mxu0 0.0
        %1572 = vmatpush1.msra.mxu0 %v1405
        %1573 = vmatprep.subr.mxu0 0.0
        %1574 = vmatpush1.msra.mxu0 %v1406
        %1575 = vmatprep.subr.mxu0 0.0
        %1576 = vmatpush1.msra.mxu0 %v1407
        %1577 = vmatprep.subr.mxu0 0.0
        %1578 = vmatpush1.msra.mxu0 %v1408
        %1579 = vmatprep.subr.mxu0 0.0
        %1580 = vmatpush1.msra.mxu0 %v1409
        %1581 = vmatprep.subr.mxu0 0.0
        %1582 = vmatpush1.msra.mxu0 %v1410
        %1583 = vmatprep.subr.mxu0 0.0
        %1584 = vmatpush1.msra.mxu0 %v1411
        %1585 = vmatprep.subr.mxu0 0.0
        %1586 = vmatpush1.msra.mxu0 %v1412
        %1587 = vmatprep.subr.mxu0 0.0
        %1588 = vmatpush1.msra.mxu0 %v1413
        %1589 = vmatprep.subr.mxu0 0.0
        %1590 = vmatpush1.msra.mxu0 %v1414
        %1591 = vmatprep.subr.mxu0 0.0
        %1592 = vmatpush1.msra.mxu0 %v1415
        %1593 = vmatprep.subr.mxu0 0.0
        %1594 = vmatpush1.msra.mxu0 %v1416
        %1595 = vmatprep.subr.mxu0 0.0
        %1596 = vmatpush1.msra.mxu0 %v1417
        %1597 = vmatprep.subr.mxu0 0.0
        %1598 = vmatpush1.msra.mxu0 %v1418
        %1599 = vmatprep.subr.mxu0 0.0
        %1600 = vmatpush1.msra.mxu0 %v1419
        %1601 = vmatprep.subr.mxu0 0.0
        %1602 = vmatpush1.msra.mxu0 %v1420
        %1603 = vmatprep.subr.mxu0 0.0
        %1604 = vmatpush1.msra.mxu0 %v1421
        %1605 = vmatprep.mubr.f32.mxu0 %v1459
        %1606 = vmatmul.mubr.f32.gmra.mrb[0].mxu0 %v1458
        %v1607 = vpop.f32.mrb[0].mxu0
        %v1608 = vadd.f32 %v1538, %v1607
        %v1609 = vpop.f32.mrb[0].mxu0
        %1610 = vdwg.mxu0
        %1611 = vmatprep.subr.mxu0 0.0
        %1612 = vmatpush1.msra.mxu0 %v1422
        %1613 = vmatprep.subr.mxu0 0.0
        %1614 = vmatpush1.msra.mxu0 %v1423
        %1615 = vmatprep.subr.mxu0 0.0
        %1616 = vmatpush1.msra.mxu0 %v1424
        %1617 = vmatprep.subr.mxu0 0.0
        %1618 = vmatpush1.msra.mxu0 %v1425
        %1619 = vmatprep.subr.mxu0 0.0
        %1620 = vmatpush1.msra.mxu0 %v1426
        %1621 = vmatprep.subr.mxu0 0.0
        %1622 = vmatpush1.msra.mxu0 %v1427
        %1623 = vmatprep.subr.mxu0 0.0
        %1624 = vmatpush1.msra.mxu0 %v1428
        %1625 = vmatprep.subr.mxu0 0.0
        %1626 = vmatpush1.msra.mxu0 %v1429
        %1627 = vmatprep.subr.mxu0 0.0
        %1628 = vmatpush1.msra.mxu0 %v1430
        %1629 = vmatprep.subr.mxu0 0.0
        %1630 = vmatpush1.msra.mxu0 %v1431
        %1631 = vmatprep.subr.mxu0 0.0
        %1632 = vmatpush1.msra.mxu0 %v1432
        %1633 = vmatprep.subr.mxu0 0.0
        %1634 = vmatpush1.msra.mxu0 %v1433
        %1635 = vmatprep.subr.mxu0 0.0
        %1636 = vmatpush1.msra.mxu0 %v1434
        %1637 = vmatprep.subr.mxu0 0.0
        %1638 = vmatpush1.msra.mxu0 %v1435
        %1639 = vmatprep.subr.mxu0 0.0
        %1640 = vmatpush1.msra.mxu0 %v1436
        %1641 = vmatprep.subr.mxu0 0.0
        %1642 = vmatpush1.msra.mxu0 %v1437
        %1643 = vmatprep.subr.mxu0 0.0
        %1644 = vmatpush1.msra.mxu0 %v1438
        %1645 = vmatprep.subr.mxu0 0.0
        %1646 = vmatpush1.msra.mxu0 %v1439
        %1647 = vmatprep.subr.mxu0 0.0
        %1648 = vmatpush1.msra.mxu0 %v1440
        %1649 = vmatprep.subr.mxu0 0.0
        %1650 = vmatpush1.msra.mxu0 %v1441
        %1651 = vmatprep.subr.mxu0 0.0
        %1652 = vmatpush1.msra.mxu0 %v1442
        %1653 = vmatprep.subr.mxu0 0.0
        %1654 = vmatpush1.msra.mxu0 %v1443
        %1655 = vmatprep.subr.mxu0 0.0
        %1656 = vmatpush1.msra.mxu0 %v1444
        %1657 = vmatprep.subr.mxu0 0.0
        %1658 = vmatpush1.msra.mxu0 %v1445
        %1659 = vmatprep.subr.mxu0 0.0
        %1660 = vmatpush1.msra.mxu0 %v1446
        %1661 = vmatprep.subr.mxu0 0.0
        %1662 = vmatpush1.msra.mxu0 %v1447
        %1663 = vmatprep.subr.mxu0 0.0
        %1664 = vmatpush1.msra.mxu0 %v1448
        %1665 = vmatprep.subr.mxu0 0.0
        %1666 = vmatpush1.msra.mxu0 %v1449
        %1667 = vmatprep.subr.mxu0 0.0
        %1668 = vmatpush1.msra.mxu0 %v1450
        %1669 = vmatprep.subr.mxu0 0.0
        %1670 = vmatpush1.msra.mxu0 %v1451
        %1671 = vmatprep.subr.mxu0 0.0
        %1672 = vmatpush1.msra.mxu0 %v1452
        %1673 = vmatprep.subr.mxu0 0.0
        %1674 = vmatpush1.msra.mxu0 %v1453
        %1675 = vmatprep.mubr.f32.mxu0 %v1461
        %1676 = vmatmul.mubr.f32.gmra.mrb[0].mxu0 %v1460
        %v1677 = vpop.f32.mrb[0].mxu0
        %v1678 = vadd.f32 %v1608, %v1677
        %v1679 = vpop.f32.mrb[0].mxu0
        %1680 = vdwg.mxu0
        %1681 = vmatprep.subr.mxu0 0.0
        %1682 = vmatpush1.msra.mxu0 %v1454
        %1683 = vmatprep.subr.mxu0 0.0
        %1684 = vmatpush1.msra.mxu0 %v1455
        %1685 = vmatprep.subr.mxu0 0.0
        %1686 = vmatpush1.msra.mxu0 0.0
        %1687 = vmatprep.subr.mxu0 0.0
        %1688 = vmatpush1.msra.mxu0 0.0
        %1689 = vmatprep.subr.mxu0 0.0
        %1690 = vmatpush1.msra.mxu0 0.0
        %1691 = vmatprep.subr.mxu0 0.0
        %1692 = vmatpush1.msra.mxu0 0.0
        %1693 = vmatprep.subr.mxu0 0.0
        %1694 = vmatpush1.msra.mxu0 0.0
        %1695 = vmatprep.subr.mxu0 0.0
        %1696 = vmatpush1.msra.mxu0 0.0
        %1697 = vmatprep.subr.mxu0 0.0
        %1698 = vmatpush1.msra.mxu0 0.0
        %1699 = vmatprep.subr.mxu0 0.0
        %1700 = vmatpush1.msra.mxu0 0.0
        %1701 = vmatprep.subr.mxu0 0.0
        %1702 = vmatpush1.msra.mxu0 0.0
        %1703 = vmatprep.subr.mxu0 0.0
        %1704 = vmatpush1.msra.mxu0 0.0
        %1705 = vmatprep.subr.mxu0 0.0
        %1706 = vmatpush1.msra.mxu0 0.0
        %1707 = vmatprep.subr.mxu0 0.0
        %1708 = vmatpush1.msra.mxu0 0.0
        %1709 = vmatprep.subr.mxu0 0.0
        %1710 = vmatpush1.msra.mxu0 0.0
        %1711 = vmatprep.subr.mxu0 0.0
        %1712 = vmatpush1.msra.mxu0 0.0
        %1713 = vmatprep.subr.mxu0 0.0
        %1714 = vmatpush1.msra.mxu0 0.0
        %1715 = vmatprep.subr.mxu0 0.0
        %1716 = vmatpush1.msra.mxu0 0.0
        %1717 = vmatprep.subr.mxu0 0.0
        %1718 = vmatpush1.msra.mxu0 0.0
        %1719 = vmatprep.subr.mxu0 0.0
        %1720 = vmatpush1.msra.mxu0 0.0
        %1721 = vmatprep.subr.mxu0 0.0
        %1722 = vmatpush1.msra.mxu0 0.0
        %1723 = vmatprep.subr.mxu0 0.0
        %1724 = vmatpush1.msra.mxu0 0.0
        %1725 = vmatprep.subr.mxu0 0.0
        %1726 = vmatpush1.msra.mxu0 0.0
        %1727 = vmatprep.subr.mxu0 0.0
        %1728 = vmatpush1.msra.mxu0 0.0
        %1729 = vmatprep.subr.mxu0 0.0
        %1730 = vmatpush1.msra.mxu0 0.0
        %1731 = vmatprep.subr.mxu0 0.0
        %1732 = vmatpush1.msra.mxu0 0.0
        %1733 = vmatprep.subr.mxu0 0.0
        %1734 = vmatpush1.msra.mxu0 0.0
        %1735 = vmatprep.subr.mxu0 0.0
        %1736 = vmatpush1.msra.mxu0 0.0
        %1737 = vmatprep.subr.mxu0 0.0
        %1738 = vmatpush1.msra.mxu0 0.0
        %1739 = vmatprep.subr.mxu0 0.0
        %1740 = vmatpush1.msra.mxu0 0.0
        %1741 = vmatprep.subr.mxu0 0.0
        %1742 = vmatpush1.msra.mxu0 0.0
        %1743 = vmatprep.subr.mxu0 0.0
        %1744 = vmatpush1.msra.mxu0 0.0
        %1745 = vmatprep.mubr.f32.mxu0 0.0
        %1746 = vmatmul.mubr.f32.gmra.mrb[0].mxu0 %v1469
        %v1747 = vpop.f32.mrb[0].mxu0
        %v1748 = vadd.f32 %v1678, %v1747
        %v1749 = vpop.f32.mrb[0].mxu0
        %1750 = vdwg.mxu0
        %v1751 = vadd.f32 %v1356, %v1748
        %s1752 = scalar_lea.vmem %s2, 2352
        %v1753 = vld [vmem:[%s1752] sm:$0xff]
        %v1754 = vld [vmem:[%s1752 + $0x8] sm:$0xff]
        %v1755 = vld [vmem:[%s1752 + $0x10] sm:$0xff]
        %v1756 = vld [vmem:[%s1752 + $0x18] sm:$0xff]
        %v1757 = vld [vmem:[%s1752 + $0x20] sm:$0xff]
        %v1758 = vld [vmem:[%s1752 + $0x28] sm:$0xff]
        %v1759 = vld [vmem:[%s1752 + $0x30] sm:$0xff]
        %v1760 = vld [vmem:[%s1752 + $0x38] sm:$0xff]
        %v1761 = vld [vmem:[%s1752 + $0x40] sm:$0xff]
        %v1762 = vld [vmem:[%s1752 + $0x48] sm:$0xff]
        %v1763 = vld [vmem:[%s1752 + $0x50] sm:$0xff]
        %v1764 = vld [vmem:[%s1752 + $0x58] sm:$0xff]
        %v1765 = vld [vmem:[%s1752 + $0x60] sm:$0xff]
        %v1766 = vld [vmem:[%s1752 + $0x68] sm:$0xff]
        %v1767 = vld [vmem:[%s1752 + $0x70] sm:$0xff]
        %v1768 = vld [vmem:[%s1752 + $0x78] sm:$0xff]
        %v1769 = vld [vmem:[%s1752 + $0x80] sm:$0xff]
        %v1770 = vld [vmem:[%s1752 + $0x88] sm:$0xff]
        %v1771 = vld [vmem:[%s1752 + $0x90] sm:$0xff]
        %v1772 = vld [vmem:[%s1752 + $0x98] sm:$0xff]
        %v1773 = vld [vmem:[%s1752 + $0xa0] sm:$0xff]
        %v1774 = vld [vmem:[%s1752 + $0xa8] sm:$0xff]
        %v1775 = vld [vmem:[%s1752 + $0xb0] sm:$0xff]
        %v1776 = vld [vmem:[%s1752 + $0xb8] sm:$0xff]
        %v1777 = vld [vmem:[%s1752 + $0xc0] sm:$0xff]
        %v1778 = vld [vmem:[%s1752 + $0xc8] sm:$0xff]
        %v1779 = vld [vmem:[%s1752 + $0xd0] sm:$0xff]
        %v1780 = vld [vmem:[%s1752 + $0xd8] sm:$0xff]
        %v1781 = vld [vmem:[%s1752 + $0xe0] sm:$0xff]
        %v1782 = vld [vmem:[%s1752 + $0xe8] sm:$0xff]
        %v1783 = vld [vmem:[%s1752 + $0xf0] sm:$0xff]
        %v1784 = vld [vmem:[%s1752 + $0xf8] sm:$0xff]
        %v1785 = vld [vmem:[%s1752 + $0x100] sm:$0xff]
        %v1786 = vld [vmem:[%s1752 + $0x108] sm:$0xff]
        %v1787 = vld [vmem:[%s1752 + $0x110] sm:$0xff]
        %v1788 = vld [vmem:[%s1752 + $0x118] sm:$0xff]
        %v1789 = vld [vmem:[%s1752 + $0x120] sm:$0xff]
        %v1790 = vld [vmem:[%s1752 + $0x128] sm:$0xff]
        %v1791 = vld [vmem:[%s1752 + $0x130] sm:$0xff]
        %v1792 = vld [vmem:[%s1752 + $0x138] sm:$0xff]
        %v1793 = vld [vmem:[%s1752 + $0x140] sm:$0xff]
        %v1794 = vld [vmem:[%s1752 + $0x148] sm:$0xff]
        %v1795 = vld [vmem:[%s1752 + $0x150] sm:$0xff]
        %v1796 = vld [vmem:[%s1752 + $0x158] sm:$0xff]
        %v1797 = vld [vmem:[%s1752 + $0x160] sm:$0xff]
        %v1798 = vld [vmem:[%s1752 + $0x168] sm:$0xff]
        %v1799 = vld [vmem:[%s1752 + $0x170] sm:$0xff]
        %v1800 = vld [vmem:[%s1752 + $0x178] sm:$0xff]
        %v1801 = vld [vmem:[%s1752 + $0x180] sm:$0xff]
        %v1802 = vld [vmem:[%s1752 + $0x188] sm:$0xff]
        %v1803 = vld [vmem:[%s1752 + $0x190] sm:$0xff]
        %v1804 = vld [vmem:[%s1752 + $0x198] sm:$0xff]
        %v1805 = vld [vmem:[%s1752 + $0x1a0] sm:$0xff]
        %v1806 = vld [vmem:[%s1752 + $0x1a8] sm:$0xff]
        %v1807 = vld [vmem:[%s1752 + $0x1b0] sm:$0xff]
        %v1808 = vld [vmem:[%s1752 + $0x1b8] sm:$0xff]
        %v1809 = vld [vmem:[%s1752 + $0x1c0] sm:$0xff]
        %v1810 = vld [vmem:[%s1752 + $0x1c8] sm:$0xff]
        %v1811 = vld [vmem:[%s1752 + $0x1d0] sm:$0xff]
        %v1812 = vld [vmem:[%s1752 + $0x1d8] sm:$0xff]
        %v1813 = vld [vmem:[%s1752 + $0x1e0] sm:$0xff]
        %v1814 = vld [vmem:[%s1752 + $0x1e8] sm:$0xff]
        %v1815 = vld [vmem:[%s1752 + $0x1f0] sm:$0xff]
        %v1816 = vld [vmem:[%s1752 + $0x1f8] sm:$0xff]
        %v1817 = vld [vmem:[%s1752 + $0x200] sm:$0xff]
        %v1818 = vld [vmem:[%s1752 + $0x208] sm:$0xff]
        %v1819 = vld [vmem:[%s1752 + $0x210] sm:$0xff]
        %v1820 = vld [vmem:[%s1752 + $0x218] sm:$0xff]
        %v1821 = vld [vmem:[%s1752 + $0x220] sm:$0xff]
        %v1822 = vld [vmem:[%s1752 + $0x228] sm:$0xff]
        %v1823 = vld [vmem:[%s1752 + $0x230] sm:$0xff]
        %v1824 = vld [vmem:[%s1752 + $0x238] sm:$0xff]
        %v1825 = vld [vmem:[%s1752 + $0x240] sm:$0xff]
        %v1826 = vld [vmem:[%s1752 + $0x248] sm:$0xff]
        %v1827 = vld [vmem:[%s1752 + $0x250] sm:$0xff]
        %v1828 = vld [vmem:[%s1752 + $0x258] sm:$0xff]
        %v1829 = vld [vmem:[%s1752 + $0x260] sm:$0xff]
        %v1830 = vld [vmem:[%s1752 + $0x268] sm:$0xff]
        %v1831 = vld [vmem:[%s1752 + $0x270] sm:$0xff]
        %v1832 = vld [vmem:[%s1752 + $0x278] sm:$0xff]
        %v1833 = vld [vmem:[%s1752 + $0x280] sm:$0xff]
        %v1834 = vld [vmem:[%s1752 + $0x288] sm:$0xff]
        %v1835 = vld [vmem:[%s1752 + $0x290] sm:$0xff]
        %v1836 = vld [vmem:[%s1752 + $0x298] sm:$0xff]
        %v1837 = vld [vmem:[%s1752 + $0x2a0] sm:$0xff]
        %v1838 = vld [vmem:[%s1752 + $0x2a8] sm:$0xff]
        %v1839 = vld [vmem:[%s1752 + $0x2b0] sm:$0xff]
        %v1840 = vld [vmem:[%s1752 + $0x2b8] sm:$0xff]
        %v1841 = vld [vmem:[%s1752 + $0x2c0] sm:$0xff]
        %v1842 = vld [vmem:[%s1752 + $0x2c8] sm:$0xff]
        %v1843 = vld [vmem:[%s1752 + $0x2d0] sm:$0xff]
        %v1844 = vld [vmem:[%s1752 + $0x2d8] sm:$0xff]
        %v1845 = vld [vmem:[%s1752 + $0x2e0] sm:$0xff]
        %v1846 = vld [vmem:[%s1752 + $0x2e8] sm:$0xff]
        %v1847 = vld [vmem:[%s1752 + $0x2f0] sm:$0xff]
        %v1848 = vld [vmem:[%s1752 + $0x2f8] sm:$0xff]
        %v1849 = vld [vmem:[%s1752 + $0x300] sm:$0xff]
        %v1850 = vld [vmem:[%s1752 + $0x308] sm:$0xff]
        %v1851 = vrot.slane %v565, 3
        %v1852 = vrot.slane %v566, 3
        %v1853 = vrot.slane %v567, 3
        %v1854 = vrot.slane %v568, 3
        %v1855 = vrot.slane %v569, 3
        %v1856 = vrot.slane %v570, 3
        %v1857 = vrot.slane %v571, 3
        %v1864 = vsel %vm671, %v1857, 0
        %1866 = vmatprep.subr.mxu0 0.0
        %1867 = vmatpush1.msra.mxu0 %v1753
        %1868 = vmatprep.subr.mxu0 0.0
        %1869 = vmatpush1.msra.mxu0 %v1754
        %1870 = vmatprep.subr.mxu0 0.0
        %1871 = vmatpush1.msra.mxu0 %v1755
        %1872 = vmatprep.subr.mxu0 0.0
        %1873 = vmatpush1.msra.mxu0 %v1756
        %1874 = vmatprep.subr.mxu0 0.0
        %1875 = vmatpush1.msra.mxu0 %v1757
        %1876 = vmatprep.subr.mxu0 0.0
        %1877 = vmatpush1.msra.mxu0 %v1758
        %1878 = vmatprep.subr.mxu0 0.0
        %1879 = vmatpush1.msra.mxu0 %v1759
        %1880 = vmatprep.subr.mxu0 0.0
        %1881 = vmatpush1.msra.mxu0 %v1760
        %1882 = vmatprep.subr.mxu0 0.0
        %1883 = vmatpush1.msra.mxu0 %v1761
        %1884 = vmatprep.subr.mxu0 0.0
        %1885 = vmatpush1.msra.mxu0 %v1762
        %1886 = vmatprep.subr.mxu0 0.0
        %1887 = vmatpush1.msra.mxu0 %v1763
        %1888 = vmatprep.subr.mxu0 0.0
        %1889 = vmatpush1.msra.mxu0 %v1764
        %1890 = vmatprep.subr.mxu0 0.0
        %1891 = vmatpush1.msra.mxu0 %v1765
        %1892 = vmatprep.subr.mxu0 0.0
        %1893 = vmatpush1.msra.mxu0 %v1766
        %1894 = vmatprep.subr.mxu0 0.0
        %1895 = vmatpush1.msra.mxu0 %v1767
        %1896 = vmatprep.subr.mxu0 0.0
        %1897 = vmatpush1.msra.mxu0 %v1768
        %1898 = vmatprep.subr.mxu0 0.0
        %1899 = vmatpush1.msra.mxu0 %v1769
        %1900 = vmatprep.subr.mxu0 0.0
        %1901 = vmatpush1.msra.mxu0 %v1770
        %1902 = vmatprep.subr.mxu0 0.0
        %1903 = vmatpush1.msra.mxu0 %v1771
        %1904 = vmatprep.subr.mxu0 0.0
        %1905 = vmatpush1.msra.mxu0 %v1772
        %1906 = vmatprep.subr.mxu0 0.0
        %1907 = vmatpush1.msra.mxu0 %v1773
        %1908 = vmatprep.subr.mxu0 0.0
        %1909 = vmatpush1.msra.mxu0 %v1774
        %1910 = vmatprep.subr.mxu0 0.0
        %1911 = vmatpush1.msra.mxu0 %v1775
        %1912 = vmatprep.subr.mxu0 0.0
        %1913 = vmatpush1.msra.mxu0 %v1776
        %1914 = vmatprep.subr.mxu0 0.0
        %1915 = vmatpush1.msra.mxu0 %v1777
        %1916 = vmatprep.subr.mxu0 0.0
        %1917 = vmatpush1.msra.mxu0 %v1778
        %1918 = vmatprep.subr.mxu0 0.0
        %1919 = vmatpush1.msra.mxu0 %v1779
        %1920 = vmatprep.subr.mxu0 0.0
        %1921 = vmatpush1.msra.mxu0 %v1780
        %1922 = vmatprep.subr.mxu0 0.0
        %1923 = vmatpush1.msra.mxu0 %v1781
        %1924 = vmatprep.subr.mxu0 0.0
        %1925 = vmatpush1.msra.mxu0 %v1782
        %1926 = vmatprep.subr.mxu0 0.0
        %1927 = vmatpush1.msra.mxu0 %v1783
        %1928 = vmatprep.subr.mxu0 0.0
        %1929 = vmatpush1.msra.mxu0 %v1784
        %1930 = vmatprep.mubr.f32.mxu0 %v1852
        %1931 = vmatmul.mubr.f32.gmra.mrb[0].mxu0 %v1851
        %v1932 = vpop.f32.mrb[0].mxu0
        %v1933 = vadd.f32 0.0, %v1932
        %v1934 = vpop.f32.mrb[0].mxu0
        %1935 = vdwg.mxu0
        %1936 = vmatprep.subr.mxu0 0.0
        %1937 = vmatpush1.msra.mxu0 %v1785
        %1938 = vmatprep.subr.mxu0 0.0
        %1939 = vmatpush1.msra.mxu0 %v1786
        %1940 = vmatprep.subr.mxu0 0.0
        %1941 = vmatpush1.msra.mxu0 %v1787
        %1942 = vmatprep.subr.mxu0 0.0
        %1943 = vmatpush1.msra.mxu0 %v1788
        %1944 = vmatprep.subr.mxu0 0.0
        %1945 = vmatpush1.msra.mxu0 %v1789
        %1946 = vmatprep.subr.mxu0 0.0
        %1947 = vmatpush1.msra.mxu0 %v1790
        %1948 = vmatprep.subr.mxu0 0.0
        %1949 = vmatpush1.msra.mxu0 %v1791
        %1950 = vmatprep.subr.mxu0 0.0
        %1951 = vmatpush1.msra.mxu0 %v1792
        %1952 = vmatprep.subr.mxu0 0.0
        %1953 = vmatpush1.msra.mxu0 %v1793
        %1954 = vmatprep.subr.mxu0 0.0
        %1955 = vmatpush1.msra.mxu0 %v1794
        %1956 = vmatprep.subr.mxu0 0.0
        %1957 = vmatpush1.msra.mxu0 %v1795
        %1958 = vmatprep.subr.mxu0 0.0
        %1959 = vmatpush1.msra.mxu0 %v1796
        %1960 = vmatprep.subr.mxu0 0.0
        %1961 = vmatpush1.msra.mxu0 %v1797
        %1962 = vmatprep.subr.mxu0 0.0
        %1963 = vmatpush1.msra.mxu0 %v1798
        %1964 = vmatprep.subr.mxu0 0.0
        %1965 = vmatpush1.msra.mxu0 %v1799
        %1966 = vmatprep.subr.mxu0 0.0
        %1967 = vmatpush1.msra.mxu0 %v1800
        %1968 = vmatprep.subr.mxu0 0.0
        %1969 = vmatpush1.msra.mxu0 %v1801
        %1970 = vmatprep.subr.mxu0 0.0
        %1971 = vmatpush1.msra.mxu0 %v1802
        %1972 = vmatprep.subr.mxu0 0.0
        %1973 = vmatpush1.msra.mxu0 %v1803
        %1974 = vmatprep.subr.mxu0 0.0
        %1975 = vmatpush1.msra.mxu0 %v1804
        %1976 = vmatprep.subr.mxu0 0.0
        %1977 = vmatpush1.msra.mxu0 %v1805
        %1978 = vmatprep.subr.mxu0 0.0
        %1979 = vmatpush1.msra.mxu0 %v1806
        %1980 = vmatprep.subr.mxu0 0.0
        %1981 = vmatpush1.msra.mxu0 %v1807
        %1982 = vmatprep.subr.mxu0 0.0
        %1983 = vmatpush1.msra.mxu0 %v1808
        %1984 = vmatprep.subr.mxu0 0.0
        %1985 = vmatpush1.msra.mxu0 %v1809
        %1986 = vmatprep.subr.mxu0 0.0
        %1987 = vmatpush1.msra.mxu0 %v1810
        %1988 = vmatprep.subr.mxu0 0.0
        %1989 = vmatpush1.msra.mxu0 %v1811
        %1990 = vmatprep.subr.mxu0 0.0
        %1991 = vmatpush1.msra.mxu0 %v1812
        %1992 = vmatprep.subr.mxu0 0.0
        %1993 = vmatpush1.msra.mxu0 %v1813
        %1994 = vmatprep.subr.mxu0 0.0
        %1995 = vmatpush1.msra.mxu0 %v1814
        %1996 = vmatprep.subr.mxu0 0.0
        %1997 = vmatpush1.msra.mxu0 %v1815
        %1998 = vmatprep.subr.mxu0 0.0
        %1999 = vmatpush1.msra.mxu0 %v1816
        %2000 = vmatprep.mubr.f32.mxu0 %v1854
        %2001 = vmatmul.mubr.f32.gmra.mrb[0].mxu0 %v1853
        %v2002 = vpop.f32.mrb[0].mxu0
        %v2003 = vadd.f32 %v1933, %v2002
        %v2004 = vpop.f32.mrb[0].mxu0
        %2005 = vdwg.mxu0
        %2006 = vmatprep.subr.mxu0 0.0
        %2007 = vmatpush1.msra.mxu0 %v1817
        %2008 = vmatprep.subr.mxu0 0.0
        %2009 = vmatpush1.msra.mxu0 %v1818
        %2010 = vmatprep.subr.mxu0 0.0
        %2011 = vmatpush1.msra.mxu0 %v1819
        %2012 = vmatprep.subr.mxu0 0.0
        %2013 = vmatpush1.msra.mxu0 %v1820
        %2014 = vmatprep.subr.mxu0 0.0
        %2015 = vmatpush1.msra.mxu0 %v1821
        %2016 = vmatprep.subr.mxu0 0.0
        %2017 = vmatpush1.msra.mxu0 %v1822
        %2018 = vmatprep.subr.mxu0 0.0
        %2019 = vmatpush1.msra.mxu0 %v1823
        %2020 = vmatprep.subr.mxu0 0.0
        %2021 = vmatpush1.msra.mxu0 %v1824
        %2022 = vmatprep.subr.mxu0 0.0
        %2023 = vmatpush1.msra.mxu0 %v1825
        %2024 = vmatprep.subr.mxu0 0.0
        %2025 = vmatpush1.msra.mxu0 %v1826
        %2026 = vmatprep.subr.mxu0 0.0
        %2027 = vmatpush1.msra.mxu0 %v1827
        %2028 = vmatprep.subr.mxu0 0.0
        %2029 = vmatpush1.msra.mxu0 %v1828
        %2030 = vmatprep.subr.mxu0 0.0
        %2031 = vmatpush1.msra.mxu0 %v1829
        %2032 = vmatprep.subr.mxu0 0.0
        %2033 = vmatpush1.msra.mxu0 %v1830
        %2034 = vmatprep.subr.mxu0 0.0
        %2035 = vmatpush1.msra.mxu0 %v1831
        %2036 = vmatprep.subr.mxu0 0.0
        %2037 = vmatpush1.msra.mxu0 %v1832
        %2038 = vmatprep.subr.mxu0 0.0
        %2039 = vmatpush1.msra.mxu0 %v1833
        %2040 = vmatprep.subr.mxu0 0.0
        %2041 = vmatpush1.msra.mxu0 %v1834
        %2042 = vmatprep.subr.mxu0 0.0
        %2043 = vmatpush1.msra.mxu0 %v1835
        %2044 = vmatprep.subr.mxu0 0.0
        %2045 = vmatpush1.msra.mxu0 %v1836
        %2046 = vmatprep.subr.mxu0 0.0
        %2047 = vmatpush1.msra.mxu0 %v1837
        %2048 = vmatprep.subr.mxu0 0.0
        %2049 = vmatpush1.msra.mxu0 %v1838
        %2050 = vmatprep.subr.mxu0 0.0
        %2051 = vmatpush1.msra.mxu0 %v1839
        %2052 = vmatprep.subr.mxu0 0.0
        %2053 = vmatpush1.msra.mxu0 %v1840
        %2054 = vmatprep.subr.mxu0 0.0
        %2055 = vmatpush1.msra.mxu0 %v1841
        %2056 = vmatprep.subr.mxu0 0.0
        %2057 = vmatpush1.msra.mxu0 %v1842
        %2058 = vmatprep.subr.mxu0 0.0
        %2059 = vmatpush1.msra.mxu0 %v1843
        %2060 = vmatprep.subr.mxu0 0.0
        %2061 = vmatpush1.msra.mxu0 %v1844
        %2062 = vmatprep.subr.mxu0 0.0
        %2063 = vmatpush1.msra.mxu0 %v1845
        %2064 = vmatprep.subr.mxu0 0.0
        %2065 = vmatpush1.msra.mxu0 %v1846
        %2066 = vmatprep.subr.mxu0 0.0
        %2067 = vmatpush1.msra.mxu0 %v1847
        %2068 = vmatprep.subr.mxu0 0.0
        %2069 = vmatpush1.msra.mxu0 %v1848
        %2070 = vmatprep.mubr.f32.mxu0 %v1856
        %2071 = vmatmul.mubr.f32.gmra.mrb[0].mxu0 %v1855
        %v2072 = vpop.f32.mrb[0].mxu0
        %v2073 = vadd.f32 %v2003, %v2072
        %v2074 = vpop.f32.mrb[0].mxu0
        %2075 = vdwg.mxu0
        %2076 = vmatprep.subr.mxu0 0.0
        %2077 = vmatpush1.msra.mxu0 %v1849
        %2078 = vmatprep.subr.mxu0 0.0
        %2079 = vmatpush1.msra.mxu0 %v1850
        %2080 = vmatprep.subr.mxu0 0.0
        %2081 = vmatpush1.msra.mxu0 0.0
        %2082 = vmatprep.subr.mxu0 0.0
        %2083 = vmatpush1.msra.mxu0 0.0
        %2084 = vmatprep.subr.mxu0 0.0
        %2085 = vmatpush1.msra.mxu0 0.0
        %2086 = vmatprep.subr.mxu0 0.0
        %2087 = vmatpush1.msra.mxu0 0.0
        %2088 = vmatprep.subr.mxu0 0.0
        %2089 = vmatpush1.msra.mxu0 0.0
        %2090 = vmatprep.subr.mxu0 0.0
        %2091 = vmatpush1.msra.mxu0 0.0
        %2092 = vmatprep.subr.mxu0 0.0
        %2093 = vmatpush1.msra.mxu0 0.0
        %2094 = vmatprep.subr.mxu0 0.0
        %2095 = vmatpush1.msra.mxu0 0.0
        %2096 = vmatprep.subr.mxu0 0.0
        %2097 = vmatpush1.msra.mxu0 0.0
        %2098 = vmatprep.subr.mxu0 0.0
        %2099 = vmatpush1.msra.mxu0 0.0
        %2100 = vmatprep.subr.mxu0 0.0
        %2101 = vmatpush1.msra.mxu0 0.0
        %2102 = vmatprep.subr.mxu0 0.0
        %2103 = vmatpush1.msra.mxu0 0.0
        %2104 = vmatprep.subr.mxu0 0.0
        %2105 = vmatpush1.msra.mxu0 0.0
        %2106 = vmatprep.subr.mxu0 0.0
        %2107 = vmatpush1.msra.mxu0 0.0
        %2108 = vmatprep.subr.mxu0 0.0
        %2109 = vmatpush1.msra.mxu0 0.0
        %2110 = vmatprep.subr.mxu0 0.0
        %2111 = vmatpush1.msra.mxu0 0.0
        %2112 = vmatprep.subr.mxu0 0.0
        %2113 = vmatpush1.msra.mxu0 0.0
        %2114 = vmatprep.subr.mxu0 0.0
        %2115 = vmatpush1.msra.mxu0 0.0
        %2116 = vmatprep.subr.mxu0 0.0
        %2117 = vmatpush1.msra.mxu0 0.0
        %2118 = vmatprep.subr.mxu0 0.0
        %2119 = vmatpush1.msra.mxu0 0.0
        %2120 = vmatprep.subr.mxu0 0.0
        %2121 = vmatpush1.msra.mxu0 0.0
        %2122 = vmatprep.subr.mxu0 0.0
        %2123 = vmatpush1.msra.mxu0 0.0
        %2124 = vmatprep.subr.mxu0 0.0
        %2125 = vmatpush1.msra.mxu0 0.0
        %2126 = vmatprep.subr.mxu0 0.0
        %2127 = vmatpush1.msra.mxu0 0.0
        %2128 = vmatprep.subr.mxu0 0.0
        %2129 = vmatpush1.msra.mxu0 0.0
        %2130 = vmatprep.subr.mxu0 0.0
        %2131 = vmatpush1.msra.mxu0 0.0
        %2132 = vmatprep.subr.mxu0 0.0
        %2133 = vmatpush1.msra.mxu0 0.0
        %2134 = vmatprep.subr.mxu0 0.0
        %2135 = vmatpush1.msra.mxu0 0.0
        %2136 = vmatprep.subr.mxu0 0.0
        %2137 = vmatpush1.msra.mxu0 0.0
        %2138 = vmatprep.subr.mxu0 0.0
        %2139 = vmatpush1.msra.mxu0 0.0
        %2140 = vmatprep.mubr.f32.mxu0 0.0
        %2141 = vmatmul.mubr.f32.gmra.mrb[0].mxu0 %v1864
        %v2142 = vpop.f32.mrb[0].mxu0
        %v2143 = vadd.f32 %v2073, %v2142
        %v2144 = vpop.f32.mrb[0].mxu0
        %2145 = vdwg.mxu0
        %v2146 = vadd.f32 %v1751, %v2143
        %s2147 = scalar_lea.vmem %s2, 3136
        %v2148 = vld [vmem:[%s2147] sm:$0xff]
        %v2149 = vld [vmem:[%s2147 + $0x8] sm:$0xff]
        %v2150 = vld [vmem:[%s2147 + $0x10] sm:$0xff]
        %v2151 = vld [vmem:[%s2147 + $0x18] sm:$0xff]
        %v2152 = vld [vmem:[%s2147 + $0x20] sm:$0xff]
        %v2153 = vld [vmem:[%s2147 + $0x28] sm:$0xff]
        %v2154 = vld [vmem:[%s2147 + $0x30] sm:$0xff]
        %v2155 = vld [vmem:[%s2147 + $0x38] sm:$0xff]
        %v2156 = vld [vmem:[%s2147 + $0x40] sm:$0xff]
        %v2157 = vld [vmem:[%s2147 + $0x48] sm:$0xff]
        %v2158 = vld [vmem:[%s2147 + $0x50] sm:$0xff]
        %v2159 = vld [vmem:[%s2147 + $0x58] sm:$0xff]
        %v2160 = vld [vmem:[%s2147 + $0x60] sm:$0xff]
        %v2161 = vld [vmem:[%s2147 + $0x68] sm:$0xff]
        %v2162 = vld [vmem:[%s2147 + $0x70] sm:$0xff]
        %v2163 = vld [vmem:[%s2147 + $0x78] sm:$0xff]
        %v2164 = vld [vmem:[%s2147 + $0x80] sm:$0xff]
        %v2165 = vld [vmem:[%s2147 + $0x88] sm:$0xff]
        %v2166 = vld [vmem:[%s2147 + $0x90] sm:$0xff]
        %v2167 = vld [vmem:[%s2147 + $0x98] sm:$0xff]
        %v2168 = vld [vmem:[%s2147 + $0xa0] sm:$0xff]
        %v2169 = vld [vmem:[%s2147 + $0xa8] sm:$0xff]
        %v2170 = vld [vmem:[%s2147 + $0xb0] sm:$0xff]
        %v2171 = vld [vmem:[%s2147 + $0xb8] sm:$0xff]
        %v2172 = vld [vmem:[%s2147 + $0xc0] sm:$0xff]
        %v2173 = vld [vmem:[%s2147 + $0xc8] sm:$0xff]
        %v2174 = vld [vmem:[%s2147 + $0xd0] sm:$0xff]
        %v2175 = vld [vmem:[%s2147 + $0xd8] sm:$0xff]
        %v2176 = vld [vmem:[%s2147 + $0xe0] sm:$0xff]
        %v2177 = vld [vmem:[%s2147 + $0xe8] sm:$0xff]
        %v2178 = vld [vmem:[%s2147 + $0xf0] sm:$0xff]
        %v2179 = vld [vmem:[%s2147 + $0xf8] sm:$0xff]
        %v2180 = vld [vmem:[%s2147 + $0x100] sm:$0xff]
        %v2181 = vld [vmem:[%s2147 + $0x108] sm:$0xff]
        %v2182 = vld [vmem:[%s2147 + $0x110] sm:$0xff]
        %v2183 = vld [vmem:[%s2147 + $0x118] sm:$0xff]
        %v2184 = vld [vmem:[%s2147 + $0x120] sm:$0xff]
        %v2185 = vld [vmem:[%s2147 + $0x128] sm:$0xff]
        %v2186 = vld [vmem:[%s2147 + $0x130] sm:$0xff]
        %v2187 = vld [vmem:[%s2147 + $0x138] sm:$0xff]
        %v2188 = vld [vmem:[%s2147 + $0x140] sm:$0xff]
        %v2189 = vld [vmem:[%s2147 + $0x148] sm:$0xff]
        %v2190 = vld [vmem:[%s2147 + $0x150] sm:$0xff]
        %v2191 = vld [vmem:[%s2147 + $0x158] sm:$0xff]
        %v2192 = vld [vmem:[%s2147 + $0x160] sm:$0xff]
        %v2193 = vld [vmem:[%s2147 + $0x168] sm:$0xff]
        %v2194 = vld [vmem:[%s2147 + $0x170] sm:$0xff]
        %v2195 = vld [vmem:[%s2147 + $0x178] sm:$0xff]
        %v2196 = vld [vmem:[%s2147 + $0x180] sm:$0xff]
        %v2197 = vld [vmem:[%s2147 + $0x188] sm:$0xff]
        %v2198 = vld [vmem:[%s2147 + $0x190] sm:$0xff]
        %v2199 = vld [vmem:[%s2147 + $0x198] sm:$0xff]
        %v2200 = vld [vmem:[%s2147 + $0x1a0] sm:$0xff]
        %v2201 = vld [vmem:[%s2147 + $0x1a8] sm:$0xff]
        %v2202 = vld [vmem:[%s2147 + $0x1b0] sm:$0xff]
        %v2203 = vld [vmem:[%s2147 + $0x1b8] sm:$0xff]
        %v2204 = vld [vmem:[%s2147 + $0x1c0] sm:$0xff]
        %v2205 = vld [vmem:[%s2147 + $0x1c8] sm:$0xff]
        %v2206 = vld [vmem:[%s2147 + $0x1d0] sm:$0xff]
        %v2207 = vld [vmem:[%s2147 + $0x1d8] sm:$0xff]
        %v2208 = vld [vmem:[%s2147 + $0x1e0] sm:$0xff]
        %v2209 = vld [vmem:[%s2147 + $0x1e8] sm:$0xff]
        %v2210 = vld [vmem:[%s2147 + $0x1f0] sm:$0xff]
        %v2211 = vld [vmem:[%s2147 + $0x1f8] sm:$0xff]
        %v2212 = vld [vmem:[%s2147 + $0x200] sm:$0xff]
        %v2213 = vld [vmem:[%s2147 + $0x208] sm:$0xff]
        %v2214 = vld [vmem:[%s2147 + $0x210] sm:$0xff]
        %v2215 = vld [vmem:[%s2147 + $0x218] sm:$0xff]
        %v2216 = vld [vmem:[%s2147 + $0x220] sm:$0xff]
        %v2217 = vld [vmem:[%s2147 + $0x228] sm:$0xff]
        %v2218 = vld [vmem:[%s2147 + $0x230] sm:$0xff]
        %v2219 = vld [vmem:[%s2147 + $0x238] sm:$0xff]
        %v2220 = vld [vmem:[%s2147 + $0x240] sm:$0xff]
        %v2221 = vld [vmem:[%s2147 + $0x248] sm:$0xff]
        %v2222 = vld [vmem:[%s2147 + $0x250] sm:$0xff]
        %v2223 = vld [vmem:[%s2147 + $0x258] sm:$0xff]
        %v2224 = vld [vmem:[%s2147 + $0x260] sm:$0xff]
        %v2225 = vld [vmem:[%s2147 + $0x268] sm:$0xff]
        %v2226 = vld [vmem:[%s2147 + $0x270] sm:$0xff]
        %v2227 = vld [vmem:[%s2147 + $0x278] sm:$0xff]
        %v2228 = vld [vmem:[%s2147 + $0x280] sm:$0xff]
        %v2229 = vld [vmem:[%s2147 + $0x288] sm:$0xff]
        %v2230 = vld [vmem:[%s2147 + $0x290] sm:$0xff]
        %v2231 = vld [vmem:[%s2147 + $0x298] sm:$0xff]
        %v2232 = vld [vmem:[%s2147 + $0x2a0] sm:$0xff]
        %v2233 = vld [vmem:[%s2147 + $0x2a8] sm:$0xff]
        %v2234 = vld [vmem:[%s2147 + $0x2b0] sm:$0xff]
        %v2235 = vld [vmem:[%s2147 + $0x2b8] sm:$0xff]
        %v2236 = vld [vmem:[%s2147 + $0x2c0] sm:$0xff]
        %v2237 = vld [vmem:[%s2147 + $0x2c8] sm:$0xff]
        %v2238 = vld [vmem:[%s2147 + $0x2d0] sm:$0xff]
        %v2239 = vld [vmem:[%s2147 + $0x2d8] sm:$0xff]
        %v2240 = vld [vmem:[%s2147 + $0x2e0] sm:$0xff]
        %v2241 = vld [vmem:[%s2147 + $0x2e8] sm:$0xff]
        %v2242 = vld [vmem:[%s2147 + $0x2f0] sm:$0xff]
        %v2243 = vld [vmem:[%s2147 + $0x2f8] sm:$0xff]
        %v2244 = vld [vmem:[%s2147 + $0x300] sm:$0xff]
        %v2245 = vld [vmem:[%s2147 + $0x308] sm:$0xff]
        %v2246 = vrot.slane %v565, 4
        %v2247 = vrot.slane %v566, 4
        %v2248 = vrot.slane %v567, 4
        %v2249 = vrot.slane %v568, 4
        %v2250 = vrot.slane %v569, 4
        %v2251 = vrot.slane %v570, 4
        %v2252 = vrot.slane %v571, 4
        %v2259 = vsel %vm671, %v2252, 0
        %2261 = vmatprep.subr.mxu0 0.0
        %2262 = vmatpush1.msra.mxu0 %v2148
        %2263 = vmatprep.subr.mxu0 0.0
        %2264 = vmatpush1.msra.mxu0 %v2149
        %2265 = vmatprep.subr.mxu0 0.0
        %2266 = vmatpush1.msra.mxu0 %v2150
        %2267 = vmatprep.subr.mxu0 0.0
        %2268 = vmatpush1.msra.mxu0 %v2151
        %2269 = vmatprep.subr.mxu0 0.0
        %2270 = vmatpush1.msra.mxu0 %v2152
        %2271 = vmatprep.subr.mxu0 0.0
        %2272 = vmatpush1.msra.mxu0 %v2153
        %2273 = vmatprep.subr.mxu0 0.0
        %2274 = vmatpush1.msra.mxu0 %v2154
        %2275 = vmatprep.subr.mxu0 0.0
        %2276 = vmatpush1.msra.mxu0 %v2155
        %2277 = vmatprep.subr.mxu0 0.0
        %2278 = vmatpush1.msra.mxu0 %v2156
        %2279 = vmatprep.subr.mxu0 0.0
        %2280 = vmatpush1.msra.mxu0 %v2157
        %2281 = vmatprep.subr.mxu0 0.0
        %2282 = vmatpush1.msra.mxu0 %v2158
        %2283 = vmatprep.subr.mxu0 0.0
        %2284 = vmatpush1.msra.mxu0 %v2159
        %2285 = vmatprep.subr.mxu0 0.0
        %2286 = vmatpush1.msra.mxu0 %v2160
        %2287 = vmatprep.subr.mxu0 0.0
        %2288 = vmatpush1.msra.mxu0 %v2161
        %2289 = vmatprep.subr.mxu0 0.0
        %2290 = vmatpush1.msra.mxu0 %v2162
        %2291 = vmatprep.subr.mxu0 0.0
        %2292 = vmatpush1.msra.mxu0 %v2163
        %2293 = vmatprep.subr.mxu0 0.0
        %2294 = vmatpush1.msra.mxu0 %v2164
        %2295 = vmatprep.subr.mxu0 0.0
        %2296 = vmatpush1.msra.mxu0 %v2165
        %2297 = vmatprep.subr.mxu0 0.0
        %2298 = vmatpush1.msra.mxu0 %v2166
        %2299 = vmatprep.subr.mxu0 0.0
        %2300 = vmatpush1.msra.mxu0 %v2167
        %2301 = vmatprep.subr.mxu0 0.0
        %2302 = vmatpush1.msra.mxu0 %v2168
        %2303 = vmatprep.subr.mxu0 0.0
        %2304 = vmatpush1.msra.mxu0 %v2169
        %2305 = vmatprep.subr.mxu0 0.0
        %2306 = vmatpush1.msra.mxu0 %v2170
        %2307 = vmatprep.subr.mxu0 0.0
        %2308 = vmatpush1.msra.mxu0 %v2171
        %2309 = vmatprep.subr.mxu0 0.0
        %2310 = vmatpush1.msra.mxu0 %v2172
        %2311 = vmatprep.subr.mxu0 0.0
        %2312 = vmatpush1.msra.mxu0 %v2173
        %2313 = vmatprep.subr.mxu0 0.0
        %2314 = vmatpush1.msra.mxu0 %v2174
        %2315 = vmatprep.subr.mxu0 0.0
        %2316 = vmatpush1.msra.mxu0 %v2175
        %2317 = vmatprep.subr.mxu0 0.0
        %2318 = vmatpush1.msra.mxu0 %v2176
        %2319 = vmatprep.subr.mxu0 0.0
        %2320 = vmatpush1.msra.mxu0 %v2177
        %2321 = vmatprep.subr.mxu0 0.0
        %2322 = vmatpush1.msra.mxu0 %v2178
        %2323 = vmatprep.subr.mxu0 0.0
        %2324 = vmatpush1.msra.mxu0 %v2179
        %2325 = vmatprep.mubr.f32.mxu0 %v2247
        %2326 = vmatmul.mubr.f32.gmra.mrb[0].mxu0 %v2246
        %v2327 = vpop.f32.mrb[0].mxu0
        %v2328 = vadd.f32 0.0, %v2327
        %v2329 = vpop.f32.mrb[0].mxu0
        %2330 = vdwg.mxu0
        %2331 = vmatprep.subr.mxu0 0.0
        %2332 = vmatpush1.msra.mxu0 %v2180
        %2333 = vmatprep.subr.mxu0 0.0
        %2334 = vmatpush1.msra.mxu0 %v2181
        %2335 = vmatprep.subr.mxu0 0.0
        %2336 = vmatpush1.msra.mxu0 %v2182
        %2337 = vmatprep.subr.mxu0 0.0
        %2338 = vmatpush1.msra.mxu0 %v2183
        %2339 = vmatprep.subr.mxu0 0.0
        %2340 = vmatpush1.msra.mxu0 %v2184
        %2341 = vmatprep.subr.mxu0 0.0
        %2342 = vmatpush1.msra.mxu0 %v2185
        %2343 = vmatprep.subr.mxu0 0.0
        %2344 = vmatpush1.msra.mxu0 %v2186
        %2345 = vmatprep.subr.mxu0 0.0
        %2346 = vmatpush1.msra.mxu0 %v2187
        %2347 = vmatprep.subr.mxu0 0.0
        %2348 = vmatpush1.msra.mxu0 %v2188
        %2349 = vmatprep.subr.mxu0 0.0
        %2350 = vmatpush1.msra.mxu0 %v2189
        %2351 = vmatprep.subr.mxu0 0.0
        %2352 = vmatpush1.msra.mxu0 %v2190
        %2353 = vmatprep.subr.mxu0 0.0
        %2354 = vmatpush1.msra.mxu0 %v2191
        %2355 = vmatprep.subr.mxu0 0.0
        %2356 = vmatpush1.msra.mxu0 %v2192
        %2357 = vmatprep.subr.mxu0 0.0
        %2358 = vmatpush1.msra.mxu0 %v2193
        %2359 = vmatprep.subr.mxu0 0.0
        %2360 = vmatpush1.msra.mxu0 %v2194
        %2361 = vmatprep.subr.mxu0 0.0
        %2362 = vmatpush1.msra.mxu0 %v2195
        %2363 = vmatprep.subr.mxu0 0.0
        %2364 = vmatpush1.msra.mxu0 %v2196
        %2365 = vmatprep.subr.mxu0 0.0
        %2366 = vmatpush1.msra.mxu0 %v2197
        %2367 = vmatprep.subr.mxu0 0.0
        %2368 = vmatpush1.msra.mxu0 %v2198
        %2369 = vmatprep.subr.mxu0 0.0
        %2370 = vmatpush1.msra.mxu0 %v2199
        %2371 = vmatprep.subr.mxu0 0.0
        %2372 = vmatpush1.msra.mxu0 %v2200
        %2373 = vmatprep.subr.mxu0 0.0
        %2374 = vmatpush1.msra.mxu0 %v2201
        %2375 = vmatprep.subr.mxu0 0.0
        %2376 = vmatpush1.msra.mxu0 %v2202
        %2377 = vmatprep.subr.mxu0 0.0
        %2378 = vmatpush1.msra.mxu0 %v2203
        %2379 = vmatprep.subr.mxu0 0.0
        %2380 = vmatpush1.msra.mxu0 %v2204
        %2381 = vmatprep.subr.mxu0 0.0
        %2382 = vmatpush1.msra.mxu0 %v2205
        %2383 = vmatprep.subr.mxu0 0.0
        %2384 = vmatpush1.msra.mxu0 %v2206
        %2385 = vmatprep.subr.mxu0 0.0
        %2386 = vmatpush1.msra.mxu0 %v2207
        %2387 = vmatprep.subr.mxu0 0.0
        %2388 = vmatpush1.msra.mxu0 %v2208
        %2389 = vmatprep.subr.mxu0 0.0
        %2390 = vmatpush1.msra.mxu0 %v2209
        %2391 = vmatprep.subr.mxu0 0.0
        %2392 = vmatpush1.msra.mxu0 %v2210
        %2393 = vmatprep.subr.mxu0 0.0
        %2394 = vmatpush1.msra.mxu0 %v2211
        %2395 = vmatprep.mubr.f32.mxu0 %v2249
        %2396 = vmatmul.mubr.f32.gmra.mrb[0].mxu0 %v2248
        %v2397 = vpop.f32.mrb[0].mxu0
        %v2398 = vadd.f32 %v2328, %v2397
        %v2399 = vpop.f32.mrb[0].mxu0
        %2400 = vdwg.mxu0
        %2401 = vmatprep.subr.mxu0 0.0
        %2402 = vmatpush1.msra.mxu0 %v2212
        %2403 = vmatprep.subr.mxu0 0.0
        %2404 = vmatpush1.msra.mxu0 %v2213
        %2405 = vmatprep.subr.mxu0 0.0
        %2406 = vmatpush1.msra.mxu0 %v2214
        %2407 = vmatprep.subr.mxu0 0.0
        %2408 = vmatpush1.msra.mxu0 %v2215
        %2409 = vmatprep.subr.mxu0 0.0
        %2410 = vmatpush1.msra.mxu0 %v2216
        %2411 = vmatprep.subr.mxu0 0.0
        %2412 = vmatpush1.msra.mxu0 %v2217
        %2413 = vmatprep.subr.mxu0 0.0
        %2414 = vmatpush1.msra.mxu0 %v2218
        %2415 = vmatprep.subr.mxu0 0.0
        %2416 = vmatpush1.msra.mxu0 %v2219
        %2417 = vmatprep.subr.mxu0 0.0
        %2418 = vmatpush1.msra.mxu0 %v2220
        %2419 = vmatprep.subr.mxu0 0.0
        %2420 = vmatpush1.msra.mxu0 %v2221
        %2421 = vmatprep.subr.mxu0 0.0
        %2422 = vmatpush1.msra.mxu0 %v2222
        %2423 = vmatprep.subr.mxu0 0.0
        %2424 = vmatpush1.msra.mxu0 %v2223
        %2425 = vmatprep.subr.mxu0 0.0
        %2426 = vmatpush1.msra.mxu0 %v2224
        %2427 = vmatprep.subr.mxu0 0.0
        %2428 = vmatpush1.msra.mxu0 %v2225
        %2429 = vmatprep.subr.mxu0 0.0
        %2430 = vmatpush1.msra.mxu0 %v2226
        %2431 = vmatprep.subr.mxu0 0.0
        %2432 = vmatpush1.msra.mxu0 %v2227
        %2433 = vmatprep.subr.mxu0 0.0
        %2434 = vmatpush1.msra.mxu0 %v2228
        %2435 = vmatprep.subr.mxu0 0.0
        %2436 = vmatpush1.msra.mxu0 %v2229
        %2437 = vmatprep.subr.mxu0 0.0
        %2438 = vmatpush1.msra.mxu0 %v2230
        %2439 = vmatprep.subr.mxu0 0.0
        %2440 = vmatpush1.msra.mxu0 %v2231
        %2441 = vmatprep.subr.mxu0 0.0
        %2442 = vmatpush1.msra.mxu0 %v2232
        %2443 = vmatprep.subr.mxu0 0.0
        %2444 = vmatpush1.msra.mxu0 %v2233
        %2445 = vmatprep.subr.mxu0 0.0
        %2446 = vmatpush1.msra.mxu0 %v2234
        %2447 = vmatprep.subr.mxu0 0.0
        %2448 = vmatpush1.msra.mxu0 %v2235
        %2449 = vmatprep.subr.mxu0 0.0
        %2450 = vmatpush1.msra.mxu0 %v2236
        %2451 = vmatprep.subr.mxu0 0.0
        %2452 = vmatpush1.msra.mxu0 %v2237
        %2453 = vmatprep.subr.mxu0 0.0
        %2454 = vmatpush1.msra.mxu0 %v2238
        %2455 = vmatprep.subr.mxu0 0.0
        %2456 = vmatpush1.msra.mxu0 %v2239
        %2457 = vmatprep.subr.mxu0 0.0
        %2458 = vmatpush1.msra.mxu0 %v2240
        %2459 = vmatprep.subr.mxu0 0.0
        %2460 = vmatpush1.msra.mxu0 %v2241
        %2461 = vmatprep.subr.mxu0 0.0
        %2462 = vmatpush1.msra.mxu0 %v2242
        %2463 = vmatprep.subr.mxu0 0.0
        %2464 = vmatpush1.msra.mxu0 %v2243
        %2465 = vmatprep.mubr.f32.mxu0 %v2251
        %2466 = vmatmul.mubr.f32.gmra.mrb[0].mxu0 %v2250
        %v2467 = vpop.f32.mrb[0].mxu0
        %v2468 = vadd.f32 %v2398, %v2467
        %v2469 = vpop.f32.mrb[0].mxu0
        %2470 = vdwg.mxu0
        %2471 = vmatprep.subr.mxu0 0.0
        %2472 = vmatpush1.msra.mxu0 %v2244
        %2473 = vmatprep.subr.mxu0 0.0
        %2474 = vmatpush1.msra.mxu0 %v2245
        %2475 = vmatprep.subr.mxu0 0.0
        %2476 = vmatpush1.msra.mxu0 0.0
        %2477 = vmatprep.subr.mxu0 0.0
        %2478 = vmatpush1.msra.mxu0 0.0
        %2479 = vmatprep.subr.mxu0 0.0
        %2480 = vmatpush1.msra.mxu0 0.0
        %2481 = vmatprep.subr.mxu0 0.0
        %2482 = vmatpush1.msra.mxu0 0.0
        %2483 = vmatprep.subr.mxu0 0.0
        %2484 = vmatpush1.msra.mxu0 0.0
        %2485 = vmatprep.subr.mxu0 0.0
        %2486 = vmatpush1.msra.mxu0 0.0
        %2487 = vmatprep.subr.mxu0 0.0
        %2488 = vmatpush1.msra.mxu0 0.0
        %2489 = vmatprep.subr.mxu0 0.0
        %2490 = vmatpush1.msra.mxu0 0.0
        %2491 = vmatprep.subr.mxu0 0.0
        %2492 = vmatpush1.msra.mxu0 0.0
        %2493 = vmatprep.subr.mxu0 0.0
        %2494 = vmatpush1.msra.mxu0 0.0
        %2495 = vmatprep.subr.mxu0 0.0
        %2496 = vmatpush1.msra.mxu0 0.0
        %2497 = vmatprep.subr.mxu0 0.0
        %2498 = vmatpush1.msra.mxu0 0.0
        %2499 = vmatprep.subr.mxu0 0.0
        %2500 = vmatpush1.msra.mxu0 0.0
        %2501 = vmatprep.subr.mxu0 0.0
        %2502 = vmatpush1.msra.mxu0 0.0
        %2503 = vmatprep.subr.mxu0 0.0
        %2504 = vmatpush1.msra.mxu0 0.0
        %2505 = vmatprep.subr.mxu0 0.0
        %2506 = vmatpush1.msra.mxu0 0.0
        %2507 = vmatprep.subr.mxu0 0.0
        %2508 = vmatpush1.msra.mxu0 0.0
        %2509 = vmatprep.subr.mxu0 0.0
        %2510 = vmatpush1.msra.mxu0 0.0
        %2511 = vmatprep.subr.mxu0 0.0
        %2512 = vmatpush1.msra.mxu0 0.0
        %2513 = vmatprep.subr.mxu0 0.0
        %2514 = vmatpush1.msra.mxu0 0.0
        %2515 = vmatprep.subr.mxu0 0.0
        %2516 = vmatpush1.msra.mxu0 0.0
        %2517 = vmatprep.subr.mxu0 0.0
        %2518 = vmatpush1.msra.mxu0 0.0
        %2519 = vmatprep.subr.mxu0 0.0
        %2520 = vmatpush1.msra.mxu0 0.0
        %2521 = vmatprep.subr.mxu0 0.0
        %2522 = vmatpush1.msra.mxu0 0.0
        %2523 = vmatprep.subr.mxu0 0.0
        %2524 = vmatpush1.msra.mxu0 0.0
        %2525 = vmatprep.subr.mxu0 0.0
        %2526 = vmatpush1.msra.mxu0 0.0
        %2527 = vmatprep.subr.mxu0 0.0
        %2528 = vmatpush1.msra.mxu0 0.0
        %2529 = vmatprep.subr.mxu0 0.0
        %2530 = vmatpush1.msra.mxu0 0.0
        %2531 = vmatprep.subr.mxu0 0.0
        %2532 = vmatpush1.msra.mxu0 0.0
        %2533 = vmatprep.subr.mxu0 0.0
        %2534 = vmatpush1.msra.mxu0 0.0
        %2535 = vmatprep.mubr.f32.mxu0 0.0
        %2536 = vmatmul.mubr.f32.gmra.mrb[0].mxu0 %v2259
        %v2537 = vpop.f32.mrb[0].mxu0
        %v2538 = vadd.f32 %v2468, %v2537
        %v2539 = vpop.f32.mrb[0].mxu0
        %2540 = vdwg.mxu0
        %v2541 = vadd.f32 %v2146, %v2538
        %s2542 = scalar_lea.vmem %s2, 3920
        %v2543 = vld [vmem:[%s2542] sm:$0xff]
        %v2544 = vld [vmem:[%s2542 + $0x8] sm:$0xff]
        %v2545 = vld [vmem:[%s2542 + $0x10] sm:$0xff]
        %v2546 = vld [vmem:[%s2542 + $0x18] sm:$0xff]
        %v2547 = vld [vmem:[%s2542 + $0x20] sm:$0xff]
        %v2548 = vld [vmem:[%s2542 + $0x28] sm:$0xff]
        %v2549 = vld [vmem:[%s2542 + $0x30] sm:$0xff]
        %v2550 = vld [vmem:[%s2542 + $0x38] sm:$0xff]
        %v2551 = vld [vmem:[%s2542 + $0x40] sm:$0xff]
        %v2552 = vld [vmem:[%s2542 + $0x48] sm:$0xff]
        %v2553 = vld [vmem:[%s2542 + $0x50] sm:$0xff]
        %v2554 = vld [vmem:[%s2542 + $0x58] sm:$0xff]
        %v2555 = vld [vmem:[%s2542 + $0x60] sm:$0xff]
        %v2556 = vld [vmem:[%s2542 + $0x68] sm:$0xff]
        %v2557 = vld [vmem:[%s2542 + $0x70] sm:$0xff]
        %v2558 = vld [vmem:[%s2542 + $0x78] sm:$0xff]
        %v2559 = vld [vmem:[%s2542 + $0x80] sm:$0xff]
        %v2560 = vld [vmem:[%s2542 + $0x88] sm:$0xff]
        %v2561 = vld [vmem:[%s2542 + $0x90] sm:$0xff]
        %v2562 = vld [vmem:[%s2542 + $0x98] sm:$0xff]
        %v2563 = vld [vmem:[%s2542 + $0xa0] sm:$0xff]
        %v2564 = vld [vmem:[%s2542 + $0xa8] sm:$0xff]
        %v2565 = vld [vmem:[%s2542 + $0xb0] sm:$0xff]
        %v2566 = vld [vmem:[%s2542 + $0xb8] sm:$0xff]
        %v2567 = vld [vmem:[%s2542 + $0xc0] sm:$0xff]
        %v2568 = vld [vmem:[%s2542 + $0xc8] sm:$0xff]
        %v2569 = vld [vmem:[%s2542 + $0xd0] sm:$0xff]
        %v2570 = vld [vmem:[%s2542 + $0xd8] sm:$0xff]
        %v2571 = vld [vmem:[%s2542 + $0xe0] sm:$0xff]
        %v2572 = vld [vmem:[%s2542 + $0xe8] sm:$0xff]
        %v2573 = vld [vmem:[%s2542 + $0xf0] sm:$0xff]
        %v2574 = vld [vmem:[%s2542 + $0xf8] sm:$0xff]
        %v2575 = vld [vmem:[%s2542 + $0x100] sm:$0xff]
        %v2576 = vld [vmem:[%s2542 + $0x108] sm:$0xff]
        %v2577 = vld [vmem:[%s2542 + $0x110] sm:$0xff]
        %v2578 = vld [vmem:[%s2542 + $0x118] sm:$0xff]
        %v2579 = vld [vmem:[%s2542 + $0x120] sm:$0xff]
        %v2580 = vld [vmem:[%s2542 + $0x128] sm:$0xff]
        %v2581 = vld [vmem:[%s2542 + $0x130] sm:$0xff]
        %v2582 = vld [vmem:[%s2542 + $0x138] sm:$0xff]
        %v2583 = vld [vmem:[%s2542 + $0x140] sm:$0xff]
        %v2584 = vld [vmem:[%s2542 + $0x148] sm:$0xff]
        %v2585 = vld [vmem:[%s2542 + $0x150] sm:$0xff]
        %v2586 = vld [vmem:[%s2542 + $0x158] sm:$0xff]
        %v2587 = vld [vmem:[%s2542 + $0x160] sm:$0xff]
        %v2588 = vld [vmem:[%s2542 + $0x168] sm:$0xff]
        %v2589 = vld [vmem:[%s2542 + $0x170] sm:$0xff]
        %v2590 = vld [vmem:[%s2542 + $0x178] sm:$0xff]
        %v2591 = vld [vmem:[%s2542 + $0x180] sm:$0xff]
        %v2592 = vld [vmem:[%s2542 + $0x188] sm:$0xff]
        %v2593 = vld [vmem:[%s2542 + $0x190] sm:$0xff]
        %v2594 = vld [vmem:[%s2542 + $0x198] sm:$0xff]
        %v2595 = vld [vmem:[%s2542 + $0x1a0] sm:$0xff]
        %v2596 = vld [vmem:[%s2542 + $0x1a8] sm:$0xff]
        %v2597 = vld [vmem:[%s2542 + $0x1b0] sm:$0xff]
        %v2598 = vld [vmem:[%s2542 + $0x1b8] sm:$0xff]
        %v2599 = vld [vmem:[%s2542 + $0x1c0] sm:$0xff]
        %v2600 = vld [vmem:[%s2542 + $0x1c8] sm:$0xff]
        %v2601 = vld [vmem:[%s2542 + $0x1d0] sm:$0xff]
        %v2602 = vld [vmem:[%s2542 + $0x1d8] sm:$0xff]
        %v2603 = vld [vmem:[%s2542 + $0x1e0] sm:$0xff]
        %v2604 = vld [vmem:[%s2542 + $0x1e8] sm:$0xff]
        %v2605 = vld [vmem:[%s2542 + $0x1f0] sm:$0xff]
        %v2606 = vld [vmem:[%s2542 + $0x1f8] sm:$0xff]
        %v2607 = vld [vmem:[%s2542 + $0x200] sm:$0xff]
        %v2608 = vld [vmem:[%s2542 + $0x208] sm:$0xff]
        %v2609 = vld [vmem:[%s2542 + $0x210] sm:$0xff]
        %v2610 = vld [vmem:[%s2542 + $0x218] sm:$0xff]
        %v2611 = vld [vmem:[%s2542 + $0x220] sm:$0xff]
        %v2612 = vld [vmem:[%s2542 + $0x228] sm:$0xff]
        %v2613 = vld [vmem:[%s2542 + $0x230] sm:$0xff]
        %v2614 = vld [vmem:[%s2542 + $0x238] sm:$0xff]
        %v2615 = vld [vmem:[%s2542 + $0x240] sm:$0xff]
        %v2616 = vld [vmem:[%s2542 + $0x248] sm:$0xff]
        %v2617 = vld [vmem:[%s2542 + $0x250] sm:$0xff]
        %v2618 = vld [vmem:[%s2542 + $0x258] sm:$0xff]
        %v2619 = vld [vmem:[%s2542 + $0x260] sm:$0xff]
        %v2620 = vld [vmem:[%s2542 + $0x268] sm:$0xff]
        %v2621 = vld [vmem:[%s2542 + $0x270] sm:$0xff]
        %v2622 = vld [vmem:[%s2542 + $0x278] sm:$0xff]
        %v2623 = vld [vmem:[%s2542 + $0x280] sm:$0xff]
        %v2624 = vld [vmem:[%s2542 + $0x288] sm:$0xff]
        %v2625 = vld [vmem:[%s2542 + $0x290] sm:$0xff]
        %v2626 = vld [vmem:[%s2542 + $0x298] sm:$0xff]
        %v2627 = vld [vmem:[%s2542 + $0x2a0] sm:$0xff]
        %v2628 = vld [vmem:[%s2542 + $0x2a8] sm:$0xff]
        %v2629 = vld [vmem:[%s2542 + $0x2b0] sm:$0xff]
        %v2630 = vld [vmem:[%s2542 + $0x2b8] sm:$0xff]
        %v2631 = vld [vmem:[%s2542 + $0x2c0] sm:$0xff]
        %v2632 = vld [vmem:[%s2542 + $0x2c8] sm:$0xff]
        %v2633 = vld [vmem:[%s2542 + $0x2d0] sm:$0xff]
        %v2634 = vld [vmem:[%s2542 + $0x2d8] sm:$0xff]
        %v2635 = vld [vmem:[%s2542 + $0x2e0] sm:$0xff]
        %v2636 = vld [vmem:[%s2542 + $0x2e8] sm:$0xff]
        %v2637 = vld [vmem:[%s2542 + $0x2f0] sm:$0xff]
        %v2638 = vld [vmem:[%s2542 + $0x2f8] sm:$0xff]
        %v2639 = vld [vmem:[%s2542 + $0x300] sm:$0xff]
        %v2640 = vld [vmem:[%s2542 + $0x308] sm:$0xff]
        %v2641 = vrot.slane %v565, 5
        %v2642 = vrot.slane %v566, 5
        %v2643 = vrot.slane %v567, 5
        %v2644 = vrot.slane %v568, 5
        %v2645 = vrot.slane %v569, 5
        %v2646 = vrot.slane %v570, 5
        %v2647 = vrot.slane %v571, 5
        %v2654 = vsel %vm671, %v2647, 0
        %2656 = vmatprep.subr.mxu0 0.0
        %2657 = vmatpush1.msra.mxu0 %v2543
        %2658 = vmatprep.subr.mxu0 0.0
        %2659 = vmatpush1.msra.mxu0 %v2544
        %2660 = vmatprep.subr.mxu0 0.0
        %2661 = vmatpush1.msra.mxu0 %v2545
        %2662 = vmatprep.subr.mxu0 0.0
        %2663 = vmatpush1.msra.mxu0 %v2546
        %2664 = vmatprep.subr.mxu0 0.0
        %2665 = vmatpush1.msra.mxu0 %v2547
        %2666 = vmatprep.subr.mxu0 0.0
        %2667 = vmatpush1.msra.mxu0 %v2548
        %2668 = vmatprep.subr.mxu0 0.0
        %2669 = vmatpush1.msra.mxu0 %v2549
        %2670 = vmatprep.subr.mxu0 0.0
        %2671 = vmatpush1.msra.mxu0 %v2550
        %2672 = vmatprep.subr.mxu0 0.0
        %2673 = vmatpush1.msra.mxu0 %v2551
        %2674 = vmatprep.subr.mxu0 0.0
        %2675 = vmatpush1.msra.mxu0 %v2552
        %2676 = vmatprep.subr.mxu0 0.0
        %2677 = vmatpush1.msra.mxu0 %v2553
        %2678 = vmatprep.subr.mxu0 0.0
        %2679 = vmatpush1.msra.mxu0 %v2554
        %2680 = vmatprep.subr.mxu0 0.0
        %2681 = vmatpush1.msra.mxu0 %v2555
        %2682 = vmatprep.subr.mxu0 0.0
        %2683 = vmatpush1.msra.mxu0 %v2556
        %2684 = vmatprep.subr.mxu0 0.0
        %2685 = vmatpush1.msra.mxu0 %v2557
        %2686 = vmatprep.subr.mxu0 0.0
        %2687 = vmatpush1.msra.mxu0 %v2558
        %2688 = vmatprep.subr.mxu0 0.0
        %2689 = vmatpush1.msra.mxu0 %v2559
        %2690 = vmatprep.subr.mxu0 0.0
        %2691 = vmatpush1.msra.mxu0 %v2560
        %2692 = vmatprep.subr.mxu0 0.0
        %2693 = vmatpush1.msra.mxu0 %v2561
        %2694 = vmatprep.subr.mxu0 0.0
        %2695 = vmatpush1.msra.mxu0 %v2562
        %2696 = vmatprep.subr.mxu0 0.0
        %2697 = vmatpush1.msra.mxu0 %v2563
        %2698 = vmatprep.subr.mxu0 0.0
        %2699 = vmatpush1.msra.mxu0 %v2564
        %2700 = vmatprep.subr.mxu0 0.0
        %2701 = vmatpush1.msra.mxu0 %v2565
        %2702 = vmatprep.subr.mxu0 0.0
        %2703 = vmatpush1.msra.mxu0 %v2566
        %2704 = vmatprep.subr.mxu0 0.0
        %2705 = vmatpush1.msra.mxu0 %v2567
        %2706 = vmatprep.subr.mxu0 0.0
        %2707 = vmatpush1.msra.mxu0 %v2568
        %2708 = vmatprep.subr.mxu0 0.0
        %2709 = vmatpush1.msra.mxu0 %v2569
        %2710 = vmatprep.subr.mxu0 0.0
        %2711 = vmatpush1.msra.mxu0 %v2570
        %2712 = vmatprep.subr.mxu0 0.0
        %2713 = vmatpush1.msra.mxu0 %v2571
        %2714 = vmatprep.subr.mxu0 0.0
        %2715 = vmatpush1.msra.mxu0 %v2572
        %2716 = vmatprep.subr.mxu0 0.0
        %2717 = vmatpush1.msra.mxu0 %v2573
        %2718 = vmatprep.subr.mxu0 0.0
        %2719 = vmatpush1.msra.mxu0 %v2574
        %2720 = vmatprep.mubr.f32.mxu0 %v2642
        %2721 = vmatmul.mubr.f32.gmra.mrb[0].mxu0 %v2641
        %v2722 = vpop.f32.mrb[0].mxu0
        %v2723 = vadd.f32 0.0, %v2722
        %v2724 = vpop.f32.mrb[0].mxu0
        %2725 = vdwg.mxu0
        %2726 = vmatprep.subr.mxu0 0.0
        %2727 = vmatpush1.msra.mxu0 %v2575
        %2728 = vmatprep.subr.mxu0 0.0
        %2729 = vmatpush1.msra.mxu0 %v2576
        %2730 = vmatprep.subr.mxu0 0.0
        %2731 = vmatpush1.msra.mxu0 %v2577
        %2732 = vmatprep.subr.mxu0 0.0
        %2733 = vmatpush1.msra.mxu0 %v2578
        %2734 = vmatprep.subr.mxu0 0.0
        %2735 = vmatpush1.msra.mxu0 %v2579
        %2736 = vmatprep.subr.mxu0 0.0
        %2737 = vmatpush1.msra.mxu0 %v2580
        %2738 = vmatprep.subr.mxu0 0.0
        %2739 = vmatpush1.msra.mxu0 %v2581
        %2740 = vmatprep.subr.mxu0 0.0
        %2741 = vmatpush1.msra.mxu0 %v2582
        %2742 = vmatprep.subr.mxu0 0.0
        %2743 = vmatpush1.msra.mxu0 %v2583
        %2744 = vmatprep.subr.mxu0 0.0
        %2745 = vmatpush1.msra.mxu0 %v2584
        %2746 = vmatprep.subr.mxu0 0.0
        %2747 = vmatpush1.msra.mxu0 %v2585
        %2748 = vmatprep.subr.mxu0 0.0
        %2749 = vmatpush1.msra.mxu0 %v2586
        %2750 = vmatprep.subr.mxu0 0.0
        %2751 = vmatpush1.msra.mxu0 %v2587
        %2752 = vmatprep.subr.mxu0 0.0
        %2753 = vmatpush1.msra.mxu0 %v2588
        %2754 = vmatprep.subr.mxu0 0.0
        %2755 = vmatpush1.msra.mxu0 %v2589
        %2756 = vmatprep.subr.mxu0 0.0
        %2757 = vmatpush1.msra.mxu0 %v2590
        %2758 = vmatprep.subr.mxu0 0.0
        %2759 = vmatpush1.msra.mxu0 %v2591
        %2760 = vmatprep.subr.mxu0 0.0
        %2761 = vmatpush1.msra.mxu0 %v2592
        %2762 = vmatprep.subr.mxu0 0.0
        %2763 = vmatpush1.msra.mxu0 %v2593
        %2764 = vmatprep.subr.mxu0 0.0
        %2765 = vmatpush1.msra.mxu0 %v2594
        %2766 = vmatprep.subr.mxu0 0.0
        %2767 = vmatpush1.msra.mxu0 %v2595
        %2768 = vmatprep.subr.mxu0 0.0
        %2769 = vmatpush1.msra.mxu0 %v2596
        %2770 = vmatprep.subr.mxu0 0.0
        %2771 = vmatpush1.msra.mxu0 %v2597
        %2772 = vmatprep.subr.mxu0 0.0
        %2773 = vmatpush1.msra.mxu0 %v2598
        %2774 = vmatprep.subr.mxu0 0.0
        %2775 = vmatpush1.msra.mxu0 %v2599
        %2776 = vmatprep.subr.mxu0 0.0
        %2777 = vmatpush1.msra.mxu0 %v2600
        %2778 = vmatprep.subr.mxu0 0.0
        %2779 = vmatpush1.msra.mxu0 %v2601
        %2780 = vmatprep.subr.mxu0 0.0
        %2781 = vmatpush1.msra.mxu0 %v2602
        %2782 = vmatprep.subr.mxu0 0.0
        %2783 = vmatpush1.msra.mxu0 %v2603
        %2784 = vmatprep.subr.mxu0 0.0
        %2785 = vmatpush1.msra.mxu0 %v2604
        %2786 = vmatprep.subr.mxu0 0.0
        %2787 = vmatpush1.msra.mxu0 %v2605
        %2788 = vmatprep.subr.mxu0 0.0
        %2789 = vmatpush1.msra.mxu0 %v2606
        %2790 = vmatprep.mubr.f32.mxu0 %v2644
        %2791 = vmatmul.mubr.f32.gmra.mrb[0].mxu0 %v2643
        %v2792 = vpop.f32.mrb[0].mxu0
        %v2793 = vadd.f32 %v2723, %v2792
        %v2794 = vpop.f32.mrb[0].mxu0
        %2795 = vdwg.mxu0
        %2796 = vmatprep.subr.mxu0 0.0
        %2797 = vmatpush1.msra.mxu0 %v2607
        %2798 = vmatprep.subr.mxu0 0.0
        %2799 = vmatpush1.msra.mxu0 %v2608
        %2800 = vmatprep.subr.mxu0 0.0
        %2801 = vmatpush1.msra.mxu0 %v2609
        %2802 = vmatprep.subr.mxu0 0.0
        %2803 = vmatpush1.msra.mxu0 %v2610
        %2804 = vmatprep.subr.mxu0 0.0
        %2805 = vmatpush1.msra.mxu0 %v2611
        %2806 = vmatprep.subr.mxu0 0.0
        %2807 = vmatpush1.msra.mxu0 %v2612
        %2808 = vmatprep.subr.mxu0 0.0
        %2809 = vmatpush1.msra.mxu0 %v2613
        %2810 = vmatprep.subr.mxu0 0.0
        %2811 = vmatpush1.msra.mxu0 %v2614
        %2812 = vmatprep.subr.mxu0 0.0
        %2813 = vmatpush1.msra.mxu0 %v2615
        %2814 = vmatprep.subr.mxu0 0.0
        %2815 = vmatpush1.msra.mxu0 %v2616
        %2816 = vmatprep.subr.mxu0 0.0
        %2817 = vmatpush1.msra.mxu0 %v2617
        %2818 = vmatprep.subr.mxu0 0.0
        %2819 = vmatpush1.msra.mxu0 %v2618
        %2820 = vmatprep.subr.mxu0 0.0
        %2821 = vmatpush1.msra.mxu0 %v2619
        %2822 = vmatprep.subr.mxu0 0.0
        %2823 = vmatpush1.msra.mxu0 %v2620
        %2824 = vmatprep.subr.mxu0 0.0
        %2825 = vmatpush1.msra.mxu0 %v2621
        %2826 = vmatprep.subr.mxu0 0.0
        %2827 = vmatpush1.msra.mxu0 %v2622
        %2828 = vmatprep.subr.mxu0 0.0
        %2829 = vmatpush1.msra.mxu0 %v2623
        %2830 = vmatprep.subr.mxu0 0.0
        %2831 = vmatpush1.msra.mxu0 %v2624
        %2832 = vmatprep.subr.mxu0 0.0
        %2833 = vmatpush1.msra.mxu0 %v2625
        %2834 = vmatprep.subr.mxu0 0.0
        %2835 = vmatpush1.msra.mxu0 %v2626
        %2836 = vmatprep.subr.mxu0 0.0
        %2837 = vmatpush1.msra.mxu0 %v2627
        %2838 = vmatprep.subr.mxu0 0.0
        %2839 = vmatpush1.msra.mxu0 %v2628
        %2840 = vmatprep.subr.mxu0 0.0
        %2841 = vmatpush1.msra.mxu0 %v2629
        %2842 = vmatprep.subr.mxu0 0.0
        %2843 = vmatpush1.msra.mxu0 %v2630
        %2844 = vmatprep.subr.mxu0 0.0
        %2845 = vmatpush1.msra.mxu0 %v2631
        %2846 = vmatprep.subr.mxu0 0.0
        %2847 = vmatpush1.msra.mxu0 %v2632
        %2848 = vmatprep.subr.mxu0 0.0
        %2849 = vmatpush1.msra.mxu0 %v2633
        %2850 = vmatprep.subr.mxu0 0.0
        %2851 = vmatpush1.msra.mxu0 %v2634
        %2852 = vmatprep.subr.mxu0 0.0
        %2853 = vmatpush1.msra.mxu0 %v2635
        %2854 = vmatprep.subr.mxu0 0.0
        %2855 = vmatpush1.msra.mxu0 %v2636
        %2856 = vmatprep.subr.mxu0 0.0
        %2857 = vmatpush1.msra.mxu0 %v2637
        %2858 = vmatprep.subr.mxu0 0.0
        %2859 = vmatpush1.msra.mxu0 %v2638
        %2860 = vmatprep.mubr.f32.mxu0 %v2646
        %2861 = vmatmul.mubr.f32.gmra.mrb[0].mxu0 %v2645
        %v2862 = vpop.f32.mrb[0].mxu0
        %v2863 = vadd.f32 %v2793, %v2862
        %v2864 = vpop.f32.mrb[0].mxu0
        %2865 = vdwg.mxu0
        %2866 = vmatprep.subr.mxu0 0.0
        %2867 = vmatpush1.msra.mxu0 %v2639
        %2868 = vmatprep.subr.mxu0 0.0
        %2869 = vmatpush1.msra.mxu0 %v2640
        %2870 = vmatprep.subr.mxu0 0.0
        %2871 = vmatpush1.msra.mxu0 0.0
        %2872 = vmatprep.subr.mxu0 0.0
        %2873 = vmatpush1.msra.mxu0 0.0
        %2874 = vmatprep.subr.mxu0 0.0
        %2875 = vmatpush1.msra.mxu0 0.0
        %2876 = vmatprep.subr.mxu0 0.0
        %2877 = vmatpush1.msra.mxu0 0.0
        %2878 = vmatprep.subr.mxu0 0.0
        %2879 = vmatpush1.msra.mxu0 0.0
        %2880 = vmatprep.subr.mxu0 0.0
        %2881 = vmatpush1.msra.mxu0 0.0
        %2882 = vmatprep.subr.mxu0 0.0
        %2883 = vmatpush1.msra.mxu0 0.0
        %2884 = vmatprep.subr.mxu0 0.0
        %2885 = vmatpush1.msra.mxu0 0.0
        %2886 = vmatprep.subr.mxu0 0.0
        %2887 = vmatpush1.msra.mxu0 0.0
        %2888 = vmatprep.subr.mxu0 0.0
        %2889 = vmatpush1.msra.mxu0 0.0
        %2890 = vmatprep.subr.mxu0 0.0
        %2891 = vmatpush1.msra.mxu0 0.0
        %2892 = vmatprep.subr.mxu0 0.0
        %2893 = vmatpush1.msra.mxu0 0.0
        %2894 = vmatprep.subr.mxu0 0.0
        %2895 = vmatpush1.msra.mxu0 0.0
        %2896 = vmatprep.subr.mxu0 0.0
        %2897 = vmatpush1.msra.mxu0 0.0
        %2898 = vmatprep.subr.mxu0 0.0
        %2899 = vmatpush1.msra.mxu0 0.0
        %2900 = vmatprep.subr.mxu0 0.0
        %2901 = vmatpush1.msra.mxu0 0.0
        %2902 = vmatprep.subr.mxu0 0.0
        %2903 = vmatpush1.msra.mxu0 0.0
        %2904 = vmatprep.subr.mxu0 0.0
        %2905 = vmatpush1.msra.mxu0 0.0
        %2906 = vmatprep.subr.mxu0 0.0
        %2907 = vmatpush1.msra.mxu0 0.0
        %2908 = vmatprep.subr.mxu0 0.0
        %2909 = vmatpush1.msra.mxu0 0.0
        %2910 = vmatprep.subr.mxu0 0.0
        %2911 = vmatpush1.msra.mxu0 0.0
        %2912 = vmatprep.subr.mxu0 0.0
        %2913 = vmatpush1.msra.mxu0 0.0
        %2914 = vmatprep.subr.mxu0 0.0
        %2915 = vmatpush1.msra.mxu0 0.0
        %2916 = vmatprep.subr.mxu0 0.0
        %2917 = vmatpush1.msra.mxu0 0.0
        %2918 = vmatprep.subr.mxu0 0.0
        %2919 = vmatpush1.msra.mxu0 0.0
        %2920 = vmatprep.subr.mxu0 0.0
        %2921 = vmatpush1.msra.mxu0 0.0
        %2922 = vmatprep.subr.mxu0 0.0
        %2923 = vmatpush1.msra.mxu0 0.0
        %2924 = vmatprep.subr.mxu0 0.0
        %2925 = vmatpush1.msra.mxu0 0.0
        %2926 = vmatprep.subr.mxu0 0.0
        %2927 = vmatpush1.msra.mxu0 0.0
        %2928 = vmatprep.subr.mxu0 0.0
        %2929 = vmatpush1.msra.mxu0 0.0
        %2930 = vmatprep.mubr.f32.mxu0 0.0
        %2931 = vmatmul.mubr.f32.gmra.mrb[0].mxu0 %v2654
        %v2932 = vpop.f32.mrb[0].mxu0
        %v2933 = vadd.f32 %v2863, %v2932
        %v2934 = vpop.f32.mrb[0].mxu0
        %2935 = vdwg.mxu0
        %v2936 = vadd.f32 %v2541, %v2933
        %s2937 = scalar_lea.vmem %s2, 4704
        %v2938 = vld [vmem:[%s2937] sm:$0xff]
        %v2939 = vld [vmem:[%s2937 + $0x8] sm:$0xff]
        %v2940 = vld [vmem:[%s2937 + $0x10] sm:$0xff]
        %v2941 = vld [vmem:[%s2937 + $0x18] sm:$0xff]
        %v2942 = vld [vmem:[%s2937 + $0x20] sm:$0xff]
        %v2943 = vld [vmem:[%s2937 + $0x28] sm:$0xff]
        %v2944 = vld [vmem:[%s2937 + $0x30] sm:$0xff]
        %v2945 = vld [vmem:[%s2937 + $0x38] sm:$0xff]
        %v2946 = vld [vmem:[%s2937 + $0x40] sm:$0xff]
        %v2947 = vld [vmem:[%s2937 + $0x48] sm:$0xff]
        %v2948 = vld [vmem:[%s2937 + $0x50] sm:$0xff]
        %v2949 = vld [vmem:[%s2937 + $0x58] sm:$0xff]
        %v2950 = vld [vmem:[%s2937 + $0x60] sm:$0xff]
        %v2951 = vld [vmem:[%s2937 + $0x68] sm:$0xff]
        %v2952 = vld [vmem:[%s2937 + $0x70] sm:$0xff]
        %v2953 = vld [vmem:[%s2937 + $0x78] sm:$0xff]
        %v2954 = vld [vmem:[%s2937 + $0x80] sm:$0xff]
        %v2955 = vld [vmem:[%s2937 + $0x88] sm:$0xff]
        %v2956 = vld [vmem:[%s2937 + $0x90] sm:$0xff]
        %v2957 = vld [vmem:[%s2937 + $0x98] sm:$0xff]
        %v2958 = vld [vmem:[%s2937 + $0xa0] sm:$0xff]
        %v2959 = vld [vmem:[%s2937 + $0xa8] sm:$0xff]
        %v2960 = vld [vmem:[%s2937 + $0xb0] sm:$0xff]
        %v2961 = vld [vmem:[%s2937 + $0xb8] sm:$0xff]
        %v2962 = vld [vmem:[%s2937 + $0xc0] sm:$0xff]
        %v2963 = vld [vmem:[%s2937 + $0xc8] sm:$0xff]
        %v2964 = vld [vmem:[%s2937 + $0xd0] sm:$0xff]
        %v2965 = vld [vmem:[%s2937 + $0xd8] sm:$0xff]
        %v2966 = vld [vmem:[%s2937 + $0xe0] sm:$0xff]
        %v2967 = vld [vmem:[%s2937 + $0xe8] sm:$0xff]
        %v2968 = vld [vmem:[%s2937 + $0xf0] sm:$0xff]
        %v2969 = vld [vmem:[%s2937 + $0xf8] sm:$0xff]
        %v2970 = vld [vmem:[%s2937 + $0x100] sm:$0xff]
        %v2971 = vld [vmem:[%s2937 + $0x108] sm:$0xff]
        %v2972 = vld [vmem:[%s2937 + $0x110] sm:$0xff]
        %v2973 = vld [vmem:[%s2937 + $0x118] sm:$0xff]
        %v2974 = vld [vmem:[%s2937 + $0x120] sm:$0xff]
        %v2975 = vld [vmem:[%s2937 + $0x128] sm:$0xff]
        %v2976 = vld [vmem:[%s2937 + $0x130] sm:$0xff]
        %v2977 = vld [vmem:[%s2937 + $0x138] sm:$0xff]
        %v2978 = vld [vmem:[%s2937 + $0x140] sm:$0xff]
        %v2979 = vld [vmem:[%s2937 + $0x148] sm:$0xff]
        %v2980 = vld [vmem:[%s2937 + $0x150] sm:$0xff]
        %v2981 = vld [vmem:[%s2937 + $0x158] sm:$0xff]
        %v2982 = vld [vmem:[%s2937 + $0x160] sm:$0xff]
        %v2983 = vld [vmem:[%s2937 + $0x168] sm:$0xff]
        %v2984 = vld [vmem:[%s2937 + $0x170] sm:$0xff]
        %v2985 = vld [vmem:[%s2937 + $0x178] sm:$0xff]
        %v2986 = vld [vmem:[%s2937 + $0x180] sm:$0xff]
        %v2987 = vld [vmem:[%s2937 + $0x188] sm:$0xff]
        %v2988 = vld [vmem:[%s2937 + $0x190] sm:$0xff]
        %v2989 = vld [vmem:[%s2937 + $0x198] sm:$0xff]
        %v2990 = vld [vmem:[%s2937 + $0x1a0] sm:$0xff]
        %v2991 = vld [vmem:[%s2937 + $0x1a8] sm:$0xff]
        %v2992 = vld [vmem:[%s2937 + $0x1b0] sm:$0xff]
        %v2993 = vld [vmem:[%s2937 + $0x1b8] sm:$0xff]
        %v2994 = vld [vmem:[%s2937 + $0x1c0] sm:$0xff]
        %v2995 = vld [vmem:[%s2937 + $0x1c8] sm:$0xff]
        %v2996 = vld [vmem:[%s2937 + $0x1d0] sm:$0xff]
        %v2997 = vld [vmem:[%s2937 + $0x1d8] sm:$0xff]
        %v2998 = vld [vmem:[%s2937 + $0x1e0] sm:$0xff]
        %v2999 = vld [vmem:[%s2937 + $0x1e8] sm:$0xff]
        %v3000 = vld [vmem:[%s2937 + $0x1f0] sm:$0xff]
        %v3001 = vld [vmem:[%s2937 + $0x1f8] sm:$0xff]
        %v3002 = vld [vmem:[%s2937 + $0x200] sm:$0xff]
        %v3003 = vld [vmem:[%s2937 + $0x208] sm:$0xff]
        %v3004 = vld [vmem:[%s2937 + $0x210] sm:$0xff]
        %v3005 = vld [vmem:[%s2937 + $0x218] sm:$0xff]
        %v3006 = vld [vmem:[%s2937 + $0x220] sm:$0xff]
        %v3007 = vld [vmem:[%s2937 + $0x228] sm:$0xff]
        %v3008 = vld [vmem:[%s2937 + $0x230] sm:$0xff]
        %v3009 = vld [vmem:[%s2937 + $0x238] sm:$0xff]
        %v3010 = vld [vmem:[%s2937 + $0x240] sm:$0xff]
        %v3011 = vld [vmem:[%s2937 + $0x248] sm:$0xff]
        %v3012 = vld [vmem:[%s2937 + $0x250] sm:$0xff]
        %v3013 = vld [vmem:[%s2937 + $0x258] sm:$0xff]
        %v3014 = vld [vmem:[%s2937 + $0x260] sm:$0xff]
        %v3015 = vld [vmem:[%s2937 + $0x268] sm:$0xff]
        %v3016 = vld [vmem:[%s2937 + $0x270] sm:$0xff]
        %v3017 = vld [vmem:[%s2937 + $0x278] sm:$0xff]
        %v3018 = vld [vmem:[%s2937 + $0x280] sm:$0xff]
        %v3019 = vld [vmem:[%s2937 + $0x288] sm:$0xff]
        %v3020 = vld [vmem:[%s2937 + $0x290] sm:$0xff]
        %v3021 = vld [vmem:[%s2937 + $0x298] sm:$0xff]
        %v3022 = vld [vmem:[%s2937 + $0x2a0] sm:$0xff]
        %v3023 = vld [vmem:[%s2937 + $0x2a8] sm:$0xff]
        %v3024 = vld [vmem:[%s2937 + $0x2b0] sm:$0xff]
        %v3025 = vld [vmem:[%s2937 + $0x2b8] sm:$0xff]
        %v3026 = vld [vmem:[%s2937 + $0x2c0] sm:$0xff]
        %v3027 = vld [vmem:[%s2937 + $0x2c8] sm:$0xff]
        %v3028 = vld [vmem:[%s2937 + $0x2d0] sm:$0xff]
        %v3029 = vld [vmem:[%s2937 + $0x2d8] sm:$0xff]
        %v3030 = vld [vmem:[%s2937 + $0x2e0] sm:$0xff]
        %v3031 = vld [vmem:[%s2937 + $0x2e8] sm:$0xff]
        %v3032 = vld [vmem:[%s2937 + $0x2f0] sm:$0xff]
        %v3033 = vld [vmem:[%s2937 + $0x2f8] sm:$0xff]
        %v3034 = vld [vmem:[%s2937 + $0x300] sm:$0xff]
        %v3035 = vld [vmem:[%s2937 + $0x308] sm:$0xff]
        %v3036 = vrot.slane %v565, 6
        %v3037 = vrot.slane %v566, 6
        %v3038 = vrot.slane %v567, 6
        %v3039 = vrot.slane %v568, 6
        %v3040 = vrot.slane %v569, 6
        %v3041 = vrot.slane %v570, 6
        %v3042 = vrot.slane %v571, 6
        %v3049 = vsel %vm671, %v3042, 0
        %3051 = vmatprep.subr.mxu0 0.0
        %3052 = vmatpush1.msra.mxu0 %v2938
        %3053 = vmatprep.subr.mxu0 0.0
        %3054 = vmatpush1.msra.mxu0 %v2939
        %3055 = vmatprep.subr.mxu0 0.0
        %3056 = vmatpush1.msra.mxu0 %v2940
        %3057 = vmatprep.subr.mxu0 0.0
        %3058 = vmatpush1.msra.mxu0 %v2941
        %3059 = vmatprep.subr.mxu0 0.0
        %3060 = vmatpush1.msra.mxu0 %v2942
        %3061 = vmatprep.subr.mxu0 0.0
        %3062 = vmatpush1.msra.mxu0 %v2943
        %3063 = vmatprep.subr.mxu0 0.0
        %3064 = vmatpush1.msra.mxu0 %v2944
        %3065 = vmatprep.subr.mxu0 0.0
        %3066 = vmatpush1.msra.mxu0 %v2945
        %3067 = vmatprep.subr.mxu0 0.0
        %3068 = vmatpush1.msra.mxu0 %v2946
        %3069 = vmatprep.subr.mxu0 0.0
        %3070 = vmatpush1.msra.mxu0 %v2947
        %3071 = vmatprep.subr.mxu0 0.0
        %3072 = vmatpush1.msra.mxu0 %v2948
        %3073 = vmatprep.subr.mxu0 0.0
        %3074 = vmatpush1.msra.mxu0 %v2949
        %3075 = vmatprep.subr.mxu0 0.0
        %3076 = vmatpush1.msra.mxu0 %v2950
        %3077 = vmatprep.subr.mxu0 0.0
        %3078 = vmatpush1.msra.mxu0 %v2951
        %3079 = vmatprep.subr.mxu0 0.0
        %3080 = vmatpush1.msra.mxu0 %v2952
        %3081 = vmatprep.subr.mxu0 0.0
        %3082 = vmatpush1.msra.mxu0 %v2953
        %3083 = vmatprep.subr.mxu0 0.0
        %3084 = vmatpush1.msra.mxu0 %v2954
        %3085 = vmatprep.subr.mxu0 0.0
        %3086 = vmatpush1.msra.mxu0 %v2955
        %3087 = vmatprep.subr.mxu0 0.0
        %3088 = vmatpush1.msra.mxu0 %v2956
        %3089 = vmatprep.subr.mxu0 0.0
        %3090 = vmatpush1.msra.mxu0 %v2957
        %3091 = vmatprep.subr.mxu0 0.0
        %3092 = vmatpush1.msra.mxu0 %v2958
        %3093 = vmatprep.subr.mxu0 0.0
        %3094 = vmatpush1.msra.mxu0 %v2959
        %3095 = vmatprep.subr.mxu0 0.0
        %3096 = vmatpush1.msra.mxu0 %v2960
        %3097 = vmatprep.subr.mxu0 0.0
        %3098 = vmatpush1.msra.mxu0 %v2961
        %3099 = vmatprep.subr.mxu0 0.0
        %3100 = vmatpush1.msra.mxu0 %v2962
        %3101 = vmatprep.subr.mxu0 0.0
        %3102 = vmatpush1.msra.mxu0 %v2963
        %3103 = vmatprep.subr.mxu0 0.0
        %3104 = vmatpush1.msra.mxu0 %v2964
        %3105 = vmatprep.subr.mxu0 0.0
        %3106 = vmatpush1.msra.mxu0 %v2965
        %3107 = vmatprep.subr.mxu0 0.0
        %3108 = vmatpush1.msra.mxu0 %v2966
        %3109 = vmatprep.subr.mxu0 0.0
        %3110 = vmatpush1.msra.mxu0 %v2967
        %3111 = vmatprep.subr.mxu0 0.0
        %3112 = vmatpush1.msra.mxu0 %v2968
        %3113 = vmatprep.subr.mxu0 0.0
        %3114 = vmatpush1.msra.mxu0 %v2969
        %3115 = vmatprep.mubr.f32.mxu0 %v3037
        %3116 = vmatmul.mubr.f32.gmra.mrb[0].mxu0 %v3036
        %v3117 = vpop.f32.mrb[0].mxu0
        %v3118 = vadd.f32 0.0, %v3117
        %v3119 = vpop.f32.mrb[0].mxu0
        %3120 = vdwg.mxu0
        %3121 = vmatprep.subr.mxu0 0.0
        %3122 = vmatpush1.msra.mxu0 %v2970
        %3123 = vmatprep.subr.mxu0 0.0
        %3124 = vmatpush1.msra.mxu0 %v2971
        %3125 = vmatprep.subr.mxu0 0.0
        %3126 = vmatpush1.msra.mxu0 %v2972
        %3127 = vmatprep.subr.mxu0 0.0
        %3128 = vmatpush1.msra.mxu0 %v2973
        %3129 = vmatprep.subr.mxu0 0.0
        %3130 = vmatpush1.msra.mxu0 %v2974
        %3131 = vmatprep.subr.mxu0 0.0
        %3132 = vmatpush1.msra.mxu0 %v2975
        %3133 = vmatprep.subr.mxu0 0.0
        %3134 = vmatpush1.msra.mxu0 %v2976
        %3135 = vmatprep.subr.mxu0 0.0
        %3136 = vmatpush1.msra.mxu0 %v2977
        %3137 = vmatprep.subr.mxu0 0.0
        %3138 = vmatpush1.msra.mxu0 %v2978
        %3139 = vmatprep.subr.mxu0 0.0
        %3140 = vmatpush1.msra.mxu0 %v2979
        %3141 = vmatprep.subr.mxu0 0.0
        %3142 = vmatpush1.msra.mxu0 %v2980
        %3143 = vmatprep.subr.mxu0 0.0
        %3144 = vmatpush1.msra.mxu0 %v2981
        %3145 = vmatprep.subr.mxu0 0.0
        %3146 = vmatpush1.msra.mxu0 %v2982
        %3147 = vmatprep.subr.mxu0 0.0
        %3148 = vmatpush1.msra.mxu0 %v2983
        %3149 = vmatprep.subr.mxu0 0.0
        %3150 = vmatpush1.msra.mxu0 %v2984
        %3151 = vmatprep.subr.mxu0 0.0
        %3152 = vmatpush1.msra.mxu0 %v2985
        %3153 = vmatprep.subr.mxu0 0.0
        %3154 = vmatpush1.msra.mxu0 %v2986
        %3155 = vmatprep.subr.mxu0 0.0
        %3156 = vmatpush1.msra.mxu0 %v2987
        %3157 = vmatprep.subr.mxu0 0.0
        %3158 = vmatpush1.msra.mxu0 %v2988
        %3159 = vmatprep.subr.mxu0 0.0
        %3160 = vmatpush1.msra.mxu0 %v2989
        %3161 = vmatprep.subr.mxu0 0.0
        %3162 = vmatpush1.msra.mxu0 %v2990
        %3163 = vmatprep.subr.mxu0 0.0
        %3164 = vmatpush1.msra.mxu0 %v2991
        %3165 = vmatprep.subr.mxu0 0.0
        %3166 = vmatpush1.msra.mxu0 %v2992
        %3167 = vmatprep.subr.mxu0 0.0
        %3168 = vmatpush1.msra.mxu0 %v2993
        %3169 = vmatprep.subr.mxu0 0.0
        %3170 = vmatpush1.msra.mxu0 %v2994
        %3171 = vmatprep.subr.mxu0 0.0
        %3172 = vmatpush1.msra.mxu0 %v2995
        %3173 = vmatprep.subr.mxu0 0.0
        %3174 = vmatpush1.msra.mxu0 %v2996
        %3175 = vmatprep.subr.mxu0 0.0
        %3176 = vmatpush1.msra.mxu0 %v2997
        %3177 = vmatprep.subr.mxu0 0.0
        %3178 = vmatpush1.msra.mxu0 %v2998
        %3179 = vmatprep.subr.mxu0 0.0
        %3180 = vmatpush1.msra.mxu0 %v2999
        %3181 = vmatprep.subr.mxu0 0.0
        %3182 = vmatpush1.msra.mxu0 %v3000
        %3183 = vmatprep.subr.mxu0 0.0
        %3184 = vmatpush1.msra.mxu0 %v3001
        %3185 = vmatprep.mubr.f32.mxu0 %v3039
        %3186 = vmatmul.mubr.f32.gmra.mrb[0].mxu0 %v3038
        %v3187 = vpop.f32.mrb[0].mxu0
        %v3188 = vadd.f32 %v3118, %v3187
        %v3189 = vpop.f32.mrb[0].mxu0
        %3190 = vdwg.mxu0
        %3191 = vmatprep.subr.mxu0 0.0
        %3192 = vmatpush1.msra.mxu0 %v3002
        %3193 = vmatprep.subr.mxu0 0.0
        %3194 = vmatpush1.msra.mxu0 %v3003
        %3195 = vmatprep.subr.mxu0 0.0
        %3196 = vmatpush1.msra.mxu0 %v3004
        %3197 = vmatprep.subr.mxu0 0.0
        %3198 = vmatpush1.msra.mxu0 %v3005
        %3199 = vmatprep.subr.mxu0 0.0
        %3200 = vmatpush1.msra.mxu0 %v3006
        %3201 = vmatprep.subr.mxu0 0.0
        %3202 = vmatpush1.msra.mxu0 %v3007
        %3203 = vmatprep.subr.mxu0 0.0
        %3204 = vmatpush1.msra.mxu0 %v3008
        %3205 = vmatprep.subr.mxu0 0.0
        %3206 = vmatpush1.msra.mxu0 %v3009
        %3207 = vmatprep.subr.mxu0 0.0
        %3208 = vmatpush1.msra.mxu0 %v3010
        %3209 = vmatprep.subr.mxu0 0.0
        %3210 = vmatpush1.msra.mxu0 %v3011
        %3211 = vmatprep.subr.mxu0 0.0
        %3212 = vmatpush1.msra.mxu0 %v3012
        %3213 = vmatprep.subr.mxu0 0.0
        %3214 = vmatpush1.msra.mxu0 %v3013
        %3215 = vmatprep.subr.mxu0 0.0
        %3216 = vmatpush1.msra.mxu0 %v3014
        %3217 = vmatprep.subr.mxu0 0.0
        %3218 = vmatpush1.msra.mxu0 %v3015
        %3219 = vmatprep.subr.mxu0 0.0
        %3220 = vmatpush1.msra.mxu0 %v3016
        %3221 = vmatprep.subr.mxu0 0.0
        %3222 = vmatpush1.msra.mxu0 %v3017
        %3223 = vmatprep.subr.mxu0 0.0
        %3224 = vmatpush1.msra.mxu0 %v3018
        %3225 = vmatprep.subr.mxu0 0.0
        %3226 = vmatpush1.msra.mxu0 %v3019
        %3227 = vmatprep.subr.mxu0 0.0
        %3228 = vmatpush1.msra.mxu0 %v3020
        %3229 = vmatprep.subr.mxu0 0.0
        %3230 = vmatpush1.msra.mxu0 %v3021
        %3231 = vmatprep.subr.mxu0 0.0
        %3232 = vmatpush1.msra.mxu0 %v3022
        %3233 = vmatprep.subr.mxu0 0.0
        %3234 = vmatpush1.msra.mxu0 %v3023
        %3235 = vmatprep.subr.mxu0 0.0
        %3236 = vmatpush1.msra.mxu0 %v3024
        %3237 = vmatprep.subr.mxu0 0.0
        %3238 = vmatpush1.msra.mxu0 %v3025
        %3239 = vmatprep.subr.mxu0 0.0
        %3240 = vmatpush1.msra.mxu0 %v3026
        %3241 = vmatprep.subr.mxu0 0.0
        %3242 = vmatpush1.msra.mxu0 %v3027
        %3243 = vmatprep.subr.mxu0 0.0
        %3244 = vmatpush1.msra.mxu0 %v3028
        %3245 = vmatprep.subr.mxu0 0.0
        %3246 = vmatpush1.msra.mxu0 %v3029
        %3247 = vmatprep.subr.mxu0 0.0
        %3248 = vmatpush1.msra.mxu0 %v3030
        %3249 = vmatprep.subr.mxu0 0.0
        %3250 = vmatpush1.msra.mxu0 %v3031
        %3251 = vmatprep.subr.mxu0 0.0
        %3252 = vmatpush1.msra.mxu0 %v3032
        %3253 = vmatprep.subr.mxu0 0.0
        %3254 = vmatpush1.msra.mxu0 %v3033
        %3255 = vmatprep.mubr.f32.mxu0 %v3041
        %3256 = vmatmul.mubr.f32.gmra.mrb[0].mxu0 %v3040
        %v3257 = vpop.f32.mrb[0].mxu0
        %v3258 = vadd.f32 %v3188, %v3257
        %v3259 = vpop.f32.mrb[0].mxu0
        %3260 = vdwg.mxu0
        %3261 = vmatprep.subr.mxu0 0.0
        %3262 = vmatpush1.msra.mxu0 %v3034
        %3263 = vmatprep.subr.mxu0 0.0
        %3264 = vmatpush1.msra.mxu0 %v3035
        %3265 = vmatprep.subr.mxu0 0.0
        %3266 = vmatpush1.msra.mxu0 0.0
        %3267 = vmatprep.subr.mxu0 0.0
        %3268 = vmatpush1.msra.mxu0 0.0
        %3269 = vmatprep.subr.mxu0 0.0
        %3270 = vmatpush1.msra.mxu0 0.0
        %3271 = vmatprep.subr.mxu0 0.0
        %3272 = vmatpush1.msra.mxu0 0.0
        %3273 = vmatprep.subr.mxu0 0.0
        %3274 = vmatpush1.msra.mxu0 0.0
        %3275 = vmatprep.subr.mxu0 0.0
        %3276 = vmatpush1.msra.mxu0 0.0
        %3277 = vmatprep.subr.mxu0 0.0
        %3278 = vmatpush1.msra.mxu0 0.0
        %3279 = vmatprep.subr.mxu0 0.0
        %3280 = vmatpush1.msra.mxu0 0.0
        %3281 = vmatprep.subr.mxu0 0.0
        %3282 = vmatpush1.msra.mxu0 0.0
        %3283 = vmatprep.subr.mxu0 0.0
        %3284 = vmatpush1.msra.mxu0 0.0
        %3285 = vmatprep.subr.mxu0 0.0
        %3286 = vmatpush1.msra.mxu0 0.0
        %3287 = vmatprep.subr.mxu0 0.0
        %3288 = vmatpush1.msra.mxu0 0.0
        %3289 = vmatprep.subr.mxu0 0.0
        %3290 = vmatpush1.msra.mxu0 0.0
        %3291 = vmatprep.subr.mxu0 0.0
        %3292 = vmatpush1.msra.mxu0 0.0
        %3293 = vmatprep.subr.mxu0 0.0
        %3294 = vmatpush1.msra.mxu0 0.0
        %3295 = vmatprep.subr.mxu0 0.0
        %3296 = vmatpush1.msra.mxu0 0.0
        %3297 = vmatprep.subr.mxu0 0.0
        %3298 = vmatpush1.msra.mxu0 0.0
        %3299 = vmatprep.subr.mxu0 0.0
        %3300 = vmatpush1.msra.mxu0 0.0
        %3301 = vmatprep.subr.mxu0 0.0
        %3302 = vmatpush1.msra.mxu0 0.0
        %3303 = vmatprep.subr.mxu0 0.0
        %3304 = vmatpush1.msra.mxu0 0.0
        %3305 = vmatprep.subr.mxu0 0.0
        %3306 = vmatpush1.msra.mxu0 0.0
        %3307 = vmatprep.subr.mxu0 0.0
        %3308 = vmatpush1.msra.mxu0 0.0
        %3309 = vmatprep.subr.mxu0 0.0
        %3310 = vmatpush1.msra.mxu0 0.0
        %3311 = vmatprep.subr.mxu0 0.0
        %3312 = vmatpush1.msra.mxu0 0.0
        %3313 = vmatprep.subr.mxu0 0.0
        %3314 = vmatpush1.msra.mxu0 0.0
        %3315 = vmatprep.subr.mxu0 0.0
        %3316 = vmatpush1.msra.mxu0 0.0
        %3317 = vmatprep.subr.mxu0 0.0
        %3318 = vmatpush1.msra.mxu0 0.0
        %3319 = vmatprep.subr.mxu0 0.0
        %3320 = vmatpush1.msra.mxu0 0.0
        %3321 = vmatprep.subr.mxu0 0.0
        %3322 = vmatpush1.msra.mxu0 0.0
        %3323 = vmatprep.subr.mxu0 0.0
        %3324 = vmatpush1.msra.mxu0 0.0
        %3325 = vmatprep.mubr.f32.mxu0 0.0
        %3326 = vmatmul.mubr.f32.gmra.mrb[0].mxu0 %v3049
        %v3327 = vpop.f32.mrb[0].mxu0
        %v3328 = vadd.f32 %v3258, %v3327
        %v3329 = vpop.f32.mrb[0].mxu0
        %3330 = vdwg.mxu0
        %v3331 = vadd.f32 %v2936, %v3328
        %s3332 = scalar_lea.vmem %s2, 5488
        %v3333 = vld [vmem:[%s3332] sm:$0xff]
        %v3334 = vld [vmem:[%s3332 + $0x8] sm:$0xff]
        %v3335 = vld [vmem:[%s3332 + $0x10] sm:$0xff]
        %v3336 = vld [vmem:[%s3332 + $0x18] sm:$0xff]
        %v3337 = vld [vmem:[%s3332 + $0x20] sm:$0xff]
        %v3338 = vld [vmem:[%s3332 + $0x28] sm:$0xff]
        %v3339 = vld [vmem:[%s3332 + $0x30] sm:$0xff]
        %v3340 = vld [vmem:[%s3332 + $0x38] sm:$0xff]
        %v3341 = vld [vmem:[%s3332 + $0x40] sm:$0xff]
        %v3342 = vld [vmem:[%s3332 + $0x48] sm:$0xff]
        %v3343 = vld [vmem:[%s3332 + $0x50] sm:$0xff]
        %v3344 = vld [vmem:[%s3332 + $0x58] sm:$0xff]
        %v3345 = vld [vmem:[%s3332 + $0x60] sm:$0xff]
        %v3346 = vld [vmem:[%s3332 + $0x68] sm:$0xff]
        %v3347 = vld [vmem:[%s3332 + $0x70] sm:$0xff]
        %v3348 = vld [vmem:[%s3332 + $0x78] sm:$0xff]
        %v3349 = vld [vmem:[%s3332 + $0x80] sm:$0xff]
        %v3350 = vld [vmem:[%s3332 + $0x88] sm:$0xff]
        %v3351 = vld [vmem:[%s3332 + $0x90] sm:$0xff]
        %v3352 = vld [vmem:[%s3332 + $0x98] sm:$0xff]
        %v3353 = vld [vmem:[%s3332 + $0xa0] sm:$0xff]
        %v3354 = vld [vmem:[%s3332 + $0xa8] sm:$0xff]
        %v3355 = vld [vmem:[%s3332 + $0xb0] sm:$0xff]
        %v3356 = vld [vmem:[%s3332 + $0xb8] sm:$0xff]
        %v3357 = vld [vmem:[%s3332 + $0xc0] sm:$0xff]
        %v3358 = vld [vmem:[%s3332 + $0xc8] sm:$0xff]
        %v3359 = vld [vmem:[%s3332 + $0xd0] sm:$0xff]
        %v3360 = vld [vmem:[%s3332 + $0xd8] sm:$0xff]
        %v3361 = vld [vmem:[%s3332 + $0xe0] sm:$0xff]
        %v3362 = vld [vmem:[%s3332 + $0xe8] sm:$0xff]
        %v3363 = vld [vmem:[%s3332 + $0xf0] sm:$0xff]
        %v3364 = vld [vmem:[%s3332 + $0xf8] sm:$0xff]
        %v3365 = vld [vmem:[%s3332 + $0x100] sm:$0xff]
        %v3366 = vld [vmem:[%s3332 + $0x108] sm:$0xff]
        %v3367 = vld [vmem:[%s3332 + $0x110] sm:$0xff]
        %v3368 = vld [vmem:[%s3332 + $0x118] sm:$0xff]
        %v3369 = vld [vmem:[%s3332 + $0x120] sm:$0xff]
        %v3370 = vld [vmem:[%s3332 + $0x128] sm:$0xff]
        %v3371 = vld [vmem:[%s3332 + $0x130] sm:$0xff]
        %v3372 = vld [vmem:[%s3332 + $0x138] sm:$0xff]
        %v3373 = vld [vmem:[%s3332 + $0x140] sm:$0xff]
        %v3374 = vld [vmem:[%s3332 + $0x148] sm:$0xff]
        %v3375 = vld [vmem:[%s3332 + $0x150] sm:$0xff]
        %v3376 = vld [vmem:[%s3332 + $0x158] sm:$0xff]
        %v3377 = vld [vmem:[%s3332 + $0x160] sm:$0xff]
        %v3378 = vld [vmem:[%s3332 + $0x168] sm:$0xff]
        %v3379 = vld [vmem:[%s3332 + $0x170] sm:$0xff]
        %v3380 = vld [vmem:[%s3332 + $0x178] sm:$0xff]
        %v3381 = vld [vmem:[%s3332 + $0x180] sm:$0xff]
        %v3382 = vld [vmem:[%s3332 + $0x188] sm:$0xff]
        %v3383 = vld [vmem:[%s3332 + $0x190] sm:$0xff]
        %v3384 = vld [vmem:[%s3332 + $0x198] sm:$0xff]
        %v3385 = vld [vmem:[%s3332 + $0x1a0] sm:$0xff]
        %v3386 = vld [vmem:[%s3332 + $0x1a8] sm:$0xff]
        %v3387 = vld [vmem:[%s3332 + $0x1b0] sm:$0xff]
        %v3388 = vld [vmem:[%s3332 + $0x1b8] sm:$0xff]
        %v3389 = vld [vmem:[%s3332 + $0x1c0] sm:$0xff]
        %v3390 = vld [vmem:[%s3332 + $0x1c8] sm:$0xff]
        %v3391 = vld [vmem:[%s3332 + $0x1d0] sm:$0xff]
        %v3392 = vld [vmem:[%s3332 + $0x1d8] sm:$0xff]
        %v3393 = vld [vmem:[%s3332 + $0x1e0] sm:$0xff]
        %v3394 = vld [vmem:[%s3332 + $0x1e8] sm:$0xff]
        %v3395 = vld [vmem:[%s3332 + $0x1f0] sm:$0xff]
        %v3396 = vld [vmem:[%s3332 + $0x1f8] sm:$0xff]
        %v3397 = vld [vmem:[%s3332 + $0x200] sm:$0xff]
        %v3398 = vld [vmem:[%s3332 + $0x208] sm:$0xff]
        %v3399 = vld [vmem:[%s3332 + $0x210] sm:$0xff]
        %v3400 = vld [vmem:[%s3332 + $0x218] sm:$0xff]
        %v3401 = vld [vmem:[%s3332 + $0x220] sm:$0xff]
        %v3402 = vld [vmem:[%s3332 + $0x228] sm:$0xff]
        %v3403 = vld [vmem:[%s3332 + $0x230] sm:$0xff]
        %v3404 = vld [vmem:[%s3332 + $0x238] sm:$0xff]
        %v3405 = vld [vmem:[%s3332 + $0x240] sm:$0xff]
        %v3406 = vld [vmem:[%s3332 + $0x248] sm:$0xff]
        %v3407 = vld [vmem:[%s3332 + $0x250] sm:$0xff]
        %v3408 = vld [vmem:[%s3332 + $0x258] sm:$0xff]
        %v3409 = vld [vmem:[%s3332 + $0x260] sm:$0xff]
        %v3410 = vld [vmem:[%s3332 + $0x268] sm:$0xff]
        %v3411 = vld [vmem:[%s3332 + $0x270] sm:$0xff]
        %v3412 = vld [vmem:[%s3332 + $0x278] sm:$0xff]
        %v3413 = vld [vmem:[%s3332 + $0x280] sm:$0xff]
        %v3414 = vld [vmem:[%s3332 + $0x288] sm:$0xff]
        %v3415 = vld [vmem:[%s3332 + $0x290] sm:$0xff]
        %v3416 = vld [vmem:[%s3332 + $0x298] sm:$0xff]
        %v3417 = vld [vmem:[%s3332 + $0x2a0] sm:$0xff]
        %v3418 = vld [vmem:[%s3332 + $0x2a8] sm:$0xff]
        %v3419 = vld [vmem:[%s3332 + $0x2b0] sm:$0xff]
        %v3420 = vld [vmem:[%s3332 + $0x2b8] sm:$0xff]
        %v3421 = vld [vmem:[%s3332 + $0x2c0] sm:$0xff]
        %v3422 = vld [vmem:[%s3332 + $0x2c8] sm:$0xff]
        %v3423 = vld [vmem:[%s3332 + $0x2d0] sm:$0xff]
        %v3424 = vld [vmem:[%s3332 + $0x2d8] sm:$0xff]
        %v3425 = vld [vmem:[%s3332 + $0x2e0] sm:$0xff]
        %v3426 = vld [vmem:[%s3332 + $0x2e8] sm:$0xff]
        %v3427 = vld [vmem:[%s3332 + $0x2f0] sm:$0xff]
        %v3428 = vld [vmem:[%s3332 + $0x2f8] sm:$0xff]
        %v3429 = vld [vmem:[%s3332 + $0x300] sm:$0xff]
        %v3430 = vld [vmem:[%s3332 + $0x308] sm:$0xff]
        %v3431 = vrot.slane %v565, 7
        %v3432 = vrot.slane %v566, 7
        %v3433 = vrot.slane %v567, 7
        %v3434 = vrot.slane %v568, 7
        %v3435 = vrot.slane %v569, 7
        %v3436 = vrot.slane %v570, 7
        %v3437 = vrot.slane %v571, 7
        %v3444 = vsel %vm671, %v3437, 0
        %3446 = vmatprep.subr.mxu0 0.0
        %3447 = vmatpush1.msra.mxu0 %v3333
        %3448 = vmatprep.subr.mxu0 0.0
        %3449 = vmatpush1.msra.mxu0 %v3334
        %3450 = vmatprep.subr.mxu0 0.0
        %3451 = vmatpush1.msra.mxu0 %v3335
        %3452 = vmatprep.subr.mxu0 0.0
        %3453 = vmatpush1.msra.mxu0 %v3336
        %3454 = vmatprep.subr.mxu0 0.0
        %3455 = vmatpush1.msra.mxu0 %v3337
        %3456 = vmatprep.subr.mxu0 0.0
        %3457 = vmatpush1.msra.mxu0 %v3338
        %3458 = vmatprep.subr.mxu0 0.0
        %3459 = vmatpush1.msra.mxu0 %v3339
        %3460 = vmatprep.subr.mxu0 0.0
        %3461 = vmatpush1.msra.mxu0 %v3340
        %3462 = vmatprep.subr.mxu0 0.0
        %3463 = vmatpush1.msra.mxu0 %v3341
        %3464 = vmatprep.subr.mxu0 0.0
        %3465 = vmatpush1.msra.mxu0 %v3342
        %3466 = vmatprep.subr.mxu0 0.0
        %3467 = vmatpush1.msra.mxu0 %v3343
        %3468 = vmatprep.subr.mxu0 0.0
        %3469 = vmatpush1.msra.mxu0 %v3344
        %3470 = vmatprep.subr.mxu0 0.0
        %3471 = vmatpush1.msra.mxu0 %v3345
        %3472 = vmatprep.subr.mxu0 0.0
        %3473 = vmatpush1.msra.mxu0 %v3346
        %3474 = vmatprep.subr.mxu0 0.0
        %3475 = vmatpush1.msra.mxu0 %v3347
        %3476 = vmatprep.subr.mxu0 0.0
        %3477 = vmatpush1.msra.mxu0 %v3348
        %3478 = vmatprep.subr.mxu0 0.0
        %3479 = vmatpush1.msra.mxu0 %v3349
        %3480 = vmatprep.subr.mxu0 0.0
        %3481 = vmatpush1.msra.mxu0 %v3350
        %3482 = vmatprep.subr.mxu0 0.0
        %3483 = vmatpush1.msra.mxu0 %v3351
        %3484 = vmatprep.subr.mxu0 0.0
        %3485 = vmatpush1.msra.mxu0 %v3352
        %3486 = vmatprep.subr.mxu0 0.0
        %3487 = vmatpush1.msra.mxu0 %v3353
        %3488 = vmatprep.subr.mxu0 0.0
        %3489 = vmatpush1.msra.mxu0 %v3354
        %3490 = vmatprep.subr.mxu0 0.0
        %3491 = vmatpush1.msra.mxu0 %v3355
        %3492 = vmatprep.subr.mxu0 0.0
        %3493 = vmatpush1.msra.mxu0 %v3356
        %3494 = vmatprep.subr.mxu0 0.0
        %3495 = vmatpush1.msra.mxu0 %v3357
        %3496 = vmatprep.subr.mxu0 0.0
        %3497 = vmatpush1.msra.mxu0 %v3358
        %3498 = vmatprep.subr.mxu0 0.0
        %3499 = vmatpush1.msra.mxu0 %v3359
        %3500 = vmatprep.subr.mxu0 0.0
        %3501 = vmatpush1.msra.mxu0 %v3360
        %3502 = vmatprep.subr.mxu0 0.0
        %3503 = vmatpush1.msra.mxu0 %v3361
        %3504 = vmatprep.subr.mxu0 0.0
        %3505 = vmatpush1.msra.mxu0 %v3362
        %3506 = vmatprep.subr.mxu0 0.0
        %3507 = vmatpush1.msra.mxu0 %v3363
        %3508 = vmatprep.subr.mxu0 0.0
        %3509 = vmatpush1.msra.mxu0 %v3364
        %3510 = vmatprep.mubr.f32.mxu0 %v3432
        %3511 = vmatmul.mubr.f32.gmra.mrb[0].mxu0 %v3431
        %v3512 = vpop.f32.mrb[0].mxu0
        %v3513 = vadd.f32 0.0, %v3512
        %v3514 = vpop.f32.mrb[0].mxu0
        %3515 = vdwg.mxu0
        %3516 = vmatprep.subr.mxu0 0.0
        %3517 = vmatpush1.msra.mxu0 %v3365
        %3518 = vmatprep.subr.mxu0 0.0
        %3519 = vmatpush1.msra.mxu0 %v3366
        %3520 = vmatprep.subr.mxu0 0.0
        %3521 = vmatpush1.msra.mxu0 %v3367
        %3522 = vmatprep.subr.mxu0 0.0
        %3523 = vmatpush1.msra.mxu0 %v3368
        %3524 = vmatprep.subr.mxu0 0.0
        %3525 = vmatpush1.msra.mxu0 %v3369
        %3526 = vmatprep.subr.mxu0 0.0
        %3527 = vmatpush1.msra.mxu0 %v3370
        %3528 = vmatprep.subr.mxu0 0.0
        %3529 = vmatpush1.msra.mxu0 %v3371
        %3530 = vmatprep.subr.mxu0 0.0
        %3531 = vmatpush1.msra.mxu0 %v3372
        %3532 = vmatprep.subr.mxu0 0.0
        %3533 = vmatpush1.msra.mxu0 %v3373
        %3534 = vmatprep.subr.mxu0 0.0
        %3535 = vmatpush1.msra.mxu0 %v3374
        %3536 = vmatprep.subr.mxu0 0.0
        %3537 = vmatpush1.msra.mxu0 %v3375
        %3538 = vmatprep.subr.mxu0 0.0
        %3539 = vmatpush1.msra.mxu0 %v3376
        %3540 = vmatprep.subr.mxu0 0.0
        %3541 = vmatpush1.msra.mxu0 %v3377
        %3542 = vmatprep.subr.mxu0 0.0
        %3543 = vmatpush1.msra.mxu0 %v3378
        %3544 = vmatprep.subr.mxu0 0.0
        %3545 = vmatpush1.msra.mxu0 %v3379
        %3546 = vmatprep.subr.mxu0 0.0
        %3547 = vmatpush1.msra.mxu0 %v3380
        %3548 = vmatprep.subr.mxu0 0.0
        %3549 = vmatpush1.msra.mxu0 %v3381
        %3550 = vmatprep.subr.mxu0 0.0
        %3551 = vmatpush1.msra.mxu0 %v3382
        %3552 = vmatprep.subr.mxu0 0.0
        %3553 = vmatpush1.msra.mxu0 %v3383
        %3554 = vmatprep.subr.mxu0 0.0
        %3555 = vmatpush1.msra.mxu0 %v3384
        %3556 = vmatprep.subr.mxu0 0.0
        %3557 = vmatpush1.msra.mxu0 %v3385
        %3558 = vmatprep.subr.mxu0 0.0
        %3559 = vmatpush1.msra.mxu0 %v3386
        %3560 = vmatprep.subr.mxu0 0.0
        %3561 = vmatpush1.msra.mxu0 %v3387
        %3562 = vmatprep.subr.mxu0 0.0
        %3563 = vmatpush1.msra.mxu0 %v3388
        %3564 = vmatprep.subr.mxu0 0.0
        %3565 = vmatpush1.msra.mxu0 %v3389
        %3566 = vmatprep.subr.mxu0 0.0
        %3567 = vmatpush1.msra.mxu0 %v3390
        %3568 = vmatprep.subr.mxu0 0.0
        %3569 = vmatpush1.msra.mxu0 %v3391
        %3570 = vmatprep.subr.mxu0 0.0
        %3571 = vmatpush1.msra.mxu0 %v3392
        %3572 = vmatprep.subr.mxu0 0.0
        %3573 = vmatpush1.msra.mxu0 %v3393
        %3574 = vmatprep.subr.mxu0 0.0
        %3575 = vmatpush1.msra.mxu0 %v3394
        %3576 = vmatprep.subr.mxu0 0.0
        %3577 = vmatpush1.msra.mxu0 %v3395
        %3578 = vmatprep.subr.mxu0 0.0
        %3579 = vmatpush1.msra.mxu0 %v3396
        %3580 = vmatprep.mubr.f32.mxu0 %v3434
        %3581 = vmatmul.mubr.f32.gmra.mrb[0].mxu0 %v3433
        %v3582 = vpop.f32.mrb[0].mxu0
        %v3583 = vadd.f32 %v3513, %v3582
        %v3584 = vpop.f32.mrb[0].mxu0
        %3585 = vdwg.mxu0
        %3586 = vmatprep.subr.mxu0 0.0
        %3587 = vmatpush1.msra.mxu0 %v3397
        %3588 = vmatprep.subr.mxu0 0.0
        %3589 = vmatpush1.msra.mxu0 %v3398
        %3590 = vmatprep.subr.mxu0 0.0
        %3591 = vmatpush1.msra.mxu0 %v3399
        %3592 = vmatprep.subr.mxu0 0.0
        %3593 = vmatpush1.msra.mxu0 %v3400
        %3594 = vmatprep.subr.mxu0 0.0
        %3595 = vmatpush1.msra.mxu0 %v3401
        %3596 = vmatprep.subr.mxu0 0.0
        %3597 = vmatpush1.msra.mxu0 %v3402
        %3598 = vmatprep.subr.mxu0 0.0
        %3599 = vmatpush1.msra.mxu0 %v3403
        %3600 = vmatprep.subr.mxu0 0.0
        %3601 = vmatpush1.msra.mxu0 %v3404
        %3602 = vmatprep.subr.mxu0 0.0
        %3603 = vmatpush1.msra.mxu0 %v3405
        %3604 = vmatprep.subr.mxu0 0.0
        %3605 = vmatpush1.msra.mxu0 %v3406
        %3606 = vmatprep.subr.mxu0 0.0
        %3607 = vmatpush1.msra.mxu0 %v3407
        %3608 = vmatprep.subr.mxu0 0.0
        %3609 = vmatpush1.msra.mxu0 %v3408
        %3610 = vmatprep.subr.mxu0 0.0
        %3611 = vmatpush1.msra.mxu0 %v3409
        %3612 = vmatprep.subr.mxu0 0.0
        %3613 = vmatpush1.msra.mxu0 %v3410
        %3614 = vmatprep.subr.mxu0 0.0
        %3615 = vmatpush1.msra.mxu0 %v3411
        %3616 = vmatprep.subr.mxu0 0.0
        %3617 = vmatpush1.msra.mxu0 %v3412
        %3618 = vmatprep.subr.mxu0 0.0
        %3619 = vmatpush1.msra.mxu0 %v3413
        %3620 = vmatprep.subr.mxu0 0.0
        %3621 = vmatpush1.msra.mxu0 %v3414
        %3622 = vmatprep.subr.mxu0 0.0
        %3623 = vmatpush1.msra.mxu0 %v3415
        %3624 = vmatprep.subr.mxu0 0.0
        %3625 = vmatpush1.msra.mxu0 %v3416
        %3626 = vmatprep.subr.mxu0 0.0
        %3627 = vmatpush1.msra.mxu0 %v3417
        %3628 = vmatprep.subr.mxu0 0.0
        %3629 = vmatpush1.msra.mxu0 %v3418
        %3630 = vmatprep.subr.mxu0 0.0
        %3631 = vmatpush1.msra.mxu0 %v3419
        %3632 = vmatprep.subr.mxu0 0.0
        %3633 = vmatpush1.msra.mxu0 %v3420
        %3634 = vmatprep.subr.mxu0 0.0
        %3635 = vmatpush1.msra.mxu0 %v3421
        %3636 = vmatprep.subr.mxu0 0.0
        %3637 = vmatpush1.msra.mxu0 %v3422
        %3638 = vmatprep.subr.mxu0 0.0
        %3639 = vmatpush1.msra.mxu0 %v3423
        %3640 = vmatprep.subr.mxu0 0.0
        %3641 = vmatpush1.msra.mxu0 %v3424
        %3642 = vmatprep.subr.mxu0 0.0
        %3643 = vmatpush1.msra.mxu0 %v3425
        %3644 = vmatprep.subr.mxu0 0.0
        %3645 = vmatpush1.msra.mxu0 %v3426
        %3646 = vmatprep.subr.mxu0 0.0
        %3647 = vmatpush1.msra.mxu0 %v3427
        %3648 = vmatprep.subr.mxu0 0.0
        %3649 = vmatpush1.msra.mxu0 %v3428
        %3650 = vmatprep.mubr.f32.mxu0 %v3436
        %3651 = vmatmul.mubr.f32.gmra.mrb[0].mxu0 %v3435
        %v3652 = vpop.f32.mrb[0].mxu0
        %v3653 = vadd.f32 %v3583, %v3652
        %v3654 = vpop.f32.mrb[0].mxu0
        %3655 = vdwg.mxu0
        %3656 = vmatprep.subr.mxu0 0.0
        %3657 = vmatpush1.msra.mxu0 %v3429
        %3658 = vmatprep.subr.mxu0 0.0
        %3659 = vmatpush1.msra.mxu0 %v3430
        %3660 = vmatprep.subr.mxu0 0.0
        %3661 = vmatpush1.msra.mxu0 0.0
        %3662 = vmatprep.subr.mxu0 0.0
        %3663 = vmatpush1.msra.mxu0 0.0
        %3664 = vmatprep.subr.mxu0 0.0
        %3665 = vmatpush1.msra.mxu0 0.0
        %3666 = vmatprep.subr.mxu0 0.0
        %3667 = vmatpush1.msra.mxu0 0.0
        %3668 = vmatprep.subr.mxu0 0.0
        %3669 = vmatpush1.msra.mxu0 0.0
        %3670 = vmatprep.subr.mxu0 0.0
        %3671 = vmatpush1.msra.mxu0 0.0
        %3672 = vmatprep.subr.mxu0 0.0
        %3673 = vmatpush1.msra.mxu0 0.0
        %3674 = vmatprep.subr.mxu0 0.0
        %3675 = vmatpush1.msra.mxu0 0.0
        %3676 = vmatprep.subr.mxu0 0.0
        %3677 = vmatpush1.msra.mxu0 0.0
        %3678 = vmatprep.subr.mxu0 0.0
        %3679 = vmatpush1.msra.mxu0 0.0
        %3680 = vmatprep.subr.mxu0 0.0
        %3681 = vmatpush1.msra.mxu0 0.0
        %3682 = vmatprep.subr.mxu0 0.0
        %3683 = vmatpush1.msra.mxu0 0.0
        %3684 = vmatprep.subr.mxu0 0.0
        %3685 = vmatpush1.msra.mxu0 0.0
        %3686 = vmatprep.subr.mxu0 0.0
        %3687 = vmatpush1.msra.mxu0 0.0
        %3688 = vmatprep.subr.mxu0 0.0
        %3689 = vmatpush1.msra.mxu0 0.0
        %3690 = vmatprep.subr.mxu0 0.0
        %3691 = vmatpush1.msra.mxu0 0.0
        %3692 = vmatprep.subr.mxu0 0.0
        %3693 = vmatpush1.msra.mxu0 0.0
        %3694 = vmatprep.subr.mxu0 0.0
        %3695 = vmatpush1.msra.mxu0 0.0
        %3696 = vmatprep.subr.mxu0 0.0
        %3697 = vmatpush1.msra.mxu0 0.0
        %3698 = vmatprep.subr.mxu0 0.0
        %3699 = vmatpush1.msra.mxu0 0.0
        %3700 = vmatprep.subr.mxu0 0.0
        %3701 = vmatpush1.msra.mxu0 0.0
        %3702 = vmatprep.subr.mxu0 0.0
        %3703 = vmatpush1.msra.mxu0 0.0
        %3704 = vmatprep.subr.mxu0 0.0
        %3705 = vmatpush1.msra.mxu0 0.0
        %3706 = vmatprep.subr.mxu0 0.0
        %3707 = vmatpush1.msra.mxu0 0.0
        %3708 = vmatprep.subr.mxu0 0.0
        %3709 = vmatpush1.msra.mxu0 0.0
        %3710 = vmatprep.subr.mxu0 0.0
        %3711 = vmatpush1.msra.mxu0 0.0
        %3712 = vmatprep.subr.mxu0 0.0
        %3713 = vmatpush1.msra.mxu0 0.0
        %3714 = vmatprep.subr.mxu0 0.0
        %3715 = vmatpush1.msra.mxu0 0.0
        %3716 = vmatprep.subr.mxu0 0.0
        %3717 = vmatpush1.msra.mxu0 0.0
        %3718 = vmatprep.subr.mxu0 0.0
        %3719 = vmatpush1.msra.mxu0 0.0
        %3720 = vmatprep.mubr.f32.mxu0 0.0
        %3721 = vmatmul.mubr.f32.gmra.mrb[0].mxu0 %v3444
        %v3722 = vpop.f32.mrb[0].mxu0
        %v3723 = vadd.f32 %v3653, %v3722
        %v3724 = vpop.f32.mrb[0].mxu0
        %3725 = vdwg.mxu0
        %v3726 = vadd.f32 %v3331, %v3723
        %v3727 = vmax.f32 %v3726, 0.0
        %v3728 = vld [vmem:[%s4] sm:$0xff]
        %v3729 = vld [vmem:[%s4 + $0x8] sm:$0xff]
        %v3730 = vld [vmem:[%s4 + $0x10] sm:$0xff]
        %v3731 = vld [vmem:[%s4 + $0x18] sm:$0xff]
        %v3732 = vld [vmem:[%s5] sm:$0x1]
        %v3734 = vsel %vm278, %v3727, 0
        %3736 = vmatprep.subr.mxu0 0.0
        %3737 = vmatpush1.msra.mxu0 %v3728
        %3738 = vmatprep.subr.mxu0 0.0
        %3739 = vmatpush1.msra.mxu0 %v3729
        %3740 = vmatprep.subr.mxu0 0.0
        %3741 = vmatpush1.msra.mxu0 %v3730
        %3742 = vmatprep.subr.mxu0 0.0
        %3743 = vmatpush1.msra.mxu0 %v3731
        %3744 = vmatprep.subr.mxu0 0.0
        %3745 = vmatpush1.msra.mxu0 0.0
        %3746 = vmatprep.subr.mxu0 0.0
        %3747 = vmatpush1.msra.mxu0 0.0
        %3748 = vmatprep.subr.mxu0 0.0
        %3749 = vmatpush1.msra.mxu0 0.0
        %3750 = vmatprep.subr.mxu0 0.0
        %3751 = vmatpush1.msra.mxu0 0.0
        %3752 = vmatprep.subr.mxu0 0.0
        %3753 = vmatpush1.msra.mxu0 0.0
        %3754 = vmatprep.subr.mxu0 0.0
        %3755 = vmatpush1.msra.mxu0 0.0
        %3756 = vmatprep.subr.mxu0 0.0
        %3757 = vmatpush1.msra.mxu0 0.0
        %3758 = vmatprep.subr.mxu0 0.0
        %3759 = vmatpush1.msra.mxu0 0.0
        %3760 = vmatprep.subr.mxu0 0.0
        %3761 = vmatpush1.msra.mxu0 0.0
        %3762 = vmatprep.subr.mxu0 0.0
        %3763 = vmatpush1.msra.mxu0 0.0
        %3764 = vmatprep.subr.mxu0 0.0
        %3765 = vmatpush1.msra.mxu0 0.0
        %3766 = vmatprep.subr.mxu0 0.0
        %3767 = vmatpush1.msra.mxu0 0.0
        %3768 = vmatprep.subr.mxu0 0.0
        %3769 = vmatpush1.msra.mxu0 0.0
        %3770 = vmatprep.subr.mxu0 0.0
        %3771 = vmatpush1.msra.mxu0 0.0
        %3772 = vmatprep.subr.mxu0 0.0
        %3773 = vmatpush1.msra.mxu0 0.0
        %3774 = vmatprep.subr.mxu0 0.0
        %3775 = vmatpush1.msra.mxu0 0.0
        %3776 = vmatprep.subr.mxu0 0.0
        %3777 = vmatpush1.msra.mxu0 0.0
        %3778 = vmatprep.subr.mxu0 0.0
        %3779 = vmatpush1.msra.mxu0 0.0
        %3780 = vmatprep.subr.mxu0 0.0
        %3781 = vmatpush1.msra.mxu0 0.0
        %3782 = vmatprep.subr.mxu0 0.0
        %3783 = vmatpush1.msra.mxu0 0.0
        %3784 = vmatprep.subr.mxu0 0.0
        %3785 = vmatpush1.msra.mxu0 0.0
        %3786 = vmatprep.subr.mxu0 0.0
        %3787 = vmatpush1.msra.mxu0 0.0
        %3788 = vmatprep.subr.mxu0 0.0
        %3789 = vmatpush1.msra.mxu0 0.0
        %3790 = vmatprep.subr.mxu0 0.0
        %3791 = vmatpush1.msra.mxu0 0.0
        %3792 = vmatprep.subr.mxu0 0.0
        %3793 = vmatpush1.msra.mxu0 0.0
        %3794 = vmatprep.subr.mxu0 0.0
        %3795 = vmatpush1.msra.mxu0 0.0
        %3796 = vmatprep.subr.mxu0 0.0
        %3797 = vmatpush1.msra.mxu0 0.0
        %3798 = vmatprep.subr.mxu0 0.0
        %3799 = vmatpush1.msra.mxu0 0.0
        %3800 = vmatprep.mubr.f32.mxu0 0.0
        %3801 = vmatmul.mubr.f32.gmra.mrb[0].mxu0 %v3734
        %v3802 = vpop.f32.mrb[0].mxu0
        %v3803 = vadd.f32 %v3732, %v3802
        %v3804 = vpop.f32.mrb[0].mxu0
        %3805 = vdwg.mxu0
        %vm3806 = vcmask 73728
        %3807 = vst.msk [vmem:[%s243] sm:$0x1] %vm3806, %v3803
        %s3808 = sand.u32 %s159, 1
        %s3809 = scalar_lea.sflag [#allocation3], %s3808
        %s3810 = sand.u32 %s159, 1
        %s3811 = scalar_lea.vmem [#allocation2], %s3810
        // Predicated region
        $region45: #{conv_mlp_forward.1} parent=43 // pred_check
          %p3812 = pneg %p169
        $region46: #{conv_mlp_forward.1} parent=43 // pred_check_branch
          %3814 = sbr.rel (%p3812) target = $region48
        $region47: #{conv_mlp_forward.1} parent=43 // pred_region
          %s3816 = ssub.s32 16, 16
          %3817 = vsyncadd %s3809, %s3816
          %s3818 = smul.addr %s20, 16
          %s3819 = scalar_lea.hbm %s6, %s3818
          %s3821 = sshll.u32 %s3811, 4
          %s3822 = int_to_ptr.vmem [resolvable:$true] %s3821
          %3824 = dma.vmem_to_hbm [thread:$0]  %s3822, 16, %s3819, %s3809
        $region48: #{conv_mlp_forward.1} parent=43 // pred_fallthru
          _
      $region44: #{conv_mlp_forward.1} parent=5 // pred_fallthru
        _
      %p3825 = scmp.le.s32.totalorder 2, %s15
      // Predicated region
      $region49: #{conv_mlp_forward.1} parent=5 // pred_check
        %p3826 = pneg %p3825
      $region50: #{conv_mlp_forward.1} parent=5 // pred_check_branch
        %3828 = sbr.rel (%p3826) target = $region52
      $region51: #{conv_mlp_forward.1} parent=5 // pred_region
        %s3829 = ssub.s32 %s15, 2
        // Predicated region
        $region53: #{conv_mlp_forward.1} parent=51 // pred_check
          %p3830 = pneg %p175
        $region54: #{conv_mlp_forward.1} parent=51 // pred_check_branch
          %3832 = sbr.rel (%p3830) target = $region56
        $region55: #{conv_mlp_forward.1} parent=51 // pred_region
          %s3833 = sand.u32 %s160, 1
          %s3834 = scalar_lea.sflag [#allocation3], %s3833
          %s3835 = sand.u32 %s160, 1
          %s3836 = scalar_lea.vmem [#allocation2], %s3835
          %3837 = dma.done %s3834, 16
        $region56: #{conv_mlp_forward.1} parent=51 // pred_fallthru
          _
      $region52: #{conv_mlp_forward.1} parent=5 // pred_fallthru
        _
    $region6: #{conv_mlp_forward.1} parent=1 // loop_footer
      %s19 = sadd.s32 1, %s15
    $region7: #{conv_mlp_forward.1} parent=1 // loop_footer_branch
      %14 = sbr.rel target = $region3
    $region8: #{conv_mlp_forward.1} parent=1 // loop_exit
      _
    %3838 = vsyncpa [#allocation3], 1
    %s3839 = scalar_lea.sflag [#allocation3], 1
    %3840 = vsyncpa %s3839, 1

</llo_original>
